<compile_context>
chip_gen: v5e
topology: v5e:2x2
jax: 0.10.0
libtpu: 0.0.40
codegen_flags: <defaults>
</compile_context>

<pallas_src>
import functools
import math

import jax
import jax.numpy as jnp
from jax import lax
from jax.experimental import pallas as pl
from jax.experimental.pallas import tpu as pltpu

INPUT_DIM = 3
PAD_DIN = 8                # input channel dim padded to one sublane group
LATENT_DIM = 4
ATTN_DIM = 64
NUM_HEADS = 1
NUM_QUERIES = 64
OUT_PAD = 128              # lane-dense padded output width
VEC_ROWS = 16              # packed (1, C) vector slab (padded to 8 rows mult.)

BN_EPS = 1e-5
LN_EPS = 1e-5
LOG_EPS = 1e-8


def _bn_train(y, gamma, beta):
    """BatchNorm1d training semantics: biased batch stats over rows, one pass."""
    inv_n = 1.0 / y.shape[0]
    mu = jnp.sum(y, axis=0, keepdims=True) * inv_n
    ex2 = jnp.sum(y * y, axis=0, keepdims=True) * inv_n
    var = jnp.maximum(ex2 - mu * mu, 0.0)          # cancellation guard
    return (y - mu) * lax.rsqrt(var + BN_EPS) * gamma + beta


def pointnet_kernel(xt_ref, w1_ref, w2_ref, w3_ref, ws_ref, wbig_ref, w5_ref,
                    vec_ref, z_ref, *, B, N):
    # Packed per-channel vectors (single DMA).
    vecs = vec_ref[...]                                         # (16, 128)
    g1, bb1 = vecs[0:1, :16], vecs[1:2, :16]
    g2, bb2 = vecs[2:3, :32], vecs[3:4, :32]
    g3, bb3 = vecs[4:5, :64], vecs[5:6, :64]
    g4, bb4 = vecs[6:7, :], vecs[7:8, :]
    b5 = vecs[8:9, :]

    # Lane-dense log (channels on sublanes, points on lanes); log10 folded
    # into W1 at prep time -> one transcendental pass over ~4 vregs.
    lg_t = jnp.log(xt_ref[...] + LOG_EPS)                       # (8, B*N)

    # conv1x1 #1 as a transposed-LHS matmul (contract the padded channel dim).
    h = lax.dot_general(lg_t, w1_ref[...], (((0,), (0,)), ((), ())),
                        preferred_element_type=jnp.float32)     # (B*N, 16)
    h = jnp.maximum(_bn_train(h, g1, bb1), 0.0)                 # b1 cancels in BN

    h = jnp.dot(h, w2_ref[...], preferred_element_type=jnp.float32)
    h = jnp.maximum(_bn_train(h, g2, bb2), 0.0)

    h = jnp.dot(h, w3_ref[...], preferred_element_type=jnp.float32)
    h = jnp.maximum(_bn_train(h, g3, bb3), 0.0)                 # (B*N, E)

    # LayerNorm statistics only; the affine (ln_g, ln_b) is folded into the
    # score / value matrices at prep time.
    mu = jnp.mean(h, axis=-1, keepdims=True)
    var = jnp.maximum(jnp.mean(h * h, axis=-1, keepdims=True) - mu * mu, 0.0)
    xhat = (h - mu) * lax.rsqrt(var + LN_EPS)                   # (B*N, E)

    # Attention scores against the folded constant query/key matrix.
    s = jnp.dot(xhat, ws_ref[...], preferred_element_type=jnp.float32)  # (B*N, Q)
    s = s.reshape(B, N, NUM_QUERIES)

    # Softmax over points per (batch, query), then mean over queries -> a
    # single weight per point.
    m = jnp.max(s, axis=1, keepdims=True)                       # (B, 1, Q)
    e = jnp.exp(s - m)
    inv_d = pl.reciprocal(jnp.sum(e, axis=1, keepdims=True), approx=True)
    w_pts = jnp.mean(e * inv_d, axis=2, keepdims=True)          # (B, N, 1)

    # Value proj / out_proj / mlp2-Linear-1 are linear and sit after a linear
    # pooling: pool the normalized features first, then apply the folded
    # (E, 128) matrix once on the tiny (B, E) pooled activation.
    pooled = jnp.sum(xhat.reshape(B, N, ATTN_DIM) * w_pts, axis=1)       # (B, E)
    h2 = jnp.dot(pooled, wbig_ref[...], preferred_element_type=jnp.float32)
    h2 = jnp.maximum(_bn_train(h2, g4, bb4), 0.0)               # bias chain cancels
    z = jnp.dot(h2, w5_ref[...], preferred_element_type=jnp.float32) + b5
    z_ref[...] = z.astype(z_ref.dtype)                          # (B, OUT_PAD)


@jax.jit
def pointnet_compressor(x, prepared_params):
    B, N, Din = x.shape
    # Present the input lane-dense for the in-kernel log: (Din, B*N) padded to
    # 8 channel rows (pad value 1.0 -> log == ~0; padded W1 rows are zero).
    xt = x.reshape(B * N, Din).T
    xt = jnp.concatenate([xt, jnp.ones((PAD_DIN - Din, B * N), x.dtype)], axis=0)

    args = (xt,) + tuple(prepared_params)
    kernel = functools.partial(pointnet_kernel, B=B, N=N)
    z_pad = pl.pallas_call(
        kernel,
        out_shape=jax.ShapeDtypeStruct((B, OUT_PAD), jnp.float32),
        in_specs=[pl.BlockSpec(memory_space=pltpu.MemorySpace.VMEM)] * len(args),
        out_specs=pl.BlockSpec(memory_space=pltpu.MemorySpace.VMEM),
        compiler_params=pltpu.CompilerParams(vmem_limit_bytes=32 * 1024 * 1024),
    )(*args)
    return z_pad[:, :LATENT_DIM]


def make_params(key):
    """PyTorch-equivalent parameters (conv/linear weights stored as (C_in, C_out)).

    LayerNorm affine and attention biases are set to non-trivial values so the
    prep-time algebraic folds are genuinely exercised by the reference check.
    """
    f32 = jnp.float32
    ks = jax.random.split(key, 24)

    def unif(k, shape, fan_in):
        b = 1.0 / math.sqrt(fan_in)
        return jax.random.uniform(k, shape, f32, -b, b)

    d2 = 2 * INPUT_DIM
    E, Q = ATTN_DIM, NUM_QUERIES
    w1 = unif(ks[0], (d2, 16), d2);       b1 = unif(ks[1], (1, 16), d2)
    w2 = unif(ks[2], (16, 32), 16);       b2 = unif(ks[3], (1, 32), 16)
    w3 = unif(ks[4], (32, E), 32);        b3 = unif(ks[5], (1, E), 32)
    g1, bb1 = jnp.ones((1, 16), f32), jnp.zeros((1, 16), f32)
    g2, bb2 = jnp.ones((1, 32), f32), jnp.zeros((1, 32), f32)
    g3, bb3 = jnp.ones((1, E), f32), jnp.zeros((1, E), f32)
    ln_g = 1.0 + 0.1 * jax.random.normal(ks[6], (1, E), f32)
    ln_b = 0.1 * jax.random.normal(ks[7], (1, E), f32)
    qtok = jax.random.normal(ks[8], (Q, E), f32)
    wq = unif(ks[9], (E, E), E);   bq = 0.1 * jax.random.normal(ks[10], (1, E), f32)
    wk = unif(ks[11], (E, E), E);  bk = 0.1 * jax.random.normal(ks[12], (1, E), f32)
    wv = unif(ks[13], (E, E), E);  bv = 0.1 * jax.random.normal(ks[14], (1, E), f32)
    wo = unif(ks[15], (E, E), E);  bo = 0.1 * jax.random.normal(ks[16], (1, E), f32)
    w4 = unif(ks[17], (E, 128), E);       b4 = unif(ks[18], (1, 128), E)
    g4, bb4 = jnp.ones((1, 128), f32), jnp.zeros((1, 128), f32)
    w5 = unif(ks[19], (128, LATENT_DIM), 128); b5 = unif(ks[20], (1, LATENT_DIM), 128)
    return (w1, b1, g1, bb1, w2, b2, g2, bb2, w3, b3, g3, bb3,
            ln_g, ln_b, qtok, wq, bq, wk, bk, wv, bv, wo, bo,
            w4, b4, g4, bb4, w5, b5)


def prepare_params(params):
    """Exact prep-time folds (outside the kernel)."""
    (w1, b1, g1, bb1, w2, b2, g2, bb2, w3, b3, g3, bb3,
     ln_g, ln_b, qtok, wq, bq, wk, bk, wv, bv, wo, bo,
     w4, b4, g4, bb4, w5, b5) = params
    d, E = INPUT_DIM, ATTN_DIM

    # (1) log10(y) = log(y)/ln(10), first layer is linear -> fold into W1, and
    #     pad the contracted channel dim to one sublane group with zero rows.
    w1f = w1[:d] + w1[d:] * (1.0 / math.log(10.0))
    w1p = jnp.zeros((PAD_DIN, w1f.shape[1]), w1f.dtype).at[:d, :].set(w1f)
    # b1/b2/b3/b4 cancel in train-mode BatchNorm -> dropped.

    # (2) constant query/key path -> one (E, Q) score matrix, scale folded in;
    #     bk's contribution is per-query constant -> softmax-invariant -> drop.
    qp = qtok @ wq + bq                                         # (Q, E)
    wscore = (wk @ qp.T) * (1.0 / math.sqrt(E // NUM_HEADS))    # (E, Q)

    # (3) value proj / out_proj / mlp2 Linear-1 folded into one matrix; their
    #     bias chain is batch-constant -> cancelled by BN4.
    wbig = wv @ wo @ w4                                         # (E, 128)

    # (4) LayerNorm affine folded into both: ln_b's score contribution is
    #     per-query constant, its wbig contribution is BN4-cancelled.
    wscore = ln_g.reshape(E, 1) * wscore
    wbig = ln_g.reshape(E, 1) * wbig

    # (5) lane-dense final projection: pad latent 4 -> 128 zero columns.
    w5p = jnp.zeros((w5.shape[0], OUT_PAD), w5.dtype).at[:, :LATENT_DIM].set(w5)
    b5p = jnp.zeros((1, OUT_PAD), b5.dtype).at[:, :LATENT_DIM].set(b5)

    # (6) pack surviving (1, C) vectors into one (16, 128) slab -> one DMA.
    rows = [g1, bb1, g2, bb2, g3, bb3, g4, bb4, b5p]
    vecs = jnp.zeros((VEC_ROWS, 128), jnp.float32)
    for r, v in enumerate(rows):
        v = v.reshape(-1)
        vecs = vecs.at[r, : v.shape[0]].set(v)

    return (w1p, w2, w3, wscore, wbig, w5p, vecs)


def ref_forward(x, params):
    """Pure-JAX reference, same op order as the PyTorch module forward."""
    (w1, b1, g1, bb1, w2, b2, g2, bb2, w3, b3, g3, bb3,
     ln_g, ln_b, qtok, wq, bq, wk, bk, wv, bv, wo, bo,
     w4, b4, g4, bb4, w5, b5) = params
    B, N, D = x.shape
    E, Q = ATTN_DIM, NUM_QUERIES

    def bn(y, g, b):
        mu = jnp.mean(y, axis=0, keepdims=True)
        var = jnp.mean((y - mu) ** 2, axis=0, keepdims=True)
        return (y - mu) / jnp.sqrt(var + BN_EPS) * g + b

    feat = jnp.concatenate(
        [jnp.log(x + LOG_EPS), jnp.log10(x + LOG_EPS)], axis=-1).reshape(B * N, 2 * D)
    h = jnp.maximum(bn(feat @ w1 + b1, g1, bb1), 0.0)
    h = jnp.maximum(bn(h @ w2 + b2, g2, bb2), 0.0)
    h = jnp.maximum(bn(h @ w3 + b3, g3, bb3), 0.0)
    mu = jnp.mean(h, -1, keepdims=True)
    var = jnp.mean((h - mu) ** 2, -1, keepdims=True)
    h = (h - mu) / jnp.sqrt(var + LN_EPS) * ln_g + ln_b

    qp = qtok @ wq + bq                                   # (Q, E)
    kp = (h @ wk + bk).reshape(B, N, E)
    vp = (h @ wv + bv).reshape(B, N, E)
    s = jnp.einsum('qe,bne->bqn', qp, kp) / math.sqrt(E // NUM_HEADS)
    p = jax.nn.softmax(s, axis=-1)
    attn = jnp.einsum('bqn,bne->bqe', p, vp)
    out = (attn.reshape(B * Q, E) @ wo + bo).reshape(B, Q, E)
    pooled = out.mean(axis=1)
    h2 = jnp.maximum(bn(pooled @ w4 + b4, g4, bb4), 0.0)
    return h2 @ w5 + b5


if __name__ == "__main__":
    key = jax.random.PRNGKey(0)
    kx, kparam = jax.random.split(key)
    B, N = 8, 64
    # positive inputs (torch.log of negatives would be NaN in the reference too)
    x = jax.random.uniform(kx, (B, N, INPUT_DIM), jnp.float32, 0.1, 2.0)
    params = make_params(kparam)
    prepared = prepare_params(params)

    z = pointnet_compressor(x, prepared)
    jax.block_until_ready(z)

    ref = ref_forward(x, params)
    assert z.shape == (B, LATENT_DIM)
    assert bool(jnp.all(jnp.isfinite(z)))
    assert bool(jnp.allclose(z, ref, atol=1e-2, rtol=1e-2)), \
        float(jnp.max(jnp.abs(z - ref)))

    print("KERNEL_OK")
</pallas_src>

<mosaic_0001>
module attributes {stable_mosaic.version = 11 : i64} {
  func.func @pointnet_kernel(%arg0: memref<8x512xf32, #tpu.memory_space<vmem>>, %arg1: memref<8x16xf32, #tpu.memory_space<vmem>>, %arg2: memref<16x32xf32, #tpu.memory_space<vmem>>, %arg3: memref<32x64xf32, #tpu.memory_space<vmem>>, %arg4: memref<64x64xf32, #tpu.memory_space<vmem>>, %arg5: memref<64x128xf32, #tpu.memory_space<vmem>>, %arg6: memref<128x128xf32, #tpu.memory_space<vmem>>, %arg7: memref<16x128xf32, #tpu.memory_space<vmem>>, %arg8: memref<8x128xf32, #tpu.memory_space<vmem>>) attributes {dimension_semantics = [], scalar_prefetch = 0 : i64, scratch_operands = 0 : i64, tpu.core_type = #tpu.core_type<tc>} {
    %c0 = arith.constant 0 : index
    %c0_0 = arith.constant 0 : index
    %0 = vector.load %arg7[%c0, %c0_0] : memref<16x128xf32, #tpu.memory_space<vmem>>, vector<16x128xf32>
    %1 = vector.extract_strided_slice %0 {offsets = [0, 0], sizes = [1, 16], strides = [1, 1]} : vector<16x128xf32> to vector<1x16xf32>
    %2 = vector.extract_strided_slice %0 {offsets = [1, 0], sizes = [1, 16], strides = [1, 1]} : vector<16x128xf32> to vector<1x16xf32>
    %3 = vector.extract_strided_slice %0 {offsets = [2, 0], sizes = [1, 32], strides = [1, 1]} : vector<16x128xf32> to vector<1x32xf32>
    %4 = vector.extract_strided_slice %0 {offsets = [3, 0], sizes = [1, 32], strides = [1, 1]} : vector<16x128xf32> to vector<1x32xf32>
    %5 = vector.extract_strided_slice %0 {offsets = [4, 0], sizes = [1, 64], strides = [1, 1]} : vector<16x128xf32> to vector<1x64xf32>
    %6 = vector.extract_strided_slice %0 {offsets = [5, 0], sizes = [1, 64], strides = [1, 1]} : vector<16x128xf32> to vector<1x64xf32>
    %7 = vector.extract_strided_slice %0 {offsets = [6, 0], sizes = [1, 128], strides = [1, 1]} : vector<16x128xf32> to vector<1x128xf32>
    %8 = vector.extract_strided_slice %0 {offsets = [7, 0], sizes = [1, 128], strides = [1, 1]} : vector<16x128xf32> to vector<1x128xf32>
    %9 = vector.extract_strided_slice %0 {offsets = [8, 0], sizes = [1, 128], strides = [1, 1]} : vector<16x128xf32> to vector<1x128xf32>
    %c0_1 = arith.constant 0 : index
    %c0_2 = arith.constant 0 : index
    %10 = vector.load %arg0[%c0_1, %c0_2] : memref<8x512xf32, #tpu.memory_space<vmem>>, vector<8x512xf32>
    %cst = arith.constant 9.99999993E-9 : f32
    %11 = vector.broadcast %cst : f32 to vector<8x512xf32>
    %12 = arith.addf %10, %11 : vector<8x512xf32>
    %13 = math.log %12 : vector<8x512xf32>
    %c0_3 = arith.constant 0 : index
    %c0_4 = arith.constant 0 : index
    %14 = vector.load %arg1[%c0_3, %c0_4] : memref<8x16xf32, #tpu.memory_space<vmem>>, vector<8x16xf32>
    %cst_5 = arith.constant dense<0.000000e+00> : vector<512x16xf32>
    %15 = tpu.matmul %13, %14, %cst_5 {dimension_numbers = #tpu.dot_dimension_numbers<[0], [0], [1], [1], [0, 1, 1, 1], [], []>} : vector<8x512xf32>, vector<8x16xf32>, vector<512x16xf32> -> vector<512x16xf32>
    %cst_6 = arith.constant dense<0.000000e+00> : vector<16xf32>
    %16 = vector.multi_reduction <add>, %15, %cst_6 [0] : vector<512x16xf32> to vector<16xf32>
    %17 = vector.shape_cast %16 : vector<16xf32> to vector<1x16xf32>
    %cst_7 = arith.constant 0.001953125 : f32
    %18 = vector.broadcast %cst_7 : f32 to vector<1x16xf32>
    %19 = arith.mulf %17, %18 : vector<1x16xf32>
    %20 = arith.mulf %15, %15 : vector<512x16xf32>
    %cst_8 = arith.constant dense<0.000000e+00> : vector<16xf32>
    %21 = vector.multi_reduction <add>, %20, %cst_8 [0] : vector<512x16xf32> to vector<16xf32>
    %22 = vector.shape_cast %21 : vector<16xf32> to vector<1x16xf32>
    %cst_9 = arith.constant 0.001953125 : f32
    %23 = vector.broadcast %cst_9 : f32 to vector<1x16xf32>
    %24 = arith.mulf %22, %23 : vector<1x16xf32>
    %25 = arith.mulf %19, %19 : vector<1x16xf32>
    %26 = arith.subf %24, %25 : vector<1x16xf32>
    %cst_10 = arith.constant 0.000000e+00 : f32
    %27 = vector.broadcast %cst_10 : f32 to vector<1x16xf32>
    %28 = arith.maximumf %26, %27 : vector<1x16xf32>
    %29 = vector.broadcast %19 : vector<1x16xf32> to vector<512x16xf32>
    %30 = arith.subf %15, %29 : vector<512x16xf32>
    %cst_11 = arith.constant 9.99999974E-6 : f32
    %31 = vector.broadcast %cst_11 : f32 to vector<1x16xf32>
    %32 = arith.addf %28, %31 : vector<1x16xf32>
    %33 = math.rsqrt %32 : vector<1x16xf32>
    %34 = vector.broadcast %33 : vector<1x16xf32> to vector<512x16xf32>
    %35 = arith.mulf %30, %34 : vector<512x16xf32>
    %36 = vector.broadcast %1 : vector<1x16xf32> to vector<512x16xf32>
    %37 = arith.mulf %35, %36 : vector<512x16xf32>
    %38 = vector.broadcast %2 : vector<1x16xf32> to vector<512x16xf32>
    %39 = arith.addf %37, %38 : vector<512x16xf32>
    %cst_12 = arith.constant 0.000000e+00 : f32
    %40 = vector.broadcast %cst_12 : f32 to vector<512x16xf32>
    %41 = arith.maximumf %39, %40 : vector<512x16xf32>
    %c0_13 = arith.constant 0 : index
    %c0_14 = arith.constant 0 : index
    %42 = vector.load %arg2[%c0_13, %c0_14] : memref<16x32xf32, #tpu.memory_space<vmem>>, vector<16x32xf32>
    %cst_15 = arith.constant dense<0.000000e+00> : vector<512x32xf32>
    %43 = tpu.matmul %41, %42, %cst_15 {dimension_numbers = #tpu.dot_dimension_numbers<[1], [0], [0], [1], [0, 0, 1, 1], [], []>} : vector<512x16xf32>, vector<16x32xf32>, vector<512x32xf32> -> vector<512x32xf32>
    %cst_16 = arith.constant dense<0.000000e+00> : vector<32xf32>
    %44 = vector.multi_reduction <add>, %43, %cst_16 [0] : vector<512x32xf32> to vector<32xf32>
    %45 = vector.shape_cast %44 : vector<32xf32> to vector<1x32xf32>
    %cst_17 = arith.constant 0.001953125 : f32
    %46 = vector.broadcast %cst_17 : f32 to vector<1x32xf32>
    %47 = arith.mulf %45, %46 : vector<1x32xf32>
    %48 = arith.mulf %43, %43 : vector<512x32xf32>
    %cst_18 = arith.constant dense<0.000000e+00> : vector<32xf32>
    %49 = vector.multi_reduction <add>, %48, %cst_18 [0] : vector<512x32xf32> to vector<32xf32>
    %50 = vector.shape_cast %49 : vector<32xf32> to vector<1x32xf32>
    %cst_19 = arith.constant 0.001953125 : f32
    %51 = vector.broadcast %cst_19 : f32 to vector<1x32xf32>
    %52 = arith.mulf %50, %51 : vector<1x32xf32>
    %53 = arith.mulf %47, %47 : vector<1x32xf32>
    %54 = arith.subf %52, %53 : vector<1x32xf32>
    %cst_20 = arith.constant 0.000000e+00 : f32
    %55 = vector.broadcast %cst_20 : f32 to vector<1x32xf32>
    %56 = arith.maximumf %54, %55 : vector<1x32xf32>
    %57 = vector.broadcast %47 : vector<1x32xf32> to vector<512x32xf32>
    %58 = arith.subf %43, %57 : vector<512x32xf32>
    %cst_21 = arith.constant 9.99999974E-6 : f32
    %59 = vector.broadcast %cst_21 : f32 to vector<1x32xf32>
    %60 = arith.addf %56, %59 : vector<1x32xf32>
    %61 = math.rsqrt %60 : vector<1x32xf32>
    %62 = vector.broadcast %61 : vector<1x32xf32> to vector<512x32xf32>
    %63 = arith.mulf %58, %62 : vector<512x32xf32>
    %64 = vector.broadcast %3 : vector<1x32xf32> to vector<512x32xf32>
    %65 = arith.mulf %63, %64 : vector<512x32xf32>
    %66 = vector.broadcast %4 : vector<1x32xf32> to vector<512x32xf32>
    %67 = arith.addf %65, %66 : vector<512x32xf32>
    %cst_22 = arith.constant 0.000000e+00 : f32
    %68 = vector.broadcast %cst_22 : f32 to vector<512x32xf32>
    %69 = arith.maximumf %67, %68 : vector<512x32xf32>
    %c0_23 = arith.constant 0 : index
    %c0_24 = arith.constant 0 : index
    %70 = vector.load %arg3[%c0_23, %c0_24] : memref<32x64xf32, #tpu.memory_space<vmem>>, vector<32x64xf32>
    %cst_25 = arith.constant dense<0.000000e+00> : vector<512x64xf32>
    %71 = tpu.matmul %69, %70, %cst_25 {dimension_numbers = #tpu.dot_dimension_numbers<[1], [0], [0], [1], [0, 0, 1, 1], [], []>} : vector<512x32xf32>, vector<32x64xf32>, vector<512x64xf32> -> vector<512x64xf32>
    %cst_26 = arith.constant dense<0.000000e+00> : vector<64xf32>
    %72 = vector.multi_reduction <add>, %71, %cst_26 [0] : vector<512x64xf32> to vector<64xf32>
    %73 = vector.shape_cast %72 : vector<64xf32> to vector<1x64xf32>
    %cst_27 = arith.constant 0.001953125 : f32
    %74 = vector.broadcast %cst_27 : f32 to vector<1x64xf32>
    %75 = arith.mulf %73, %74 : vector<1x64xf32>
    %76 = arith.mulf %71, %71 : vector<512x64xf32>
    %cst_28 = arith.constant dense<0.000000e+00> : vector<64xf32>
    %77 = vector.multi_reduction <add>, %76, %cst_28 [0] : vector<512x64xf32> to vector<64xf32>
    %78 = vector.shape_cast %77 : vector<64xf32> to vector<1x64xf32>
    %cst_29 = arith.constant 0.001953125 : f32
    %79 = vector.broadcast %cst_29 : f32 to vector<1x64xf32>
    %80 = arith.mulf %78, %79 : vector<1x64xf32>
    %81 = arith.mulf %75, %75 : vector<1x64xf32>
    %82 = arith.subf %80, %81 : vector<1x64xf32>
    %cst_30 = arith.constant 0.000000e+00 : f32
    %83 = vector.broadcast %cst_30 : f32 to vector<1x64xf32>
    %84 = arith.maximumf %82, %83 : vector<1x64xf32>
    %85 = vector.broadcast %75 : vector<1x64xf32> to vector<512x64xf32>
    %86 = arith.subf %71, %85 : vector<512x64xf32>
    %cst_31 = arith.constant 9.99999974E-6 : f32
    %87 = vector.broadcast %cst_31 : f32 to vector<1x64xf32>
    %88 = arith.addf %84, %87 : vector<1x64xf32>
    %89 = math.rsqrt %88 : vector<1x64xf32>
    %90 = vector.broadcast %89 : vector<1x64xf32> to vector<512x64xf32>
    %91 = arith.mulf %86, %90 : vector<512x64xf32>
    %92 = vector.broadcast %5 : vector<1x64xf32> to vector<512x64xf32>
    %93 = arith.mulf %91, %92 : vector<512x64xf32>
    %94 = vector.broadcast %6 : vector<1x64xf32> to vector<512x64xf32>
    %95 = arith.addf %93, %94 : vector<512x64xf32>
    %cst_32 = arith.constant 0.000000e+00 : f32
    %96 = vector.broadcast %cst_32 : f32 to vector<512x64xf32>
    %97 = arith.maximumf %95, %96 : vector<512x64xf32>
    %cst_33 = arith.constant dense<0.000000e+00> : vector<512xf32>
    %98 = vector.multi_reduction <add>, %97, %cst_33 [1] : vector<512x64xf32> to vector<512xf32>
    %99 = vector.shape_cast %98 : vector<512xf32> to vector<512x1xf32>
    %cst_34 = arith.constant 6.400000e+01 : f32
    %100 = vector.broadcast %cst_34 : f32 to vector<512x1xf32>
    %101 = arith.divf %99, %100 : vector<512x1xf32>
    %102 = arith.mulf %97, %97 : vector<512x64xf32>
    %cst_35 = arith.constant dense<0.000000e+00> : vector<512xf32>
    %103 = vector.multi_reduction <add>, %102, %cst_35 [1] : vector<512x64xf32> to vector<512xf32>
    %104 = vector.shape_cast %103 : vector<512xf32> to vector<512x1xf32>
    %cst_36 = arith.constant 6.400000e+01 : f32
    %105 = vector.broadcast %cst_36 : f32 to vector<512x1xf32>
    %106 = arith.divf %104, %105 : vector<512x1xf32>
    %107 = arith.mulf %101, %101 : vector<512x1xf32>
    %108 = arith.subf %106, %107 : vector<512x1xf32>
    %cst_37 = arith.constant 0.000000e+00 : f32
    %109 = vector.broadcast %cst_37 : f32 to vector<512x1xf32>
    %110 = arith.maximumf %108, %109 : vector<512x1xf32>
    %111 = vector.broadcast %101 : vector<512x1xf32> to vector<512x64xf32>
    %112 = arith.subf %97, %111 : vector<512x64xf32>
    %cst_38 = arith.constant 9.99999974E-6 : f32
    %113 = vector.broadcast %cst_38 : f32 to vector<512x1xf32>
    %114 = arith.addf %110, %113 : vector<512x1xf32>
    %115 = math.rsqrt %114 : vector<512x1xf32>
    %116 = vector.broadcast %115 : vector<512x1xf32> to vector<512x64xf32>
    %117 = arith.mulf %112, %116 : vector<512x64xf32>
    %c0_39 = arith.constant 0 : index
    %c0_40 = arith.constant 0 : index
    %118 = vector.load %arg4[%c0_39, %c0_40] : memref<64x64xf32, #tpu.memory_space<vmem>>, vector<64x64xf32>
    %cst_41 = arith.constant dense<0.000000e+00> : vector<512x64xf32>
    %119 = tpu.matmul %117, %118, %cst_41 {dimension_numbers = #tpu.dot_dimension_numbers<[1], [0], [0], [1], [0, 0, 1, 1], [], []>} : vector<512x64xf32>, vector<64x64xf32>, vector<512x64xf32> -> vector<512x64xf32>
    %120 = vector.shape_cast %119 : vector<512x64xf32> to vector<8x64x64xf32>
    %cst_42 = arith.constant dense<0xFF800000> : vector<8x64xf32>
    %121 = vector.multi_reduction <maximumf>, %120, %cst_42 [1] : vector<8x64x64xf32> to vector<8x64xf32>
    %122 = vector.shape_cast %121 : vector<8x64xf32> to vector<8x1x64xf32>
    %123 = vector.broadcast %122 : vector<8x1x64xf32> to vector<8x64x64xf32>
    %124 = arith.subf %120, %123 : vector<8x64x64xf32>
    %125 = math.exp %124 : vector<8x64x64xf32>
    %cst_43 = arith.constant dense<0.000000e+00> : vector<8x64xf32>
    %126 = vector.multi_reduction <add>, %125, %cst_43 [1] : vector<8x64x64xf32> to vector<8x64xf32>
    %127 = vector.shape_cast %126 : vector<8x64xf32> to vector<8x1x64xf32>
    %128 = tpu.reciprocal %127 {approx = true} : vector<8x1x64xf32> -> vector<8x1x64xf32>
    %129 = vector.broadcast %128 : vector<8x1x64xf32> to vector<8x64x64xf32>
    %130 = arith.mulf %125, %129 : vector<8x64x64xf32>
    %cst_44 = arith.constant dense<0.000000e+00> : vector<8x64xf32>
    %131 = vector.multi_reduction <add>, %130, %cst_44 [2] : vector<8x64x64xf32> to vector<8x64xf32>
    %132 = vector.shape_cast %131 : vector<8x64xf32> to vector<8x64x1xf32>
    %cst_45 = arith.constant 6.400000e+01 : f32
    %133 = vector.broadcast %cst_45 : f32 to vector<8x64x1xf32>
    %134 = arith.divf %132, %133 : vector<8x64x1xf32>
    %135 = vector.shape_cast %117 : vector<512x64xf32> to vector<8x64x64xf32>
    %136 = vector.broadcast %134 : vector<8x64x1xf32> to vector<8x64x64xf32>
    %137 = arith.mulf %135, %136 : vector<8x64x64xf32>
    %cst_46 = arith.constant dense<0.000000e+00> : vector<8x64xf32>
    %138 = vector.multi_reduction <add>, %137, %cst_46 [1] : vector<8x64x64xf32> to vector<8x64xf32>
    %c0_47 = arith.constant 0 : index
    %c0_48 = arith.constant 0 : index
    %139 = vector.load %arg5[%c0_47, %c0_48] : memref<64x128xf32, #tpu.memory_space<vmem>>, vector<64x128xf32>
    %cst_49 = arith.constant dense<0.000000e+00> : vector<8x128xf32>
    %140 = tpu.matmul %138, %139, %cst_49 {dimension_numbers = #tpu.dot_dimension_numbers<[1], [0], [0], [1], [0, 0, 1, 1], [], []>} : vector<8x64xf32>, vector<64x128xf32>, vector<8x128xf32> -> vector<8x128xf32>
    %cst_50 = arith.constant dense<0.000000e+00> : vector<128xf32>
    %141 = vector.multi_reduction <add>, %140, %cst_50 [0] : vector<8x128xf32> to vector<128xf32>
    %142 = vector.shape_cast %141 : vector<128xf32> to vector<1x128xf32>
    %cst_51 = arith.constant 1.250000e-01 : f32
    %143 = vector.broadcast %cst_51 : f32 to vector<1x128xf32>
    %144 = arith.mulf %142, %143 : vector<1x128xf32>
    %145 = arith.mulf %140, %140 : vector<8x128xf32>
    %cst_52 = arith.constant dense<0.000000e+00> : vector<128xf32>
    %146 = vector.multi_reduction <add>, %145, %cst_52 [0] : vector<8x128xf32> to vector<128xf32>
    %147 = vector.shape_cast %146 : vector<128xf32> to vector<1x128xf32>
    %cst_53 = arith.constant 1.250000e-01 : f32
    %148 = vector.broadcast %cst_53 : f32 to vector<1x128xf32>
    %149 = arith.mulf %147, %148 : vector<1x128xf32>
    %150 = arith.mulf %144, %144 : vector<1x128xf32>
    %151 = arith.subf %149, %150 : vector<1x128xf32>
    %cst_54 = arith.constant 0.000000e+00 : f32
    %152 = vector.broadcast %cst_54 : f32 to vector<1x128xf32>
    %153 = arith.maximumf %151, %152 : vector<1x128xf32>
    %154 = vector.broadcast %144 : vector<1x128xf32> to vector<8x128xf32>
    %155 = arith.subf %140, %154 : vector<8x128xf32>
    %cst_55 = arith.constant 9.99999974E-6 : f32
    %156 = vector.broadcast %cst_55 : f32 to vector<1x128xf32>
    %157 = arith.addf %153, %156 : vector<1x128xf32>
    %158 = math.rsqrt %157 : vector<1x128xf32>
    %159 = vector.broadcast %158 : vector<1x128xf32> to vector<8x128xf32>
    %160 = arith.mulf %155, %159 : vector<8x128xf32>
    %161 = vector.broadcast %7 : vector<1x128xf32> to vector<8x128xf32>
    %162 = arith.mulf %160, %161 : vector<8x128xf32>
    %163 = vector.broadcast %8 : vector<1x128xf32> to vector<8x128xf32>
    %164 = arith.addf %162, %163 : vector<8x128xf32>
    %cst_56 = arith.constant 0.000000e+00 : f32
    %165 = vector.broadcast %cst_56 : f32 to vector<8x128xf32>
    %166 = arith.maximumf %164, %165 : vector<8x128xf32>
    %c0_57 = arith.constant 0 : index
    %c0_58 = arith.constant 0 : index
    %167 = vector.load %arg6[%c0_57, %c0_58] : memref<128x128xf32, #tpu.memory_space<vmem>>, vector<128x128xf32>
    %cst_59 = arith.constant dense<0.000000e+00> : vector<8x128xf32>
    %168 = tpu.matmul %166, %167, %cst_59 {dimension_numbers = #tpu.dot_dimension_numbers<[1], [0], [0], [1], [0, 0, 1, 1], [], []>} : vector<8x128xf32>, vector<128x128xf32>, vector<8x128xf32> -> vector<8x128xf32>
    %169 = vector.broadcast %9 : vector<1x128xf32> to vector<8x128xf32>
    %170 = arith.addf %168, %169 : vector<8x128xf32>
    %c0_60 = arith.constant 0 : index
    %c0_61 = arith.constant 0 : index
    %171 = vector.load %arg8[%c0_60, %c0_61] : memref<8x128xf32, #tpu.memory_space<vmem>>, vector<8x128xf32>
    tpu.vector_store %arg8[%c0_60, %c0_61], %170 {strides = array<i32>} : memref<8x128xf32, #tpu.memory_space<vmem>>, vector<8x128xf32>,
    return
  }
}

</mosaic_0001>

<llo_original>
// kernel: pointnet_compressor.1
$region0: #{pointnet_compressor.1}
  #allocation0 [shape = 'u32[]', space=smem, size = 0x4, offset = 0x4, fixed_abs, tag = 'smem constant byte address 0x4 - core index']
  #allocation1 [shape = 'u32[72,128]{1,0:T(1,128)}', space=vmem, size = 0x9000, scoped, tag = 'internal scratch']
  %s0 = inlined_call_operand.vmem [shape: f32[8,512], index: 0, kind: input, shape index: {}]
  %s1 = inlined_call_operand.vmem [shape: f32[8,16], index: 1, kind: input, shape index: {}]
  %s2 = inlined_call_operand.vmem [shape: f32[16,32], index: 2, kind: input, shape index: {}]
  %s3 = inlined_call_operand.hbm [shape: f32[32,64], index: 3, kind: input, shape index: {}]
  %s4 = inlined_call_operand.vmem [shape: f32[64,64], index: 4, kind: input, shape index: {}]
  %s5 = inlined_call_operand.hbm [shape: f32[64,128], index: 5, kind: input, shape index: {}]
  %s6 = inlined_call_operand.hbm [shape: f32[128,128], index: 6, kind: input, shape index: {}]
  %s7 = inlined_call_operand.hbm [shape: f32[16,128], index: 7, kind: input, shape index: {}]
  %s8 = inlined_call_operand.vmem [shape: f32[8,128], index: 8, kind: output, shape index: {}]
  %s9 = sld [smem:[#allocation0]]
  $region58: #{pointnet_compressor.1} parent=0
    _
  %s11 = ssub.s32 1, %s9
  %s12 = scalar_select 0, %s11, %s9
  $region1: #{pointnet_compressor.1} parent=0
    #allocation2 [shape = 'u8[16384]{0}', space=vmem, size = 0x4000, scoped, tag = 'input window, operand 3, single buffered']
    #allocation3 [shape = 's32[1]{0}', space=sflag, size = 0x4, scoped, tag = 'scoped memory for pointnet_compressor.1']
    #allocation4 [shape = 'u8[32768]{0}', space=vmem, size = 0x8000, scoped, tag = 'input window, operand 5, single buffered']
    #allocation5 [shape = 's32[1]{0}', space=sflag, size = 0x4, scoped, tag = 'scoped memory for pointnet_compressor.1']
    #allocation6 [shape = 'u8[65536]{0}', space=vmem, size = 0x10000, scoped, tag = 'input window, operand 6, single buffered']
    #allocation7 [shape = 'u8[8192]{0}', space=vmem, size = 0x2000, scoped, tag = 'input window, operand 7, single buffered']
    #allocation8 [shape = 's32[1]{0}', space=sflag, size = 0x4, scoped, tag = 'scoped memory for pointnet_compressor.1']
    %13 = vsyncpa [#allocation3], 0
    %14 = vsyncpa [#allocation5], 0
    %15 = vsyncpa [#allocation8], 0
    // Predicated region
    $region2: #{pointnet_compressor.1} parent=1 // pred_check
      _
    $region3: #{pointnet_compressor.1} parent=1 // pred_check_branch
      %17 = sbr.rel (0) target = $region5
    $region4: #{pointnet_compressor.1} parent=1 // pred_region
      _
    $region5: #{pointnet_compressor.1} parent=1 // pred_fallthru
      _
    // Predicated region
    $region6: #{pointnet_compressor.1} parent=1 // pred_check
      _
    $region7: #{pointnet_compressor.1} parent=1 // pred_check_branch
      %19 = sbr.rel (0) target = $region9
    $region8: #{pointnet_compressor.1} parent=1 // pred_region
      _
    $region9: #{pointnet_compressor.1} parent=1 // pred_fallthru
      _
    // Predicated region
    $region10: #{pointnet_compressor.1} parent=1 // pred_check
      _
    $region11: #{pointnet_compressor.1} parent=1 // pred_check_branch
      %21 = sbr.rel (0) target = $region13
    $region12: #{pointnet_compressor.1} parent=1 // pred_region
      _
    $region13: #{pointnet_compressor.1} parent=1 // pred_fallthru
      _
    // Predicated region
    $region14: #{pointnet_compressor.1} parent=1 // pred_check
      _
    $region15: #{pointnet_compressor.1} parent=1 // pred_check_branch
      %23 = sbr.rel (0) target = $region17
    $region16: #{pointnet_compressor.1} parent=1 // pred_region
      %25 = vsyncadd [#allocation3], 0
      %s26 = sshll.u32 %s3, 4
      %s27 = int_to_ptr.hbm [resolvable:$true] %s26
      %s28 = sshll.u32 [#allocation2], 4
      %s29 = int_to_ptr.vmem [resolvable:$true] %s28
      %34 = dma.hbm_to_vmem [thread:$0]  %s27, 512, %s29, [#allocation3], 128, 128, 8
    $region17: #{pointnet_compressor.1} parent=1 // pred_fallthru
      _
    // Predicated region
    $region18: #{pointnet_compressor.1} parent=1 // pred_check
      _
    $region19: #{pointnet_compressor.1} parent=1 // pred_check_branch
      %36 = sbr.rel (0) target = $region21
    $region20: #{pointnet_compressor.1} parent=1 // pred_region
      _
    $region21: #{pointnet_compressor.1} parent=1 // pred_fallthru
      _
    // Predicated region
    $region22: #{pointnet_compressor.1} parent=1 // pred_check
      _
    $region23: #{pointnet_compressor.1} parent=1 // pred_check_branch
      %38 = sbr.rel (0) target = $region25
    $region24: #{pointnet_compressor.1} parent=1 // pred_region
      %40 = vsyncadd [#allocation5], 0
      %s41 = sshll.u32 %s5, 4
      %s42 = int_to_ptr.hbm [resolvable:$true] %s41
      %s43 = sshll.u32 [#allocation4], 4
      %s44 = int_to_ptr.vmem [resolvable:$true] %s43
      %49 = dma.hbm_to_vmem [thread:$0]  %s42, 1024, %s44, [#allocation5], 128, 128, 8
    $region25: #{pointnet_compressor.1} parent=1 // pred_fallthru
      _
    // Predicated region
    $region26: #{pointnet_compressor.1} parent=1 // pred_check
      _
    $region27: #{pointnet_compressor.1} parent=1 // pred_check_branch
      %51 = sbr.rel (0) target = $region29
    $region28: #{pointnet_compressor.1} parent=1 // pred_region
      %53 = vsyncadd [#allocation5], 0
      %s54 = sshll.u32 %s6, 4
      %s55 = int_to_ptr.hbm [resolvable:$true] %s54
      %s56 = sshll.u32 [#allocation6], 4
      %s57 = int_to_ptr.vmem [resolvable:$true] %s56
      %62 = dma.hbm_to_vmem [thread:$0]  %s55, 2048, %s57, [#allocation5], 128, 128, 8
    $region29: #{pointnet_compressor.1} parent=1 // pred_fallthru
      _
    // Predicated region
    $region30: #{pointnet_compressor.1} parent=1 // pred_check
      _
    $region31: #{pointnet_compressor.1} parent=1 // pred_check_branch
      %64 = sbr.rel (0) target = $region33
    $region32: #{pointnet_compressor.1} parent=1 // pred_region
      %66 = vsyncadd [#allocation8], 0
      %s67 = sshll.u32 %s7, 4
      %s68 = int_to_ptr.hbm [resolvable:$true] %s67
      %s69 = sshll.u32 [#allocation7], 4
      %s70 = int_to_ptr.vmem [resolvable:$true] %s69
      %75 = dma.hbm_to_vmem [thread:$0]  %s68, 256, %s70, [#allocation8], 128, 128, 8
    $region33: #{pointnet_compressor.1} parent=1 // pred_fallthru
      _
    // Predicated region
    $region34: #{pointnet_compressor.1} parent=1 // pred_check
      _
    $region35: #{pointnet_compressor.1} parent=1 // pred_check_branch
      %77 = sbr.rel (0) target = $region37
    $region36: #{pointnet_compressor.1} parent=1 // pred_region
      %79 = dma.done [#allocation3], 512
    $region37: #{pointnet_compressor.1} parent=1 // pred_fallthru
      _
    // Predicated region
    $region38: #{pointnet_compressor.1} parent=1 // pred_check
      _
    $region39: #{pointnet_compressor.1} parent=1 // pred_check_branch
      %81 = sbr.rel (0) target = $region41
    $region40: #{pointnet_compressor.1} parent=1 // pred_region
      %83 = dma.done [#allocation5], 1024
    $region41: #{pointnet_compressor.1} parent=1 // pred_fallthru
      _
    // Predicated region
    $region42: #{pointnet_compressor.1} parent=1 // pred_check
      _
    $region43: #{pointnet_compressor.1} parent=1 // pred_check_branch
      %85 = sbr.rel (0) target = $region45
    $region44: #{pointnet_compressor.1} parent=1 // pred_region
      %87 = dma.done [#allocation5], 2048
    $region45: #{pointnet_compressor.1} parent=1 // pred_fallthru
      _
    // Predicated region
    $region46: #{pointnet_compressor.1} parent=1 // pred_check
      _
    $region47: #{pointnet_compressor.1} parent=1 // pred_check_branch
      %89 = sbr.rel (0) target = $region49
    $region48: #{pointnet_compressor.1} parent=1 // pred_region
      %91 = dma.done [#allocation8], 256
    $region49: #{pointnet_compressor.1} parent=1 // pred_fallthru
      _
    %v92 = vld [vmem:[#allocation7] sm:$0xff]
    %v93 = vld [vmem:[#allocation7 + $0x8] sm:$0xff]
    %v94 = vld [vmem:[%s0] sm:$0xff]
    %v95 = vld [vmem:[%s0 + $0x8] sm:$0xff]
    %v96 = vld [vmem:[%s0 + $0x10] sm:$0xff]
    %v97 = vld [vmem:[%s0 + $0x18] sm:$0xff]
    %v98 = vadd.f32 %v94, 1e-08
    %v99 = vadd.f32 %v95, 1e-08
    %v100 = vadd.f32 %v96, 1e-08
    %v101 = vadd.f32 %v97, 1e-08
    %v102 = vlog2.pop %v98
    %v103 = vmul.f32 %v102, 0.6931472
    %v104 = vlog2.pop %v99
    %v105 = vmul.f32 %v104, 0.6931472
    %v106 = vlog2.pop %v100
    %v107 = vmul.f32 %v106, 0.6931472
    %v108 = vlog2.pop %v101
    %v109 = vmul.f32 %v108, 0.6931472
    %v110 = vld [vmem:[%s1] sm:$0xff]
    %111 = vxpose.xlu0.b32.start [1/16] %v103, 128
    %112 = vxpose.xlu0.b32.cont [2/16] 0.0, 128
    %113 = vxpose.xlu0.b32.cont [3/16] 0.0, 128
    %114 = vxpose.xlu0.b32.cont [4/16] 0.0, 128
    %115 = vxpose.xlu0.b32.cont [5/16] 0.0, 128
    %116 = vxpose.xlu0.b32.cont [6/16] 0.0, 128
    %117 = vxpose.xlu0.b32.cont [7/16] 0.0, 128
    %118 = vxpose.xlu0.b32.cont [8/16] 0.0, 128
    %119 = vxpose.xlu0.b32.cont [9/16] 0.0, 128
    %120 = vxpose.xlu0.b32.cont [10/16] 0.0, 128
    %121 = vxpose.xlu0.b32.cont [11/16] 0.0, 128
    %122 = vxpose.xlu0.b32.cont [12/16] 0.0, 128
    %123 = vxpose.xlu0.b32.cont [13/16] 0.0, 128
    %124 = vxpose.xlu0.b32.cont [14/16] 0.0, 128
    %125 = vxpose.xlu0.b32.cont [15/16] 0.0, 128
    %126 = vxpose.xlu0.b32.end [16/16] 0.0, 128
    %v127 = vpop.trf.xlu0
    %v128 = vpop.trf.xlu0
    %v129 = vpop.trf.xlu0
    %v130 = vpop.trf.xlu0
    %v131 = vpop.trf.xlu0
    %v132 = vpop.trf.xlu0
    %v133 = vpop.trf.xlu0
    %v134 = vpop.trf.xlu0
    %v135 = vpop.trf.xlu0
    %v136 = vpop.trf.xlu0
    %v137 = vpop.trf.xlu0
    %v138 = vpop.trf.xlu0
    %v139 = vpop.trf.xlu0
    %v140 = vpop.trf.xlu0
    %v141 = vpop.trf.xlu0
    %v142 = vpop.trf.xlu0
    %143 = vxpose.xlu0.b32.start [1/16] %v105, 128
    %144 = vxpose.xlu0.b32.cont [2/16] 0.0, 128
    %145 = vxpose.xlu0.b32.cont [3/16] 0.0, 128
    %146 = vxpose.xlu0.b32.cont [4/16] 0.0, 128
    %147 = vxpose.xlu0.b32.cont [5/16] 0.0, 128
    %148 = vxpose.xlu0.b32.cont [6/16] 0.0, 128
    %149 = vxpose.xlu0.b32.cont [7/16] 0.0, 128
    %150 = vxpose.xlu0.b32.cont [8/16] 0.0, 128
    %151 = vxpose.xlu0.b32.cont [9/16] 0.0, 128
    %152 = vxpose.xlu0.b32.cont [10/16] 0.0, 128
    %153 = vxpose.xlu0.b32.cont [11/16] 0.0, 128
    %154 = vxpose.xlu0.b32.cont [12/16] 0.0, 128
    %155 = vxpose.xlu0.b32.cont [13/16] 0.0, 128
    %156 = vxpose.xlu0.b32.cont [14/16] 0.0, 128
    %157 = vxpose.xlu0.b32.cont [15/16] 0.0, 128
    %158 = vxpose.xlu0.b32.end [16/16] 0.0, 128
    %v159 = vpop.trf.xlu0
    %v160 = vpop.trf.xlu0
    %v161 = vpop.trf.xlu0
    %v162 = vpop.trf.xlu0
    %v163 = vpop.trf.xlu0
    %v164 = vpop.trf.xlu0
    %v165 = vpop.trf.xlu0
    %v166 = vpop.trf.xlu0
    %v167 = vpop.trf.xlu0
    %v168 = vpop.trf.xlu0
    %v169 = vpop.trf.xlu0
    %v170 = vpop.trf.xlu0
    %v171 = vpop.trf.xlu0
    %v172 = vpop.trf.xlu0
    %v173 = vpop.trf.xlu0
    %v174 = vpop.trf.xlu0
    %175 = vxpose.xlu0.b32.start [1/16] %v107, 128
    %176 = vxpose.xlu0.b32.cont [2/16] 0.0, 128
    %177 = vxpose.xlu0.b32.cont [3/16] 0.0, 128
    %178 = vxpose.xlu0.b32.cont [4/16] 0.0, 128
    %179 = vxpose.xlu0.b32.cont [5/16] 0.0, 128
    %180 = vxpose.xlu0.b32.cont [6/16] 0.0, 128
    %181 = vxpose.xlu0.b32.cont [7/16] 0.0, 128
    %182 = vxpose.xlu0.b32.cont [8/16] 0.0, 128
    %183 = vxpose.xlu0.b32.cont [9/16] 0.0, 128
    %184 = vxpose.xlu0.b32.cont [10/16] 0.0, 128
    %185 = vxpose.xlu0.b32.cont [11/16] 0.0, 128
    %186 = vxpose.xlu0.b32.cont [12/16] 0.0, 128
    %187 = vxpose.xlu0.b32.cont [13/16] 0.0, 128
    %188 = vxpose.xlu0.b32.cont [14/16] 0.0, 128
    %189 = vxpose.xlu0.b32.cont [15/16] 0.0, 128
    %190 = vxpose.xlu0.b32.end [16/16] 0.0, 128
    %v191 = vpop.trf.xlu0
    %v192 = vpop.trf.xlu0
    %v193 = vpop.trf.xlu0
    %v194 = vpop.trf.xlu0
    %v195 = vpop.trf.xlu0
    %v196 = vpop.trf.xlu0
    %v197 = vpop.trf.xlu0
    %v198 = vpop.trf.xlu0
    %v199 = vpop.trf.xlu0
    %v200 = vpop.trf.xlu0
    %v201 = vpop.trf.xlu0
    %v202 = vpop.trf.xlu0
    %v203 = vpop.trf.xlu0
    %v204 = vpop.trf.xlu0
    %v205 = vpop.trf.xlu0
    %v206 = vpop.trf.xlu0
    %207 = vxpose.xlu0.b32.start [1/16] %v109, 128
    %208 = vxpose.xlu0.b32.cont [2/16] 0.0, 128
    %209 = vxpose.xlu0.b32.cont [3/16] 0.0, 128
    %210 = vxpose.xlu0.b32.cont [4/16] 0.0, 128
    %211 = vxpose.xlu0.b32.cont [5/16] 0.0, 128
    %212 = vxpose.xlu0.b32.cont [6/16] 0.0, 128
    %213 = vxpose.xlu0.b32.cont [7/16] 0.0, 128
    %214 = vxpose.xlu0.b32.cont [8/16] 0.0, 128
    %215 = vxpose.xlu0.b32.cont [9/16] 0.0, 128
    %216 = vxpose.xlu0.b32.cont [10/16] 0.0, 128
    %217 = vxpose.xlu0.b32.cont [11/16] 0.0, 128
    %218 = vxpose.xlu0.b32.cont [12/16] 0.0, 128
    %219 = vxpose.xlu0.b32.cont [13/16] 0.0, 128
    %220 = vxpose.xlu0.b32.cont [14/16] 0.0, 128
    %221 = vxpose.xlu0.b32.cont [15/16] 0.0, 128
    %222 = vxpose.xlu0.b32.end [16/16] 0.0, 128
    %v223 = vpop.trf.xlu0
    %v224 = vpop.trf.xlu0
    %v225 = vpop.trf.xlu0
    %v226 = vpop.trf.xlu0
    %v227 = vpop.trf.xlu0
    %v228 = vpop.trf.xlu0
    %v229 = vpop.trf.xlu0
    %v230 = vpop.trf.xlu0
    %v231 = vpop.trf.xlu0
    %v232 = vpop.trf.xlu0
    %v233 = vpop.trf.xlu0
    %v234 = vpop.trf.xlu0
    %v235 = vpop.trf.xlu0
    %v236 = vpop.trf.xlu0
    %v237 = vpop.trf.xlu0
    %v238 = vpop.trf.xlu0
    %vm239 = vcmask 64512
    %v241 = vsel %vm239, %v127, 0
    %v244 = vsel %vm239, %v128, 0
    %v247 = vsel %vm239, %v129, 0
    %v250 = vsel %vm239, %v130, 0
    %v253 = vsel %vm239, %v131, 0
    %v256 = vsel %vm239, %v132, 0
    %v259 = vsel %vm239, %v133, 0
    %v262 = vsel %vm239, %v134, 0
    %v265 = vsel %vm239, %v135, 0
    %v268 = vsel %vm239, %v136, 0
    %v271 = vsel %vm239, %v137, 0
    %v274 = vsel %vm239, %v138, 0
    %v277 = vsel %vm239, %v139, 0
    %v280 = vsel %vm239, %v140, 0
    %v283 = vsel %vm239, %v141, 0
    %v286 = vsel %vm239, %v142, 0
    %v289 = vsel %vm239, %v159, 0
    %v292 = vsel %vm239, %v160, 0
    %v295 = vsel %vm239, %v161, 0
    %v298 = vsel %vm239, %v162, 0
    %v301 = vsel %vm239, %v163, 0
    %v304 = vsel %vm239, %v164, 0
    %v307 = vsel %vm239, %v165, 0
    %v310 = vsel %vm239, %v166, 0
    %v313 = vsel %vm239, %v167, 0
    %v316 = vsel %vm239, %v168, 0
    %v319 = vsel %vm239, %v169, 0
    %v322 = vsel %vm239, %v170, 0
    %v325 = vsel %vm239, %v171, 0
    %v328 = vsel %vm239, %v172, 0
    %v331 = vsel %vm239, %v173, 0
    %v334 = vsel %vm239, %v174, 0
    %v337 = vsel %vm239, %v191, 0
    %v340 = vsel %vm239, %v192, 0
    %v343 = vsel %vm239, %v193, 0
    %v346 = vsel %vm239, %v194, 0
    %v349 = vsel %vm239, %v195, 0
    %v352 = vsel %vm239, %v196, 0
    %v355 = vsel %vm239, %v197, 0
    %v358 = vsel %vm239, %v198, 0
    %v361 = vsel %vm239, %v199, 0
    %v364 = vsel %vm239, %v200, 0
    %v367 = vsel %vm239, %v201, 0
    %v370 = vsel %vm239, %v202, 0
    %v373 = vsel %vm239, %v203, 0
    %v376 = vsel %vm239, %v204, 0
    %v379 = vsel %vm239, %v205, 0
    %v382 = vsel %vm239, %v206, 0
    %v385 = vsel %vm239, %v223, 0
    %v388 = vsel %vm239, %v224, 0
    %v391 = vsel %vm239, %v225, 0
    %v394 = vsel %vm239, %v226, 0
    %v397 = vsel %vm239, %v227, 0
    %v400 = vsel %vm239, %v228, 0
    %v403 = vsel %vm239, %v229, 0
    %v406 = vsel %vm239, %v230, 0
    %v409 = vsel %vm239, %v231, 0
    %v412 = vsel %vm239, %v232, 0
    %v415 = vsel %vm239, %v233, 0
    %v418 = vsel %vm239, %v234, 0
    %v421 = vsel %vm239, %v235, 0
    %v424 = vsel %vm239, %v236, 0
    %v427 = vsel %vm239, %v237, 0
    %v430 = vsel %vm239, %v238, 0
    %432 = vmatpush.msra.mxu0 0.0
    %433 = vmatpush.msra.mxu0 0.0
    %434 = vmatpush.msra.mxu0 0.0
    %435 = vmatpush.msra.mxu0 0.0
    %436 = vmatpush.msra.mxu0 0.0
    %437 = vmatpush.msra.mxu0 0.0
    %438 = vmatpush.msra.mxu0 0.0
    %439 = vmatpush.msra.mxu0 0.0
    %440 = vmatpush.msra.mxu0 0.0
    %441 = vmatpush.msra.mxu0 0.0
    %442 = vmatpush.msra.mxu0 0.0
    %443 = vmatpush.msra.mxu0 0.0
    %444 = vmatpush.msra.mxu0 0.0
    %445 = vmatpush.msra.mxu0 0.0
    %446 = vmatpush.msra.mxu0 0.0
    %447 = vmatpush.msra.mxu0 %v110
    %448 = vmatmul.f32.gmra.mxu0 %v241
    %v449 = vpop.f32.mrf.mxu0
    %v450 = vadd.f32 0.0, %v449
    %451 = vmatmul.f32.gmra.mxu0 %v244
    %v452 = vpop.f32.mrf.mxu0
    %v453 = vadd.f32 0.0, %v452
    %454 = vmatmul.f32.gmra.mxu0 %v247
    %v455 = vpop.f32.mrf.mxu0
    %v456 = vadd.f32 0.0, %v455
    %457 = vmatmul.f32.gmra.mxu0 %v250
    %v458 = vpop.f32.mrf.mxu0
    %v459 = vadd.f32 0.0, %v458
    %460 = vmatmul.f32.gmra.mxu0 %v253
    %v461 = vpop.f32.mrf.mxu0
    %v462 = vadd.f32 0.0, %v461
    %463 = vmatmul.f32.gmra.mxu0 %v256
    %v464 = vpop.f32.mrf.mxu0
    %v465 = vadd.f32 0.0, %v464
    %466 = vmatmul.f32.gmra.mxu0 %v259
    %v467 = vpop.f32.mrf.mxu0
    %v468 = vadd.f32 0.0, %v467
    %469 = vmatmul.f32.gmra.mxu0 %v262
    %v470 = vpop.f32.mrf.mxu0
    %v471 = vadd.f32 0.0, %v470
    %472 = vmatmul.f32.gmra.mxu0 %v265
    %v473 = vpop.f32.mrf.mxu0
    %v474 = vadd.f32 0.0, %v473
    %475 = vmatmul.f32.gmra.mxu0 %v268
    %v476 = vpop.f32.mrf.mxu0
    %v477 = vadd.f32 0.0, %v476
    %478 = vmatmul.f32.gmra.mxu0 %v271
    %v479 = vpop.f32.mrf.mxu0
    %v480 = vadd.f32 0.0, %v479
    %481 = vmatmul.f32.gmra.mxu0 %v274
    %v482 = vpop.f32.mrf.mxu0
    %v483 = vadd.f32 0.0, %v482
    %484 = vmatmul.f32.gmra.mxu0 %v277
    %v485 = vpop.f32.mrf.mxu0
    %v486 = vadd.f32 0.0, %v485
    %487 = vmatmul.f32.gmra.mxu0 %v280
    %v488 = vpop.f32.mrf.mxu0
    %v489 = vadd.f32 0.0, %v488
    %490 = vmatmul.f32.gmra.mxu0 %v283
    %v491 = vpop.f32.mrf.mxu0
    %v492 = vadd.f32 0.0, %v491
    %493 = vmatmul.f32.gmra.mxu0 %v286
    %v494 = vpop.f32.mrf.mxu0
    %v495 = vadd.f32 0.0, %v494
    %496 = vmatmul.f32.gmra.mxu0 %v289
    %v497 = vpop.f32.mrf.mxu0
    %v498 = vadd.f32 0.0, %v497
    %499 = vmatmul.f32.gmra.mxu0 %v292
    %v500 = vpop.f32.mrf.mxu0
    %v501 = vadd.f32 0.0, %v500
    %502 = vmatmul.f32.gmra.mxu0 %v295
    %v503 = vpop.f32.mrf.mxu0
    %v504 = vadd.f32 0.0, %v503
    %505 = vmatmul.f32.gmra.mxu0 %v298
    %v506 = vpop.f32.mrf.mxu0
    %v507 = vadd.f32 0.0, %v506
    %508 = vmatmul.f32.gmra.mxu0 %v301
    %v509 = vpop.f32.mrf.mxu0
    %v510 = vadd.f32 0.0, %v509
    %511 = vmatmul.f32.gmra.mxu0 %v304
    %v512 = vpop.f32.mrf.mxu0
    %v513 = vadd.f32 0.0, %v512
    %514 = vmatmul.f32.gmra.mxu0 %v307
    %v515 = vpop.f32.mrf.mxu0
    %v516 = vadd.f32 0.0, %v515
    %517 = vmatmul.f32.gmra.mxu0 %v310
    %v518 = vpop.f32.mrf.mxu0
    %v519 = vadd.f32 0.0, %v518
    %520 = vmatmul.f32.gmra.mxu0 %v313
    %v521 = vpop.f32.mrf.mxu0
    %v522 = vadd.f32 0.0, %v521
    %523 = vmatmul.f32.gmra.mxu0 %v316
    %v524 = vpop.f32.mrf.mxu0
    %v525 = vadd.f32 0.0, %v524
    %526 = vmatmul.f32.gmra.mxu0 %v319
    %v527 = vpop.f32.mrf.mxu0
    %v528 = vadd.f32 0.0, %v527
    %529 = vmatmul.f32.gmra.mxu0 %v322
    %v530 = vpop.f32.mrf.mxu0
    %v531 = vadd.f32 0.0, %v530
    %532 = vmatmul.f32.gmra.mxu0 %v325
    %v533 = vpop.f32.mrf.mxu0
    %v534 = vadd.f32 0.0, %v533
    %535 = vmatmul.f32.gmra.mxu0 %v328
    %v536 = vpop.f32.mrf.mxu0
    %v537 = vadd.f32 0.0, %v536
    %538 = vmatmul.f32.gmra.mxu0 %v331
    %v539 = vpop.f32.mrf.mxu0
    %v540 = vadd.f32 0.0, %v539
    %541 = vmatmul.f32.gmra.mxu0 %v334
    %v542 = vpop.f32.mrf.mxu0
    %v543 = vadd.f32 0.0, %v542
    %544 = vmatmul.f32.gmra.mxu0 %v337
    %v545 = vpop.f32.mrf.mxu0
    %v546 = vadd.f32 0.0, %v545
    %547 = vmatmul.f32.gmra.mxu0 %v340
    %v548 = vpop.f32.mrf.mxu0
    %v549 = vadd.f32 0.0, %v548
    %550 = vmatmul.f32.gmra.mxu0 %v343
    %v551 = vpop.f32.mrf.mxu0
    %v552 = vadd.f32 0.0, %v551
    %553 = vmatmul.f32.gmra.mxu0 %v346
    %v554 = vpop.f32.mrf.mxu0
    %v555 = vadd.f32 0.0, %v554
    %556 = vmatmul.f32.gmra.mxu0 %v349
    %v557 = vpop.f32.mrf.mxu0
    %v558 = vadd.f32 0.0, %v557
    %559 = vmatmul.f32.gmra.mxu0 %v352
    %v560 = vpop.f32.mrf.mxu0
    %v561 = vadd.f32 0.0, %v560
    %562 = vmatmul.f32.gmra.mxu0 %v355
    %v563 = vpop.f32.mrf.mxu0
    %v564 = vadd.f32 0.0, %v563
    %565 = vmatmul.f32.gmra.mxu0 %v358
    %v566 = vpop.f32.mrf.mxu0
    %v567 = vadd.f32 0.0, %v566
    %568 = vmatmul.f32.gmra.mxu0 %v361
    %v569 = vpop.f32.mrf.mxu0
    %v570 = vadd.f32 0.0, %v569
    %571 = vmatmul.f32.gmra.mxu0 %v364
    %v572 = vpop.f32.mrf.mxu0
    %v573 = vadd.f32 0.0, %v572
    %574 = vmatmul.f32.gmra.mxu0 %v367
    %v575 = vpop.f32.mrf.mxu0
    %v576 = vadd.f32 0.0, %v575
    %577 = vmatmul.f32.gmra.mxu0 %v370
    %v578 = vpop.f32.mrf.mxu0
    %v579 = vadd.f32 0.0, %v578
    %580 = vmatmul.f32.gmra.mxu0 %v373
    %v581 = vpop.f32.mrf.mxu0
    %v582 = vadd.f32 0.0, %v581
    %583 = vmatmul.f32.gmra.mxu0 %v376
    %v584 = vpop.f32.mrf.mxu0
    %v585 = vadd.f32 0.0, %v584
    %586 = vmatmul.f32.gmra.mxu0 %v379
    %v587 = vpop.f32.mrf.mxu0
    %v588 = vadd.f32 0.0, %v587
    %589 = vmatmul.f32.gmra.mxu0 %v382
    %v590 = vpop.f32.mrf.mxu0
    %v591 = vadd.f32 0.0, %v590
    %592 = vmatmul.f32.gmra.mxu0 %v385
    %v593 = vpop.f32.mrf.mxu0
    %v594 = vadd.f32 0.0, %v593
    %595 = vmatmul.f32.gmra.mxu0 %v388
    %v596 = vpop.f32.mrf.mxu0
    %v597 = vadd.f32 0.0, %v596
    %598 = vmatmul.f32.gmra.mxu0 %v391
    %v599 = vpop.f32.mrf.mxu0
    %v600 = vadd.f32 0.0, %v599
    %601 = vmatmul.f32.gmra.mxu0 %v394
    %v602 = vpop.f32.mrf.mxu0
    %v603 = vadd.f32 0.0, %v602
    %604 = vmatmul.f32.gmra.mxu0 %v397
    %v605 = vpop.f32.mrf.mxu0
    %v606 = vadd.f32 0.0, %v605
    %607 = vmatmul.f32.gmra.mxu0 %v400
    %v608 = vpop.f32.mrf.mxu0
    %v609 = vadd.f32 0.0, %v608
    %610 = vmatmul.f32.gmra.mxu0 %v403
    %v611 = vpop.f32.mrf.mxu0
    %v612 = vadd.f32 0.0, %v611
    %613 = vmatmul.f32.gmra.mxu0 %v406
    %v614 = vpop.f32.mrf.mxu0
    %v615 = vadd.f32 0.0, %v614
    %616 = vmatmul.f32.gmra.mxu0 %v409
    %v617 = vpop.f32.mrf.mxu0
    %v618 = vadd.f32 0.0, %v617
    %619 = vmatmul.f32.gmra.mxu0 %v412
    %v620 = vpop.f32.mrf.mxu0
    %v621 = vadd.f32 0.0, %v620
    %622 = vmatmul.f32.gmra.mxu0 %v415
    %v623 = vpop.f32.mrf.mxu0
    %v624 = vadd.f32 0.0, %v623
    %625 = vmatmul.f32.gmra.mxu0 %v418
    %v626 = vpop.f32.mrf.mxu0
    %v627 = vadd.f32 0.0, %v626
    %628 = vmatmul.f32.gmra.mxu0 %v421
    %v629 = vpop.f32.mrf.mxu0
    %v630 = vadd.f32 0.0, %v629
    %631 = vmatmul.f32.gmra.mxu0 %v424
    %v632 = vpop.f32.mrf.mxu0
    %v633 = vadd.f32 0.0, %v632
    %634 = vmatmul.f32.gmra.mxu0 %v427
    %v635 = vpop.f32.mrf.mxu0
    %v636 = vadd.f32 0.0, %v635
    %637 = vmatmul.f32.gmra.mxu0 %v430
    %v638 = vpop.f32.mrf.mxu0
    %v639 = vadd.f32 0.0, %v638
    %640 = vdwg.mxu0
    %vm641 = vcmask 130048
    %v642 = vsel %vm641, %v450, 0.0
    %v643 = vsel %vm641, %v453, 0.0
    %v644 = vadd.f32 %v642, %v643
    %v645 = vsel %vm641, %v456, 0.0
    %v646 = vadd.f32 %v644, %v645
    %v647 = vsel %vm641, %v459, 0.0
    %v648 = vadd.f32 %v646, %v647
    %v649 = vsel %vm641, %v462, 0.0
    %v650 = vadd.f32 %v648, %v649
    %v651 = vsel %vm641, %v465, 0.0
    %v652 = vadd.f32 %v650, %v651
    %v653 = vsel %vm641, %v468, 0.0
    %v654 = vadd.f32 %v652, %v653
    %v655 = vsel %vm641, %v471, 0.0
    %v656 = vadd.f32 %v654, %v655
    %v657 = vsel %vm641, %v474, 0.0
    %v658 = vadd.f32 %v656, %v657
    %v659 = vsel %vm641, %v477, 0.0
    %v660 = vadd.f32 %v658, %v659
    %v661 = vsel %vm641, %v480, 0.0
    %v662 = vadd.f32 %v660, %v661
    %v663 = vsel %vm641, %v483, 0.0
    %v664 = vadd.f32 %v662, %v663
    %v665 = vsel %vm641, %v486, 0.0
    %v666 = vadd.f32 %v664, %v665
    %v667 = vsel %vm641, %v489, 0.0
    %v668 = vadd.f32 %v666, %v667
    %v669 = vsel %vm641, %v492, 0.0
    %v670 = vadd.f32 %v668, %v669
    %v671 = vsel %vm641, %v495, 0.0
    %v672 = vadd.f32 %v670, %v671
    %v673 = vsel %vm641, %v498, 0.0
    %v674 = vadd.f32 %v672, %v673
    %v675 = vsel %vm641, %v501, 0.0
    %v676 = vadd.f32 %v674, %v675
    %v677 = vsel %vm641, %v504, 0.0
    %v678 = vadd.f32 %v676, %v677
    %v679 = vsel %vm641, %v507, 0.0
    %v680 = vadd.f32 %v678, %v679
    %v681 = vsel %vm641, %v510, 0.0
    %v682 = vadd.f32 %v680, %v681
    %v683 = vsel %vm641, %v513, 0.0
    %v684 = vadd.f32 %v682, %v683
    %v685 = vsel %vm641, %v516, 0.0
    %v686 = vadd.f32 %v684, %v685
    %v687 = vsel %vm641, %v519, 0.0
    %v688 = vadd.f32 %v686, %v687
    %v689 = vsel %vm641, %v522, 0.0
    %v690 = vadd.f32 %v688, %v689
    %v691 = vsel %vm641, %v525, 0.0
    %v692 = vadd.f32 %v690, %v691
    %v693 = vsel %vm641, %v528, 0.0
    %v694 = vadd.f32 %v692, %v693
    %v695 = vsel %vm641, %v531, 0.0
    %v696 = vadd.f32 %v694, %v695
    %v697 = vsel %vm641, %v534, 0.0
    %v698 = vadd.f32 %v696, %v697
    %v699 = vsel %vm641, %v537, 0.0
    %v700 = vadd.f32 %v698, %v699
    %v701 = vsel %vm641, %v540, 0.0
    %v702 = vadd.f32 %v700, %v701
    %v703 = vsel %vm641, %v543, 0.0
    %v704 = vadd.f32 %v702, %v703
    %v705 = vsel %vm641, %v546, 0.0
    %v706 = vadd.f32 %v704, %v705
    %v707 = vsel %vm641, %v549, 0.0
    %v708 = vadd.f32 %v706, %v707
    %v709 = vsel %vm641, %v552, 0.0
    %v710 = vadd.f32 %v708, %v709
    %v711 = vsel %vm641, %v555, 0.0
    %v712 = vadd.f32 %v710, %v711
    %v713 = vsel %vm641, %v558, 0.0
    %v714 = vadd.f32 %v712, %v713
    %v715 = vsel %vm641, %v561, 0.0
    %v716 = vadd.f32 %v714, %v715
    %v717 = vsel %vm641, %v564, 0.0
    %v718 = vadd.f32 %v716, %v717
    %v719 = vsel %vm641, %v567, 0.0
    %v720 = vadd.f32 %v718, %v719
    %v721 = vsel %vm641, %v570, 0.0
    %v722 = vadd.f32 %v720, %v721
    %v723 = vsel %vm641, %v573, 0.0
    %v724 = vadd.f32 %v722, %v723
    %v725 = vsel %vm641, %v576, 0.0
    %v726 = vadd.f32 %v724, %v725
    %v727 = vsel %vm641, %v579, 0.0
    %v728 = vadd.f32 %v726, %v727
    %v729 = vsel %vm641, %v582, 0.0
    %v730 = vadd.f32 %v728, %v729
    %v731 = vsel %vm641, %v585, 0.0
    %v732 = vadd.f32 %v730, %v731
    %v733 = vsel %vm641, %v588, 0.0
    %v734 = vadd.f32 %v732, %v733
    %v735 = vsel %vm641, %v591, 0.0
    %v736 = vadd.f32 %v734, %v735
    %v737 = vsel %vm641, %v594, 0.0
    %v738 = vadd.f32 %v736, %v737
    %v739 = vsel %vm641, %v597, 0.0
    %v740 = vadd.f32 %v738, %v739
    %v741 = vsel %vm641, %v600, 0.0
    %v742 = vadd.f32 %v740, %v741
    %v743 = vsel %vm641, %v603, 0.0
    %v744 = vadd.f32 %v742, %v743
    %v745 = vsel %vm641, %v606, 0.0
    %v746 = vadd.f32 %v744, %v745
    %v747 = vsel %vm641, %v609, 0.0
    %v748 = vadd.f32 %v746, %v747
    %v749 = vsel %vm641, %v612, 0.0
    %v750 = vadd.f32 %v748, %v749
    %v751 = vsel %vm641, %v615, 0.0
    %v752 = vadd.f32 %v750, %v751
    %v753 = vsel %vm641, %v618, 0.0
    %v754 = vadd.f32 %v752, %v753
    %v755 = vsel %vm641, %v621, 0.0
    %v756 = vadd.f32 %v754, %v755
    %v757 = vsel %vm641, %v624, 0.0
    %v758 = vadd.f32 %v756, %v757
    %v759 = vsel %vm641, %v627, 0.0
    %v760 = vadd.f32 %v758, %v759
    %v761 = vsel %vm641, %v630, 0.0
    %v762 = vadd.f32 %v760, %v761
    %v763 = vsel %vm641, %v633, 0.0
    %v764 = vadd.f32 %v762, %v763
    %v765 = vsel %vm641, %v636, 0.0
    %v766 = vadd.f32 %v764, %v765
    %v767 = vsel %vm641, %v639, 0.0
    %v768 = vadd.f32 %v766, %v767
    %v769 = vrot.slane %v768, 4
    %v770 = vadd.f32 %v768, %v769
    %v771 = vrot.slane %v770, 2
    %v772 = vadd.f32 %v770, %v771
    %v773 = vrot.slane %v772, 1
    %v774 = vadd.f32 %v772, %v773
    %v775 = vmul.f32 %v774, 0.001953125
    %v776 = vmul.f32 %v450, %v450
    %v777 = vmul.f32 %v453, %v453
    %v778 = vmul.f32 %v456, %v456
    %v779 = vmul.f32 %v459, %v459
    %v780 = vmul.f32 %v462, %v462
    %v781 = vmul.f32 %v465, %v465
    %v782 = vmul.f32 %v468, %v468
    %v783 = vmul.f32 %v471, %v471
    %v784 = vmul.f32 %v474, %v474
    %v785 = vmul.f32 %v477, %v477
    %v786 = vmul.f32 %v480, %v480
    %v787 = vmul.f32 %v483, %v483
    %v788 = vmul.f32 %v486, %v486
    %v789 = vmul.f32 %v489, %v489
    %v790 = vmul.f32 %v492, %v492
    %v791 = vmul.f32 %v495, %v495
    %v792 = vmul.f32 %v498, %v498
    %v793 = vmul.f32 %v501, %v501
    %v794 = vmul.f32 %v504, %v504
    %v795 = vmul.f32 %v507, %v507
    %v796 = vmul.f32 %v510, %v510
    %v797 = vmul.f32 %v513, %v513
    %v798 = vmul.f32 %v516, %v516
    %v799 = vmul.f32 %v519, %v519
    %v800 = vmul.f32 %v522, %v522
    %v801 = vmul.f32 %v525, %v525
    %v802 = vmul.f32 %v528, %v528
    %v803 = vmul.f32 %v531, %v531
    %v804 = vmul.f32 %v534, %v534
    %v805 = vmul.f32 %v537, %v537
    %v806 = vmul.f32 %v540, %v540
    %v807 = vmul.f32 %v543, %v543
    %v808 = vmul.f32 %v546, %v546
    %v809 = vmul.f32 %v549, %v549
    %v810 = vmul.f32 %v552, %v552
    %v811 = vmul.f32 %v555, %v555
    %v812 = vmul.f32 %v558, %v558
    %v813 = vmul.f32 %v561, %v561
    %v814 = vmul.f32 %v564, %v564
    %v815 = vmul.f32 %v567, %v567
    %v816 = vmul.f32 %v570, %v570
    %v817 = vmul.f32 %v573, %v573
    %v818 = vmul.f32 %v576, %v576
    %v819 = vmul.f32 %v579, %v579
    %v820 = vmul.f32 %v582, %v582
    %v821 = vmul.f32 %v585, %v585
    %v822 = vmul.f32 %v588, %v588
    %v823 = vmul.f32 %v591, %v591
    %v824 = vmul.f32 %v594, %v594
    %v825 = vmul.f32 %v597, %v597
    %v826 = vmul.f32 %v600, %v600
    %v827 = vmul.f32 %v603, %v603
    %v828 = vmul.f32 %v606, %v606
    %v829 = vmul.f32 %v609, %v609
    %v830 = vmul.f32 %v612, %v612
    %v831 = vmul.f32 %v615, %v615
    %v832 = vmul.f32 %v618, %v618
    %v833 = vmul.f32 %v621, %v621
    %v834 = vmul.f32 %v624, %v624
    %v835 = vmul.f32 %v627, %v627
    %v836 = vmul.f32 %v630, %v630
    %v837 = vmul.f32 %v633, %v633
    %v838 = vmul.f32 %v636, %v636
    %v839 = vmul.f32 %v639, %v639
    %v840 = vsel %vm641, %v776, 0.0
    %v841 = vsel %vm641, %v777, 0.0
    %v842 = vadd.f32 %v840, %v841
    %v843 = vsel %vm641, %v778, 0.0
    %v844 = vadd.f32 %v842, %v843
    %v845 = vsel %vm641, %v779, 0.0
    %v846 = vadd.f32 %v844, %v845
    %v847 = vsel %vm641, %v780, 0.0
    %v848 = vadd.f32 %v846, %v847
    %v849 = vsel %vm641, %v781, 0.0
    %v850 = vadd.f32 %v848, %v849
    %v851 = vsel %vm641, %v782, 0.0
    %v852 = vadd.f32 %v850, %v851
    %v853 = vsel %vm641, %v783, 0.0
    %v854 = vadd.f32 %v852, %v853
    %v855 = vsel %vm641, %v784, 0.0
    %v856 = vadd.f32 %v854, %v855
    %v857 = vsel %vm641, %v785, 0.0
    %v858 = vadd.f32 %v856, %v857
    %v859 = vsel %vm641, %v786, 0.0
    %v860 = vadd.f32 %v858, %v859
    %v861 = vsel %vm641, %v787, 0.0
    %v862 = vadd.f32 %v860, %v861
    %v863 = vsel %vm641, %v788, 0.0
    %v864 = vadd.f32 %v862, %v863
    %v865 = vsel %vm641, %v789, 0.0
    %v866 = vadd.f32 %v864, %v865
    %v867 = vsel %vm641, %v790, 0.0
    %v868 = vadd.f32 %v866, %v867
    %v869 = vsel %vm641, %v791, 0.0
    %v870 = vadd.f32 %v868, %v869
    %v871 = vsel %vm641, %v792, 0.0
    %v872 = vadd.f32 %v870, %v871
    %v873 = vsel %vm641, %v793, 0.0
    %v874 = vadd.f32 %v872, %v873
    %v875 = vsel %vm641, %v794, 0.0
    %v876 = vadd.f32 %v874, %v875
    %v877 = vsel %vm641, %v795, 0.0
    %v878 = vadd.f32 %v876, %v877
    %v879 = vsel %vm641, %v796, 0.0
    %v880 = vadd.f32 %v878, %v879
    %v881 = vsel %vm641, %v797, 0.0
    %v882 = vadd.f32 %v880, %v881
    %v883 = vsel %vm641, %v798, 0.0
    %v884 = vadd.f32 %v882, %v883
    %v885 = vsel %vm641, %v799, 0.0
    %v886 = vadd.f32 %v884, %v885
    %v887 = vsel %vm641, %v800, 0.0
    %v888 = vadd.f32 %v886, %v887
    %v889 = vsel %vm641, %v801, 0.0
    %v890 = vadd.f32 %v888, %v889
    %v891 = vsel %vm641, %v802, 0.0
    %v892 = vadd.f32 %v890, %v891
    %v893 = vsel %vm641, %v803, 0.0
    %v894 = vadd.f32 %v892, %v893
    %v895 = vsel %vm641, %v804, 0.0
    %v896 = vadd.f32 %v894, %v895
    %v897 = vsel %vm641, %v805, 0.0
    %v898 = vadd.f32 %v896, %v897
    %v899 = vsel %vm641, %v806, 0.0
    %v900 = vadd.f32 %v898, %v899
    %v901 = vsel %vm641, %v807, 0.0
    %v902 = vadd.f32 %v900, %v901
    %v903 = vsel %vm641, %v808, 0.0
    %v904 = vadd.f32 %v902, %v903
    %v905 = vsel %vm641, %v809, 0.0
    %v906 = vadd.f32 %v904, %v905
    %v907 = vsel %vm641, %v810, 0.0
    %v908 = vadd.f32 %v906, %v907
    %v909 = vsel %vm641, %v811, 0.0
    %v910 = vadd.f32 %v908, %v909
    %v911 = vsel %vm641, %v812, 0.0
    %v912 = vadd.f32 %v910, %v911
    %v913 = vsel %vm641, %v813, 0.0
    %v914 = vadd.f32 %v912, %v913
    %v915 = vsel %vm641, %v814, 0.0
    %v916 = vadd.f32 %v914, %v915
    %v917 = vsel %vm641, %v815, 0.0
    %v918 = vadd.f32 %v916, %v917
    %v919 = vsel %vm641, %v816, 0.0
    %v920 = vadd.f32 %v918, %v919
    %v921 = vsel %vm641, %v817, 0.0
    %v922 = vadd.f32 %v920, %v921
    %v923 = vsel %vm641, %v818, 0.0
    %v924 = vadd.f32 %v922, %v923
    %v925 = vsel %vm641, %v819, 0.0
    %v926 = vadd.f32 %v924, %v925
    %v927 = vsel %vm641, %v820, 0.0
    %v928 = vadd.f32 %v926, %v927
    %v929 = vsel %vm641, %v821, 0.0
    %v930 = vadd.f32 %v928, %v929
    %v931 = vsel %vm641, %v822, 0.0
    %v932 = vadd.f32 %v930, %v931
    %v933 = vsel %vm641, %v823, 0.0
    %v934 = vadd.f32 %v932, %v933
    %v935 = vsel %vm641, %v824, 0.0
    %v936 = vadd.f32 %v934, %v935
    %v937 = vsel %vm641, %v825, 0.0
    %v938 = vadd.f32 %v936, %v937
    %v939 = vsel %vm641, %v826, 0.0
    %v940 = vadd.f32 %v938, %v939
    %v941 = vsel %vm641, %v827, 0.0
    %v942 = vadd.f32 %v940, %v941
    %v943 = vsel %vm641, %v828, 0.0
    %v944 = vadd.f32 %v942, %v943
    %v945 = vsel %vm641, %v829, 0.0
    %v946 = vadd.f32 %v944, %v945
    %v947 = vsel %vm641, %v830, 0.0
    %v948 = vadd.f32 %v946, %v947
    %v949 = vsel %vm641, %v831, 0.0
    %v950 = vadd.f32 %v948, %v949
    %v951 = vsel %vm641, %v832, 0.0
    %v952 = vadd.f32 %v950, %v951
    %v953 = vsel %vm641, %v833, 0.0
    %v954 = vadd.f32 %v952, %v953
    %v955 = vsel %vm641, %v834, 0.0
    %v956 = vadd.f32 %v954, %v955
    %v957 = vsel %vm641, %v835, 0.0
    %v958 = vadd.f32 %v956, %v957
    %v959 = vsel %vm641, %v836, 0.0
    %v960 = vadd.f32 %v958, %v959
    %v961 = vsel %vm641, %v837, 0.0
    %v962 = vadd.f32 %v960, %v961
    %v963 = vsel %vm641, %v838, 0.0
    %v964 = vadd.f32 %v962, %v963
    %v965 = vsel %vm641, %v839, 0.0
    %v966 = vadd.f32 %v964, %v965
    %v967 = vrot.slane %v966, 4
    %v968 = vadd.f32 %v966, %v967
    %v969 = vrot.slane %v968, 2
    %v970 = vadd.f32 %v968, %v969
    %v971 = vrot.slane %v970, 1
    %v972 = vadd.f32 %v970, %v971
    %v973 = vmul.f32 %v972, 0.001953125
    %v974 = vmul.f32 %v775, %v775
    %v975 = vsub.f32 %v973, %v974
    %v976 = vmax.f32 %v975, 0.0
    %v977 = vsub.f32 %v450, %v775
    %v978 = vsub.f32 %v453, %v775
    %v979 = vsub.f32 %v456, %v775
    %v980 = vsub.f32 %v459, %v775
    %v981 = vsub.f32 %v462, %v775
    %v982 = vsub.f32 %v465, %v775
    %v983 = vsub.f32 %v468, %v775
    %v984 = vsub.f32 %v471, %v775
    %v985 = vsub.f32 %v474, %v775
    %v986 = vsub.f32 %v477, %v775
    %v987 = vsub.f32 %v480, %v775
    %v988 = vsub.f32 %v483, %v775
    %v989 = vsub.f32 %v486, %v775
    %v990 = vsub.f32 %v489, %v775
    %v991 = vsub.f32 %v492, %v775
    %v992 = vsub.f32 %v495, %v775
    %v993 = vsub.f32 %v498, %v775
    %v994 = vsub.f32 %v501, %v775
    %v995 = vsub.f32 %v504, %v775
    %v996 = vsub.f32 %v507, %v775
    %v997 = vsub.f32 %v510, %v775
    %v998 = vsub.f32 %v513, %v775
    %v999 = vsub.f32 %v516, %v775
    %v1000 = vsub.f32 %v519, %v775
    %v1001 = vsub.f32 %v522, %v775
    %v1002 = vsub.f32 %v525, %v775
    %v1003 = vsub.f32 %v528, %v775
    %v1004 = vsub.f32 %v531, %v775
    %v1005 = vsub.f32 %v534, %v775
    %v1006 = vsub.f32 %v537, %v775
    %v1007 = vsub.f32 %v540, %v775
    %v1008 = vsub.f32 %v543, %v775
    %v1009 = vsub.f32 %v546, %v775
    %v1010 = vsub.f32 %v549, %v775
    %v1011 = vsub.f32 %v552, %v775
    %v1012 = vsub.f32 %v555, %v775
    %v1013 = vsub.f32 %v558, %v775
    %v1014 = vsub.f32 %v561, %v775
    %v1015 = vsub.f32 %v564, %v775
    %v1016 = vsub.f32 %v567, %v775
    %v1017 = vsub.f32 %v570, %v775
    %v1018 = vsub.f32 %v573, %v775
    %v1019 = vsub.f32 %v576, %v775
    %v1020 = vsub.f32 %v579, %v775
    %v1021 = vsub.f32 %v582, %v775
    %v1022 = vsub.f32 %v585, %v775
    %v1023 = vsub.f32 %v588, %v775
    %v1024 = vsub.f32 %v591, %v775
    %v1025 = vsub.f32 %v594, %v775
    %v1026 = vsub.f32 %v597, %v775
    %v1027 = vsub.f32 %v600, %v775
    %v1028 = vsub.f32 %v603, %v775
    %v1029 = vsub.f32 %v606, %v775
    %v1030 = vsub.f32 %v609, %v775
    %v1031 = vsub.f32 %v612, %v775
    %v1032 = vsub.f32 %v615, %v775
    %v1033 = vsub.f32 %v618, %v775
    %v1034 = vsub.f32 %v621, %v775
    %v1035 = vsub.f32 %v624, %v775
    %v1036 = vsub.f32 %v627, %v775
    %v1037 = vsub.f32 %v630, %v775
    %v1038 = vsub.f32 %v633, %v775
    %v1039 = vsub.f32 %v636, %v775
    %v1040 = vsub.f32 %v639, %v775
    %v1041 = vadd.f32 %v976, 1e-05
    %v1042 = vrsqrt.pop %v1041
    %v1043 = vmul.f32 %v1042, %v1041
    %v1044 = vmul.f32 %v1043, %v1042
    %v1045 = vmul.f32 0.5, %v1044
    %v1046 = vsub.f32 1.5, %v1045
    %v1047 = vmul.f32 %v1042, %v1046
    %vm1048 = vweird.f32 %v1041
    %vm1049 = vweird.f32 %v1042
    %vm1050 = vmor %vm1048, %vm1049
    %v1051 = vsel %vm1050, %v1042, %v1047
    %v1052 = vmul.f32 %v977, %v1051
    %v1053 = vmul.f32 %v978, %v1051
    %v1054 = vmul.f32 %v979, %v1051
    %v1055 = vmul.f32 %v980, %v1051
    %v1056 = vmul.f32 %v981, %v1051
    %v1057 = vmul.f32 %v982, %v1051
    %v1058 = vmul.f32 %v983, %v1051
    %v1059 = vmul.f32 %v984, %v1051
    %v1060 = vmul.f32 %v985, %v1051
    %v1061 = vmul.f32 %v986, %v1051
    %v1062 = vmul.f32 %v987, %v1051
    %v1063 = vmul.f32 %v988, %v1051
    %v1064 = vmul.f32 %v989, %v1051
    %v1065 = vmul.f32 %v990, %v1051
    %v1066 = vmul.f32 %v991, %v1051
    %v1067 = vmul.f32 %v992, %v1051
    %v1068 = vmul.f32 %v993, %v1051
    %v1069 = vmul.f32 %v994, %v1051
    %v1070 = vmul.f32 %v995, %v1051
    %v1071 = vmul.f32 %v996, %v1051
    %v1072 = vmul.f32 %v997, %v1051
    %v1073 = vmul.f32 %v998, %v1051
    %v1074 = vmul.f32 %v999, %v1051
    %v1075 = vmul.f32 %v1000, %v1051
    %v1076 = vmul.f32 %v1001, %v1051
    %v1077 = vmul.f32 %v1002, %v1051
    %v1078 = vmul.f32 %v1003, %v1051
    %v1079 = vmul.f32 %v1004, %v1051
    %v1080 = vmul.f32 %v1005, %v1051
    %v1081 = vmul.f32 %v1006, %v1051
    %v1082 = vmul.f32 %v1007, %v1051
    %v1083 = vmul.f32 %v1008, %v1051
    %v1084 = vmul.f32 %v1009, %v1051
    %v1085 = vmul.f32 %v1010, %v1051
    %v1086 = vmul.f32 %v1011, %v1051
    %v1087 = vmul.f32 %v1012, %v1051
    %v1088 = vmul.f32 %v1013, %v1051
    %v1089 = vmul.f32 %v1014, %v1051
    %v1090 = vmul.f32 %v1015, %v1051
    %v1091 = vmul.f32 %v1016, %v1051
    %v1092 = vmul.f32 %v1017, %v1051
    %v1093 = vmul.f32 %v1018, %v1051
    %v1094 = vmul.f32 %v1019, %v1051
    %v1095 = vmul.f32 %v1020, %v1051
    %v1096 = vmul.f32 %v1021, %v1051
    %v1097 = vmul.f32 %v1022, %v1051
    %v1098 = vmul.f32 %v1023, %v1051
    %v1099 = vmul.f32 %v1024, %v1051
    %v1100 = vmul.f32 %v1025, %v1051
    %v1101 = vmul.f32 %v1026, %v1051
    %v1102 = vmul.f32 %v1027, %v1051
    %v1103 = vmul.f32 %v1028, %v1051
    %v1104 = vmul.f32 %v1029, %v1051
    %v1105 = vmul.f32 %v1030, %v1051
    %v1106 = vmul.f32 %v1031, %v1051
    %v1107 = vmul.f32 %v1032, %v1051
    %v1108 = vmul.f32 %v1033, %v1051
    %v1109 = vmul.f32 %v1034, %v1051
    %v1110 = vmul.f32 %v1035, %v1051
    %v1111 = vmul.f32 %v1036, %v1051
    %v1112 = vmul.f32 %v1037, %v1051
    %v1113 = vmul.f32 %v1038, %v1051
    %v1114 = vmul.f32 %v1039, %v1051
    %v1115 = vmul.f32 %v1040, %v1051
    %v1116 = vperm.slane %v92, 0
    %v1117 = vmul.f32 %v1052, %v1116
    %v1118 = vmul.f32 %v1053, %v1116
    %v1119 = vmul.f32 %v1054, %v1116
    %v1120 = vmul.f32 %v1055, %v1116
    %v1121 = vmul.f32 %v1056, %v1116
    %v1122 = vmul.f32 %v1057, %v1116
    %v1123 = vmul.f32 %v1058, %v1116
    %v1124 = vmul.f32 %v1059, %v1116
    %v1125 = vmul.f32 %v1060, %v1116
    %v1126 = vmul.f32 %v1061, %v1116
    %v1127 = vmul.f32 %v1062, %v1116
    %v1128 = vmul.f32 %v1063, %v1116
    %v1129 = vmul.f32 %v1064, %v1116
    %v1130 = vmul.f32 %v1065, %v1116
    %v1131 = vmul.f32 %v1066, %v1116
    %v1132 = vmul.f32 %v1067, %v1116
    %v1133 = vmul.f32 %v1068, %v1116
    %v1134 = vmul.f32 %v1069, %v1116
    %v1135 = vmul.f32 %v1070, %v1116
    %v1136 = vmul.f32 %v1071, %v1116
    %v1137 = vmul.f32 %v1072, %v1116
    %v1138 = vmul.f32 %v1073, %v1116
    %v1139 = vmul.f32 %v1074, %v1116
    %v1140 = vmul.f32 %v1075, %v1116
    %v1141 = vmul.f32 %v1076, %v1116
    %v1142 = vmul.f32 %v1077, %v1116
    %v1143 = vmul.f32 %v1078, %v1116
    %v1144 = vmul.f32 %v1079, %v1116
    %v1145 = vmul.f32 %v1080, %v1116
    %v1146 = vmul.f32 %v1081, %v1116
    %v1147 = vmul.f32 %v1082, %v1116
    %v1148 = vmul.f32 %v1083, %v1116
    %v1149 = vmul.f32 %v1084, %v1116
    %v1150 = vmul.f32 %v1085, %v1116
    %v1151 = vmul.f32 %v1086, %v1116
    %v1152 = vmul.f32 %v1087, %v1116
    %v1153 = vmul.f32 %v1088, %v1116
    %v1154 = vmul.f32 %v1089, %v1116
    %v1155 = vmul.f32 %v1090, %v1116
    %v1156 = vmul.f32 %v1091, %v1116
    %v1157 = vmul.f32 %v1092, %v1116
    %v1158 = vmul.f32 %v1093, %v1116
    %v1159 = vmul.f32 %v1094, %v1116
    %v1160 = vmul.f32 %v1095, %v1116
    %v1161 = vmul.f32 %v1096, %v1116
    %v1162 = vmul.f32 %v1097, %v1116
    %v1163 = vmul.f32 %v1098, %v1116
    %v1164 = vmul.f32 %v1099, %v1116
    %v1165 = vmul.f32 %v1100, %v1116
    %v1166 = vmul.f32 %v1101, %v1116
    %v1167 = vmul.f32 %v1102, %v1116
    %v1168 = vmul.f32 %v1103, %v1116
    %v1169 = vmul.f32 %v1104, %v1116
    %v1170 = vmul.f32 %v1105, %v1116
    %v1171 = vmul.f32 %v1106, %v1116
    %v1172 = vmul.f32 %v1107, %v1116
    %v1173 = vmul.f32 %v1108, %v1116
    %v1174 = vmul.f32 %v1109, %v1116
    %v1175 = vmul.f32 %v1110, %v1116
    %v1176 = vmul.f32 %v1111, %v1116
    %v1177 = vmul.f32 %v1112, %v1116
    %v1178 = vmul.f32 %v1113, %v1116
    %v1179 = vmul.f32 %v1114, %v1116
    %v1180 = vmul.f32 %v1115, %v1116
    %v1181 = vperm.slane %v92, 1
    %v1182 = vadd.f32 %v1117, %v1181
    %v1183 = vadd.f32 %v1118, %v1181
    %v1184 = vadd.f32 %v1119, %v1181
    %v1185 = vadd.f32 %v1120, %v1181
    %v1186 = vadd.f32 %v1121, %v1181
    %v1187 = vadd.f32 %v1122, %v1181
    %v1188 = vadd.f32 %v1123, %v1181
    %v1189 = vadd.f32 %v1124, %v1181
    %v1190 = vadd.f32 %v1125, %v1181
    %v1191 = vadd.f32 %v1126, %v1181
    %v1192 = vadd.f32 %v1127, %v1181
    %v1193 = vadd.f32 %v1128, %v1181
    %v1194 = vadd.f32 %v1129, %v1181
    %v1195 = vadd.f32 %v1130, %v1181
    %v1196 = vadd.f32 %v1131, %v1181
    %v1197 = vadd.f32 %v1132, %v1181
    %v1198 = vadd.f32 %v1133, %v1181
    %v1199 = vadd.f32 %v1134, %v1181
    %v1200 = vadd.f32 %v1135, %v1181
    %v1201 = vadd.f32 %v1136, %v1181
    %v1202 = vadd.f32 %v1137, %v1181
    %v1203 = vadd.f32 %v1138, %v1181
    %v1204 = vadd.f32 %v1139, %v1181
    %v1205 = vadd.f32 %v1140, %v1181
    %v1206 = vadd.f32 %v1141, %v1181
    %v1207 = vadd.f32 %v1142, %v1181
    %v1208 = vadd.f32 %v1143, %v1181
    %v1209 = vadd.f32 %v1144, %v1181
    %v1210 = vadd.f32 %v1145, %v1181
    %v1211 = vadd.f32 %v1146, %v1181
    %v1212 = vadd.f32 %v1147, %v1181
    %v1213 = vadd.f32 %v1148, %v1181
    %v1214 = vadd.f32 %v1149, %v1181
    %v1215 = vadd.f32 %v1150, %v1181
    %v1216 = vadd.f32 %v1151, %v1181
    %v1217 = vadd.f32 %v1152, %v1181
    %v1218 = vadd.f32 %v1153, %v1181
    %v1219 = vadd.f32 %v1154, %v1181
    %v1220 = vadd.f32 %v1155, %v1181
    %v1221 = vadd.f32 %v1156, %v1181
    %v1222 = vadd.f32 %v1157, %v1181
    %v1223 = vadd.f32 %v1158, %v1181
    %v1224 = vadd.f32 %v1159, %v1181
    %v1225 = vadd.f32 %v1160, %v1181
    %v1226 = vadd.f32 %v1161, %v1181
    %v1227 = vadd.f32 %v1162, %v1181
    %v1228 = vadd.f32 %v1163, %v1181
    %v1229 = vadd.f32 %v1164, %v1181
    %v1230 = vadd.f32 %v1165, %v1181
    %v1231 = vadd.f32 %v1166, %v1181
    %v1232 = vadd.f32 %v1167, %v1181
    %v1233 = vadd.f32 %v1168, %v1181
    %v1234 = vadd.f32 %v1169, %v1181
    %v1235 = vadd.f32 %v1170, %v1181
    %v1236 = vadd.f32 %v1171, %v1181
    %v1237 = vadd.f32 %v1172, %v1181
    %v1238 = vadd.f32 %v1173, %v1181
    %v1239 = vadd.f32 %v1174, %v1181
    %v1240 = vadd.f32 %v1175, %v1181
    %v1241 = vadd.f32 %v1176, %v1181
    %v1242 = vadd.f32 %v1177, %v1181
    %v1243 = vadd.f32 %v1178, %v1181
    %v1244 = vadd.f32 %v1179, %v1181
    %v1245 = vadd.f32 %v1180, %v1181
    %v1246 = vmax.f32 %v1182, 0.0
    %v1247 = vmax.f32 %v1183, 0.0
    %v1248 = vmax.f32 %v1184, 0.0
    %v1249 = vmax.f32 %v1185, 0.0
    %v1250 = vmax.f32 %v1186, 0.0
    %v1251 = vmax.f32 %v1187, 0.0
    %v1252 = vmax.f32 %v1188, 0.0
    %v1253 = vmax.f32 %v1189, 0.0
    %v1254 = vmax.f32 %v1190, 0.0
    %v1255 = vmax.f32 %v1191, 0.0
    %v1256 = vmax.f32 %v1192, 0.0
    %v1257 = vmax.f32 %v1193, 0.0
    %v1258 = vmax.f32 %v1194, 0.0
    %v1259 = vmax.f32 %v1195, 0.0
    %v1260 = vmax.f32 %v1196, 0.0
    %v1261 = vmax.f32 %v1197, 0.0
    %v1262 = vmax.f32 %v1198, 0.0
    %v1263 = vmax.f32 %v1199, 0.0
    %v1264 = vmax.f32 %v1200, 0.0
    %v1265 = vmax.f32 %v1201, 0.0
    %v1266 = vmax.f32 %v1202, 0.0
    %v1267 = vmax.f32 %v1203, 0.0
    %v1268 = vmax.f32 %v1204, 0.0
    %v1269 = vmax.f32 %v1205, 0.0
    %v1270 = vmax.f32 %v1206, 0.0
    %v1271 = vmax.f32 %v1207, 0.0
    %v1272 = vmax.f32 %v1208, 0.0
    %v1273 = vmax.f32 %v1209, 0.0
    %v1274 = vmax.f32 %v1210, 0.0
    %v1275 = vmax.f32 %v1211, 0.0
    %v1276 = vmax.f32 %v1212, 0.0
    %v1277 = vmax.f32 %v1213, 0.0
    %v1278 = vmax.f32 %v1214, 0.0
    %v1279 = vmax.f32 %v1215, 0.0
    %v1280 = vmax.f32 %v1216, 0.0
    %v1281 = vmax.f32 %v1217, 0.0
    %v1282 = vmax.f32 %v1218, 0.0
    %v1283 = vmax.f32 %v1219, 0.0
    %v1284 = vmax.f32 %v1220, 0.0
    %v1285 = vmax.f32 %v1221, 0.0
    %v1286 = vmax.f32 %v1222, 0.0
    %v1287 = vmax.f32 %v1223, 0.0
    %v1288 = vmax.f32 %v1224, 0.0
    %v1289 = vmax.f32 %v1225, 0.0
    %v1290 = vmax.f32 %v1226, 0.0
    %v1291 = vmax.f32 %v1227, 0.0
    %v1292 = vmax.f32 %v1228, 0.0
    %v1293 = vmax.f32 %v1229, 0.0
    %v1294 = vmax.f32 %v1230, 0.0
    %v1295 = vmax.f32 %v1231, 0.0
    %v1296 = vmax.f32 %v1232, 0.0
    %v1297 = vmax.f32 %v1233, 0.0
    %v1298 = vmax.f32 %v1234, 0.0
    %v1299 = vmax.f32 %v1235, 0.0
    %v1300 = vmax.f32 %v1236, 0.0
    %v1301 = vmax.f32 %v1237, 0.0
    %v1302 = vmax.f32 %v1238, 0.0
    %v1303 = vmax.f32 %v1239, 0.0
    %v1304 = vmax.f32 %v1240, 0.0
    %v1305 = vmax.f32 %v1241, 0.0
    %v1306 = vmax.f32 %v1242, 0.0
    %v1307 = vmax.f32 %v1243, 0.0
    %v1308 = vmax.f32 %v1244, 0.0
    %v1309 = vmax.f32 %v1245, 0.0
    %v1310 = vld [vmem:[%s2] sm:$0xff]
    %v1311 = vld [vmem:[%s2 + $0x8] sm:$0xff]
    %v1313 = vsel %vm641, %v1246, 0
    %v1316 = vsel %vm641, %v1247, 0
    %v1319 = vsel %vm641, %v1248, 0
    %v1322 = vsel %vm641, %v1249, 0
    %v1325 = vsel %vm641, %v1250, 0
    %v1328 = vsel %vm641, %v1251, 0
    %v1331 = vsel %vm641, %v1252, 0
    %v1334 = vsel %vm641, %v1253, 0
    %v1337 = vsel %vm641, %v1254, 0
    %v1340 = vsel %vm641, %v1255, 0
    %v1343 = vsel %vm641, %v1256, 0
    %v1346 = vsel %vm641, %v1257, 0
    %v1349 = vsel %vm641, %v1258, 0
    %v1352 = vsel %vm641, %v1259, 0
    %v1355 = vsel %vm641, %v1260, 0
    %v1358 = vsel %vm641, %v1261, 0
    %v1361 = vsel %vm641, %v1262, 0
    %v1364 = vsel %vm641, %v1263, 0
    %v1367 = vsel %vm641, %v1264, 0
    %v1370 = vsel %vm641, %v1265, 0
    %v1373 = vsel %vm641, %v1266, 0
    %v1376 = vsel %vm641, %v1267, 0
    %v1379 = vsel %vm641, %v1268, 0
    %v1382 = vsel %vm641, %v1269, 0
    %v1385 = vsel %vm641, %v1270, 0
    %v1388 = vsel %vm641, %v1271, 0
    %v1391 = vsel %vm641, %v1272, 0
    %v1394 = vsel %vm641, %v1273, 0
    %v1397 = vsel %vm641, %v1274, 0
    %v1400 = vsel %vm641, %v1275, 0
    %v1403 = vsel %vm641, %v1276, 0
    %v1406 = vsel %vm641, %v1277, 0
    %v1409 = vsel %vm641, %v1278, 0
    %v1412 = vsel %vm641, %v1279, 0
    %v1415 = vsel %vm641, %v1280, 0
    %v1418 = vsel %vm641, %v1281, 0
    %v1421 = vsel %vm641, %v1282, 0
    %v1424 = vsel %vm641, %v1283, 0
    %v1427 = vsel %vm641, %v1284, 0
    %v1430 = vsel %vm641, %v1285, 0
    %v1433 = vsel %vm641, %v1286, 0
    %v1436 = vsel %vm641, %v1287, 0
    %v1439 = vsel %vm641, %v1288, 0
    %v1442 = vsel %vm641, %v1289, 0
    %v1445 = vsel %vm641, %v1290, 0
    %v1448 = vsel %vm641, %v1291, 0
    %v1451 = vsel %vm641, %v1292, 0
    %v1454 = vsel %vm641, %v1293, 0
    %v1457 = vsel %vm641, %v1294, 0
    %v1460 = vsel %vm641, %v1295, 0
    %v1463 = vsel %vm641, %v1296, 0
    %v1466 = vsel %vm641, %v1297, 0
    %v1469 = vsel %vm641, %v1298, 0
    %v1472 = vsel %vm641, %v1299, 0
    %v1475 = vsel %vm641, %v1300, 0
    %v1478 = vsel %vm641, %v1301, 0
    %v1481 = vsel %vm641, %v1302, 0
    %v1484 = vsel %vm641, %v1303, 0
    %v1487 = vsel %vm641, %v1304, 0
    %v1490 = vsel %vm641, %v1305, 0
    %v1493 = vsel %vm641, %v1306, 0
    %v1496 = vsel %vm641, %v1307, 0
    %v1499 = vsel %vm641, %v1308, 0
    %v1502 = vsel %vm641, %v1309, 0
    %1504 = vmatpush.msra.mxu0 0.0
    %1505 = vmatpush.msra.mxu0 0.0
    %1506 = vmatpush.msra.mxu0 0.0
    %1507 = vmatpush.msra.mxu0 0.0
    %1508 = vmatpush.msra.mxu0 0.0
    %1509 = vmatpush.msra.mxu0 0.0
    %1510 = vmatpush.msra.mxu0 0.0
    %1511 = vmatpush.msra.mxu0 0.0
    %1512 = vmatpush.msra.mxu0 0.0
    %1513 = vmatpush.msra.mxu0 0.0
    %1514 = vmatpush.msra.mxu0 0.0
    %1515 = vmatpush.msra.mxu0 0.0
    %1516 = vmatpush.msra.mxu0 0.0
    %1517 = vmatpush.msra.mxu0 0.0
    %1518 = vmatpush.msra.mxu0 %v1311
    %1519 = vmatpush.msra.mxu0 %v1310
    %1520 = vmatmul.f32.gmra.mxu0 %v1313
    %v1521 = vpop.f32.mrf.mxu0
    %v1522 = vadd.f32 0.0, %v1521
    %1523 = vmatmul.f32.gmra.mxu0 %v1316
    %v1524 = vpop.f32.mrf.mxu0
    %v1525 = vadd.f32 0.0, %v1524
    %1526 = vmatmul.f32.gmra.mxu0 %v1319
    %v1527 = vpop.f32.mrf.mxu0
    %v1528 = vadd.f32 0.0, %v1527
    %1529 = vmatmul.f32.gmra.mxu0 %v1322
    %v1530 = vpop.f32.mrf.mxu0
    %v1531 = vadd.f32 0.0, %v1530
    %1532 = vmatmul.f32.gmra.mxu0 %v1325
    %v1533 = vpop.f32.mrf.mxu0
    %v1534 = vadd.f32 0.0, %v1533
    %1535 = vmatmul.f32.gmra.mxu0 %v1328
    %v1536 = vpop.f32.mrf.mxu0
    %v1537 = vadd.f32 0.0, %v1536
    %1538 = vmatmul.f32.gmra.mxu0 %v1331
    %v1539 = vpop.f32.mrf.mxu0
    %v1540 = vadd.f32 0.0, %v1539
    %1541 = vmatmul.f32.gmra.mxu0 %v1334
    %v1542 = vpop.f32.mrf.mxu0
    %v1543 = vadd.f32 0.0, %v1542
    %1544 = vmatmul.f32.gmra.mxu0 %v1337
    %v1545 = vpop.f32.mrf.mxu0
    %v1546 = vadd.f32 0.0, %v1545
    %1547 = vmatmul.f32.gmra.mxu0 %v1340
    %v1548 = vpop.f32.mrf.mxu0
    %v1549 = vadd.f32 0.0, %v1548
    %1550 = vmatmul.f32.gmra.mxu0 %v1343
    %v1551 = vpop.f32.mrf.mxu0
    %v1552 = vadd.f32 0.0, %v1551
    %1553 = vmatmul.f32.gmra.mxu0 %v1346
    %v1554 = vpop.f32.mrf.mxu0
    %v1555 = vadd.f32 0.0, %v1554
    %1556 = vmatmul.f32.gmra.mxu0 %v1349
    %v1557 = vpop.f32.mrf.mxu0
    %v1558 = vadd.f32 0.0, %v1557
    %1559 = vmatmul.f32.gmra.mxu0 %v1352
    %v1560 = vpop.f32.mrf.mxu0
    %v1561 = vadd.f32 0.0, %v1560
    %1562 = vmatmul.f32.gmra.mxu0 %v1355
    %v1563 = vpop.f32.mrf.mxu0
    %v1564 = vadd.f32 0.0, %v1563
    %1565 = vmatmul.f32.gmra.mxu0 %v1358
    %v1566 = vpop.f32.mrf.mxu0
    %v1567 = vadd.f32 0.0, %v1566
    %1568 = vmatmul.f32.gmra.mxu0 %v1361
    %v1569 = vpop.f32.mrf.mxu0
    %v1570 = vadd.f32 0.0, %v1569
    %1571 = vmatmul.f32.gmra.mxu0 %v1364
    %v1572 = vpop.f32.mrf.mxu0
    %v1573 = vadd.f32 0.0, %v1572
    %1574 = vmatmul.f32.gmra.mxu0 %v1367
    %v1575 = vpop.f32.mrf.mxu0
    %v1576 = vadd.f32 0.0, %v1575
    %1577 = vmatmul.f32.gmra.mxu0 %v1370
    %v1578 = vpop.f32.mrf.mxu0
    %v1579 = vadd.f32 0.0, %v1578
    %1580 = vmatmul.f32.gmra.mxu0 %v1373
    %v1581 = vpop.f32.mrf.mxu0
    %v1582 = vadd.f32 0.0, %v1581
    %1583 = vmatmul.f32.gmra.mxu0 %v1376
    %v1584 = vpop.f32.mrf.mxu0
    %v1585 = vadd.f32 0.0, %v1584
    %1586 = vmatmul.f32.gmra.mxu0 %v1379
    %v1587 = vpop.f32.mrf.mxu0
    %v1588 = vadd.f32 0.0, %v1587
    %1589 = vmatmul.f32.gmra.mxu0 %v1382
    %v1590 = vpop.f32.mrf.mxu0
    %v1591 = vadd.f32 0.0, %v1590
    %1592 = vmatmul.f32.gmra.mxu0 %v1385
    %v1593 = vpop.f32.mrf.mxu0
    %v1594 = vadd.f32 0.0, %v1593
    %1595 = vmatmul.f32.gmra.mxu0 %v1388
    %v1596 = vpop.f32.mrf.mxu0
    %v1597 = vadd.f32 0.0, %v1596
    %1598 = vmatmul.f32.gmra.mxu0 %v1391
    %v1599 = vpop.f32.mrf.mxu0
    %v1600 = vadd.f32 0.0, %v1599
    %1601 = vmatmul.f32.gmra.mxu0 %v1394
    %v1602 = vpop.f32.mrf.mxu0
    %v1603 = vadd.f32 0.0, %v1602
    %1604 = vmatmul.f32.gmra.mxu0 %v1397
    %v1605 = vpop.f32.mrf.mxu0
    %v1606 = vadd.f32 0.0, %v1605
    %1607 = vmatmul.f32.gmra.mxu0 %v1400
    %v1608 = vpop.f32.mrf.mxu0
    %v1609 = vadd.f32 0.0, %v1608
    %1610 = vmatmul.f32.gmra.mxu0 %v1403
    %v1611 = vpop.f32.mrf.mxu0
    %v1612 = vadd.f32 0.0, %v1611
    %1613 = vmatmul.f32.gmra.mxu0 %v1406
    %v1614 = vpop.f32.mrf.mxu0
    %v1615 = vadd.f32 0.0, %v1614
    %1616 = vmatmul.f32.gmra.mxu0 %v1409
    %v1617 = vpop.f32.mrf.mxu0
    %v1618 = vadd.f32 0.0, %v1617
    %1619 = vmatmul.f32.gmra.mxu0 %v1412
    %v1620 = vpop.f32.mrf.mxu0
    %v1621 = vadd.f32 0.0, %v1620
    %1622 = vmatmul.f32.gmra.mxu0 %v1415
    %v1623 = vpop.f32.mrf.mxu0
    %v1624 = vadd.f32 0.0, %v1623
    %1625 = vmatmul.f32.gmra.mxu0 %v1418
    %v1626 = vpop.f32.mrf.mxu0
    %v1627 = vadd.f32 0.0, %v1626
    %1628 = vmatmul.f32.gmra.mxu0 %v1421
    %v1629 = vpop.f32.mrf.mxu0
    %v1630 = vadd.f32 0.0, %v1629
    %1631 = vmatmul.f32.gmra.mxu0 %v1424
    %v1632 = vpop.f32.mrf.mxu0
    %v1633 = vadd.f32 0.0, %v1632
    %1634 = vmatmul.f32.gmra.mxu0 %v1427
    %v1635 = vpop.f32.mrf.mxu0
    %v1636 = vadd.f32 0.0, %v1635
    %1637 = vmatmul.f32.gmra.mxu0 %v1430
    %v1638 = vpop.f32.mrf.mxu0
    %v1639 = vadd.f32 0.0, %v1638
    %1640 = vmatmul.f32.gmra.mxu0 %v1433
    %v1641 = vpop.f32.mrf.mxu0
    %v1642 = vadd.f32 0.0, %v1641
    %1643 = vmatmul.f32.gmra.mxu0 %v1436
    %v1644 = vpop.f32.mrf.mxu0
    %v1645 = vadd.f32 0.0, %v1644
    %1646 = vmatmul.f32.gmra.mxu0 %v1439
    %v1647 = vpop.f32.mrf.mxu0
    %v1648 = vadd.f32 0.0, %v1647
    %1649 = vmatmul.f32.gmra.mxu0 %v1442
    %v1650 = vpop.f32.mrf.mxu0
    %v1651 = vadd.f32 0.0, %v1650
    %1652 = vmatmul.f32.gmra.mxu0 %v1445
    %v1653 = vpop.f32.mrf.mxu0
    %v1654 = vadd.f32 0.0, %v1653
    %1655 = vmatmul.f32.gmra.mxu0 %v1448
    %v1656 = vpop.f32.mrf.mxu0
    %v1657 = vadd.f32 0.0, %v1656
    %1658 = vmatmul.f32.gmra.mxu0 %v1451
    %v1659 = vpop.f32.mrf.mxu0
    %v1660 = vadd.f32 0.0, %v1659
    %1661 = vmatmul.f32.gmra.mxu0 %v1454
    %v1662 = vpop.f32.mrf.mxu0
    %v1663 = vadd.f32 0.0, %v1662
    %1664 = vmatmul.f32.gmra.mxu0 %v1457
    %v1665 = vpop.f32.mrf.mxu0
    %v1666 = vadd.f32 0.0, %v1665
    %1667 = vmatmul.f32.gmra.mxu0 %v1460
    %v1668 = vpop.f32.mrf.mxu0
    %v1669 = vadd.f32 0.0, %v1668
    %1670 = vmatmul.f32.gmra.mxu0 %v1463
    %v1671 = vpop.f32.mrf.mxu0
    %v1672 = vadd.f32 0.0, %v1671
    %1673 = vmatmul.f32.gmra.mxu0 %v1466
    %v1674 = vpop.f32.mrf.mxu0
    %v1675 = vadd.f32 0.0, %v1674
    %1676 = vmatmul.f32.gmra.mxu0 %v1469
    %v1677 = vpop.f32.mrf.mxu0
    %v1678 = vadd.f32 0.0, %v1677
    %1679 = vmatmul.f32.gmra.mxu0 %v1472
    %v1680 = vpop.f32.mrf.mxu0
    %v1681 = vadd.f32 0.0, %v1680
    %1682 = vmatmul.f32.gmra.mxu0 %v1475
    %v1683 = vpop.f32.mrf.mxu0
    %v1684 = vadd.f32 0.0, %v1683
    %1685 = vmatmul.f32.gmra.mxu0 %v1478
    %v1686 = vpop.f32.mrf.mxu0
    %v1687 = vadd.f32 0.0, %v1686
    %1688 = vmatmul.f32.gmra.mxu0 %v1481
    %v1689 = vpop.f32.mrf.mxu0
    %v1690 = vadd.f32 0.0, %v1689
    %1691 = vmatmul.f32.gmra.mxu0 %v1484
    %v1692 = vpop.f32.mrf.mxu0
    %v1693 = vadd.f32 0.0, %v1692
    %1694 = vmatmul.f32.gmra.mxu0 %v1487
    %v1695 = vpop.f32.mrf.mxu0
    %v1696 = vadd.f32 0.0, %v1695
    %1697 = vmatmul.f32.gmra.mxu0 %v1490
    %v1698 = vpop.f32.mrf.mxu0
    %v1699 = vadd.f32 0.0, %v1698
    %1700 = vmatmul.f32.gmra.mxu0 %v1493
    %v1701 = vpop.f32.mrf.mxu0
    %v1702 = vadd.f32 0.0, %v1701
    %1703 = vmatmul.f32.gmra.mxu0 %v1496
    %v1704 = vpop.f32.mrf.mxu0
    %v1705 = vadd.f32 0.0, %v1704
    %1706 = vmatmul.f32.gmra.mxu0 %v1499
    %v1707 = vpop.f32.mrf.mxu0
    %v1708 = vadd.f32 0.0, %v1707
    %1709 = vmatmul.f32.gmra.mxu0 %v1502
    %v1710 = vpop.f32.mrf.mxu0
    %v1711 = vadd.f32 0.0, %v1710
    %1712 = vdwg.mxu0
    %vm1713 = vcmask 261120
    %v1714 = vsel %vm1713, %v1522, 0.0
    %v1715 = vsel %vm1713, %v1525, 0.0
    %v1716 = vadd.f32 %v1714, %v1715
    %v1717 = vsel %vm1713, %v1528, 0.0
    %v1718 = vadd.f32 %v1716, %v1717
    %v1719 = vsel %vm1713, %v1531, 0.0
    %v1720 = vadd.f32 %v1718, %v1719
    %v1721 = vsel %vm1713, %v1534, 0.0
    %v1722 = vadd.f32 %v1720, %v1721
    %v1723 = vsel %vm1713, %v1537, 0.0
    %v1724 = vadd.f32 %v1722, %v1723
    %v1725 = vsel %vm1713, %v1540, 0.0
    %v1726 = vadd.f32 %v1724, %v1725
    %v1727 = vsel %vm1713, %v1543, 0.0
    %v1728 = vadd.f32 %v1726, %v1727
    %v1729 = vsel %vm1713, %v1546, 0.0
    %v1730 = vadd.f32 %v1728, %v1729
    %v1731 = vsel %vm1713, %v1549, 0.0
    %v1732 = vadd.f32 %v1730, %v1731
    %v1733 = vsel %vm1713, %v1552, 0.0
    %v1734 = vadd.f32 %v1732, %v1733
    %v1735 = vsel %vm1713, %v1555, 0.0
    %v1736 = vadd.f32 %v1734, %v1735
    %v1737 = vsel %vm1713, %v1558, 0.0
    %v1738 = vadd.f32 %v1736, %v1737
    %v1739 = vsel %vm1713, %v1561, 0.0
    %v1740 = vadd.f32 %v1738, %v1739
    %v1741 = vsel %vm1713, %v1564, 0.0
    %v1742 = vadd.f32 %v1740, %v1741
    %v1743 = vsel %vm1713, %v1567, 0.0
    %v1744 = vadd.f32 %v1742, %v1743
    %v1745 = vsel %vm1713, %v1570, 0.0
    %v1746 = vadd.f32 %v1744, %v1745
    %v1747 = vsel %vm1713, %v1573, 0.0
    %v1748 = vadd.f32 %v1746, %v1747
    %v1749 = vsel %vm1713, %v1576, 0.0
    %v1750 = vadd.f32 %v1748, %v1749
    %v1751 = vsel %vm1713, %v1579, 0.0
    %v1752 = vadd.f32 %v1750, %v1751
    %v1753 = vsel %vm1713, %v1582, 0.0
    %v1754 = vadd.f32 %v1752, %v1753
    %v1755 = vsel %vm1713, %v1585, 0.0
    %v1756 = vadd.f32 %v1754, %v1755
    %v1757 = vsel %vm1713, %v1588, 0.0
    %v1758 = vadd.f32 %v1756, %v1757
    %v1759 = vsel %vm1713, %v1591, 0.0
    %v1760 = vadd.f32 %v1758, %v1759
    %v1761 = vsel %vm1713, %v1594, 0.0
    %v1762 = vadd.f32 %v1760, %v1761
    %v1763 = vsel %vm1713, %v1597, 0.0
    %v1764 = vadd.f32 %v1762, %v1763
    %v1765 = vsel %vm1713, %v1600, 0.0
    %v1766 = vadd.f32 %v1764, %v1765
    %v1767 = vsel %vm1713, %v1603, 0.0
    %v1768 = vadd.f32 %v1766, %v1767
    %v1769 = vsel %vm1713, %v1606, 0.0
    %v1770 = vadd.f32 %v1768, %v1769
    %v1771 = vsel %vm1713, %v1609, 0.0
    %v1772 = vadd.f32 %v1770, %v1771
    %v1773 = vsel %vm1713, %v1612, 0.0
    %v1774 = vadd.f32 %v1772, %v1773
    %v1775 = vsel %vm1713, %v1615, 0.0
    %v1776 = vadd.f32 %v1774, %v1775
    %v1777 = vsel %vm1713, %v1618, 0.0
    %v1778 = vadd.f32 %v1776, %v1777
    %v1779 = vsel %vm1713, %v1621, 0.0
    %v1780 = vadd.f32 %v1778, %v1779
    %v1781 = vsel %vm1713, %v1624, 0.0
    %v1782 = vadd.f32 %v1780, %v1781
    %v1783 = vsel %vm1713, %v1627, 0.0
    %v1784 = vadd.f32 %v1782, %v1783
    %v1785 = vsel %vm1713, %v1630, 0.0
    %v1786 = vadd.f32 %v1784, %v1785
    %v1787 = vsel %vm1713, %v1633, 0.0
    %v1788 = vadd.f32 %v1786, %v1787
    %v1789 = vsel %vm1713, %v1636, 0.0
    %v1790 = vadd.f32 %v1788, %v1789
    %v1791 = vsel %vm1713, %v1639, 0.0
    %v1792 = vadd.f32 %v1790, %v1791
    %v1793 = vsel %vm1713, %v1642, 0.0
    %v1794 = vadd.f32 %v1792, %v1793
    %v1795 = vsel %vm1713, %v1645, 0.0
    %v1796 = vadd.f32 %v1794, %v1795
    %v1797 = vsel %vm1713, %v1648, 0.0
    %v1798 = vadd.f32 %v1796, %v1797
    %v1799 = vsel %vm1713, %v1651, 0.0
    %v1800 = vadd.f32 %v1798, %v1799
    %v1801 = vsel %vm1713, %v1654, 0.0
    %v1802 = vadd.f32 %v1800, %v1801
    %v1803 = vsel %vm1713, %v1657, 0.0
    %v1804 = vadd.f32 %v1802, %v1803
    %v1805 = vsel %vm1713, %v1660, 0.0
    %v1806 = vadd.f32 %v1804, %v1805
    %v1807 = vsel %vm1713, %v1663, 0.0
    %v1808 = vadd.f32 %v1806, %v1807
    %v1809 = vsel %vm1713, %v1666, 0.0
    %v1810 = vadd.f32 %v1808, %v1809
    %v1811 = vsel %vm1713, %v1669, 0.0
    %v1812 = vadd.f32 %v1810, %v1811
    %v1813 = vsel %vm1713, %v1672, 0.0
    %v1814 = vadd.f32 %v1812, %v1813
    %v1815 = vsel %vm1713, %v1675, 0.0
    %v1816 = vadd.f32 %v1814, %v1815
    %v1817 = vsel %vm1713, %v1678, 0.0
    %v1818 = vadd.f32 %v1816, %v1817
    %v1819 = vsel %vm1713, %v1681, 0.0
    %v1820 = vadd.f32 %v1818, %v1819
    %v1821 = vsel %vm1713, %v1684, 0.0
    %v1822 = vadd.f32 %v1820, %v1821
    %v1823 = vsel %vm1713, %v1687, 0.0
    %v1824 = vadd.f32 %v1822, %v1823
    %v1825 = vsel %vm1713, %v1690, 0.0
    %v1826 = vadd.f32 %v1824, %v1825
    %v1827 = vsel %vm1713, %v1693, 0.0
    %v1828 = vadd.f32 %v1826, %v1827
    %v1829 = vsel %vm1713, %v1696, 0.0
    %v1830 = vadd.f32 %v1828, %v1829
    %v1831 = vsel %vm1713, %v1699, 0.0
    %v1832 = vadd.f32 %v1830, %v1831
    %v1833 = vsel %vm1713, %v1702, 0.0
    %v1834 = vadd.f32 %v1832, %v1833
    %v1835 = vsel %vm1713, %v1705, 0.0
    %v1836 = vadd.f32 %v1834, %v1835
    %v1837 = vsel %vm1713, %v1708, 0.0
    %v1838 = vadd.f32 %v1836, %v1837
    %v1839 = vsel %vm1713, %v1711, 0.0
    %v1840 = vadd.f32 %v1838, %v1839
    %v1841 = vrot.slane %v1840, 4
    %v1842 = vadd.f32 %v1840, %v1841
    %v1843 = vrot.slane %v1842, 2
    %v1844 = vadd.f32 %v1842, %v1843
    %v1845 = vrot.slane %v1844, 1
    %v1846 = vadd.f32 %v1844, %v1845
    %v1847 = vmul.f32 %v1846, 0.001953125
    %v1848 = vmul.f32 %v1522, %v1522
    %v1849 = vmul.f32 %v1525, %v1525
    %v1850 = vmul.f32 %v1528, %v1528
    %v1851 = vmul.f32 %v1531, %v1531
    %v1852 = vmul.f32 %v1534, %v1534
    %v1853 = vmul.f32 %v1537, %v1537
    %v1854 = vmul.f32 %v1540, %v1540
    %v1855 = vmul.f32 %v1543, %v1543
    %v1856 = vmul.f32 %v1546, %v1546
    %v1857 = vmul.f32 %v1549, %v1549
    %v1858 = vmul.f32 %v1552, %v1552
    %v1859 = vmul.f32 %v1555, %v1555
    %v1860 = vmul.f32 %v1558, %v1558
    %v1861 = vmul.f32 %v1561, %v1561
    %v1862 = vmul.f32 %v1564, %v1564
    %v1863 = vmul.f32 %v1567, %v1567
    %v1864 = vmul.f32 %v1570, %v1570
    %v1865 = vmul.f32 %v1573, %v1573
    %v1866 = vmul.f32 %v1576, %v1576
    %v1867 = vmul.f32 %v1579, %v1579
    %v1868 = vmul.f32 %v1582, %v1582
    %v1869 = vmul.f32 %v1585, %v1585
    %v1870 = vmul.f32 %v1588, %v1588
    %v1871 = vmul.f32 %v1591, %v1591
    %v1872 = vmul.f32 %v1594, %v1594
    %v1873 = vmul.f32 %v1597, %v1597
    %v1874 = vmul.f32 %v1600, %v1600
    %v1875 = vmul.f32 %v1603, %v1603
    %v1876 = vmul.f32 %v1606, %v1606
    %v1877 = vmul.f32 %v1609, %v1609
    %v1878 = vmul.f32 %v1612, %v1612
    %v1879 = vmul.f32 %v1615, %v1615
    %v1880 = vmul.f32 %v1618, %v1618
    %v1881 = vmul.f32 %v1621, %v1621
    %v1882 = vmul.f32 %v1624, %v1624
    %v1883 = vmul.f32 %v1627, %v1627
    %v1884 = vmul.f32 %v1630, %v1630
    %v1885 = vmul.f32 %v1633, %v1633
    %v1886 = vmul.f32 %v1636, %v1636
    %v1887 = vmul.f32 %v1639, %v1639
    %v1888 = vmul.f32 %v1642, %v1642
    %v1889 = vmul.f32 %v1645, %v1645
    %v1890 = vmul.f32 %v1648, %v1648
    %v1891 = vmul.f32 %v1651, %v1651
    %v1892 = vmul.f32 %v1654, %v1654
    %v1893 = vmul.f32 %v1657, %v1657
    %v1894 = vmul.f32 %v1660, %v1660
    %v1895 = vmul.f32 %v1663, %v1663
    %v1896 = vmul.f32 %v1666, %v1666
    %v1897 = vmul.f32 %v1669, %v1669
    %v1898 = vmul.f32 %v1672, %v1672
    %v1899 = vmul.f32 %v1675, %v1675
    %v1900 = vmul.f32 %v1678, %v1678
    %v1901 = vmul.f32 %v1681, %v1681
    %v1902 = vmul.f32 %v1684, %v1684
    %v1903 = vmul.f32 %v1687, %v1687
    %v1904 = vmul.f32 %v1690, %v1690
    %v1905 = vmul.f32 %v1693, %v1693
    %v1906 = vmul.f32 %v1696, %v1696
    %v1907 = vmul.f32 %v1699, %v1699
    %v1908 = vmul.f32 %v1702, %v1702
    %v1909 = vmul.f32 %v1705, %v1705
    %v1910 = vmul.f32 %v1708, %v1708
    %v1911 = vmul.f32 %v1711, %v1711
    %v1912 = vsel %vm1713, %v1848, 0.0
    %v1913 = vsel %vm1713, %v1849, 0.0
    %v1914 = vadd.f32 %v1912, %v1913
    %v1915 = vsel %vm1713, %v1850, 0.0
    %v1916 = vadd.f32 %v1914, %v1915
    %v1917 = vsel %vm1713, %v1851, 0.0
    %v1918 = vadd.f32 %v1916, %v1917
    %v1919 = vsel %vm1713, %v1852, 0.0
    %v1920 = vadd.f32 %v1918, %v1919
    %v1921 = vsel %vm1713, %v1853, 0.0
    %v1922 = vadd.f32 %v1920, %v1921
    %v1923 = vsel %vm1713, %v1854, 0.0
    %v1924 = vadd.f32 %v1922, %v1923
    %v1925 = vsel %vm1713, %v1855, 0.0
    %v1926 = vadd.f32 %v1924, %v1925
    %v1927 = vsel %vm1713, %v1856, 0.0
    %v1928 = vadd.f32 %v1926, %v1927
    %v1929 = vsel %vm1713, %v1857, 0.0
    %v1930 = vadd.f32 %v1928, %v1929
    %v1931 = vsel %vm1713, %v1858, 0.0
    %v1932 = vadd.f32 %v1930, %v1931
    %v1933 = vsel %vm1713, %v1859, 0.0
    %v1934 = vadd.f32 %v1932, %v1933
    %v1935 = vsel %vm1713, %v1860, 0.0
    %v1936 = vadd.f32 %v1934, %v1935
    %v1937 = vsel %vm1713, %v1861, 0.0
    %v1938 = vadd.f32 %v1936, %v1937
    %v1939 = vsel %vm1713, %v1862, 0.0
    %v1940 = vadd.f32 %v1938, %v1939
    %v1941 = vsel %vm1713, %v1863, 0.0
    %v1942 = vadd.f32 %v1940, %v1941
    %v1943 = vsel %vm1713, %v1864, 0.0
    %v1944 = vadd.f32 %v1942, %v1943
    %v1945 = vsel %vm1713, %v1865, 0.0
    %v1946 = vadd.f32 %v1944, %v1945
    %v1947 = vsel %vm1713, %v1866, 0.0
    %v1948 = vadd.f32 %v1946, %v1947
    %v1949 = vsel %vm1713, %v1867, 0.0
    %v1950 = vadd.f32 %v1948, %v1949
    %v1951 = vsel %vm1713, %v1868, 0.0
    %v1952 = vadd.f32 %v1950, %v1951
    %v1953 = vsel %vm1713, %v1869, 0.0
    %v1954 = vadd.f32 %v1952, %v1953
    %v1955 = vsel %vm1713, %v1870, 0.0
    %v1956 = vadd.f32 %v1954, %v1955
    %v1957 = vsel %vm1713, %v1871, 0.0
    %v1958 = vadd.f32 %v1956, %v1957
    %v1959 = vsel %vm1713, %v1872, 0.0
    %v1960 = vadd.f32 %v1958, %v1959
    %v1961 = vsel %vm1713, %v1873, 0.0
    %v1962 = vadd.f32 %v1960, %v1961
    %v1963 = vsel %vm1713, %v1874, 0.0
    %v1964 = vadd.f32 %v1962, %v1963
    %v1965 = vsel %vm1713, %v1875, 0.0
    %v1966 = vadd.f32 %v1964, %v1965
    %v1967 = vsel %vm1713, %v1876, 0.0
    %v1968 = vadd.f32 %v1966, %v1967
    %v1969 = vsel %vm1713, %v1877, 0.0
    %v1970 = vadd.f32 %v1968, %v1969
    %v1971 = vsel %vm1713, %v1878, 0.0
    %v1972 = vadd.f32 %v1970, %v1971
    %v1973 = vsel %vm1713, %v1879, 0.0
    %v1974 = vadd.f32 %v1972, %v1973
    %v1975 = vsel %vm1713, %v1880, 0.0
    %v1976 = vadd.f32 %v1974, %v1975
    %v1977 = vsel %vm1713, %v1881, 0.0
    %v1978 = vadd.f32 %v1976, %v1977
    %v1979 = vsel %vm1713, %v1882, 0.0
    %v1980 = vadd.f32 %v1978, %v1979
    %v1981 = vsel %vm1713, %v1883, 0.0
    %v1982 = vadd.f32 %v1980, %v1981
    %v1983 = vsel %vm1713, %v1884, 0.0
    %v1984 = vadd.f32 %v1982, %v1983
    %v1985 = vsel %vm1713, %v1885, 0.0
    %v1986 = vadd.f32 %v1984, %v1985
    %v1987 = vsel %vm1713, %v1886, 0.0
    %v1988 = vadd.f32 %v1986, %v1987
    %v1989 = vsel %vm1713, %v1887, 0.0
    %v1990 = vadd.f32 %v1988, %v1989
    %v1991 = vsel %vm1713, %v1888, 0.0
    %v1992 = vadd.f32 %v1990, %v1991
    %v1993 = vsel %vm1713, %v1889, 0.0
    %v1994 = vadd.f32 %v1992, %v1993
    %v1995 = vsel %vm1713, %v1890, 0.0
    %v1996 = vadd.f32 %v1994, %v1995
    %v1997 = vsel %vm1713, %v1891, 0.0
    %v1998 = vadd.f32 %v1996, %v1997
    %v1999 = vsel %vm1713, %v1892, 0.0
    %v2000 = vadd.f32 %v1998, %v1999
    %v2001 = vsel %vm1713, %v1893, 0.0
    %v2002 = vadd.f32 %v2000, %v2001
    %v2003 = vsel %vm1713, %v1894, 0.0
    %v2004 = vadd.f32 %v2002, %v2003
    %v2005 = vsel %vm1713, %v1895, 0.0
    %v2006 = vadd.f32 %v2004, %v2005
    %v2007 = vsel %vm1713, %v1896, 0.0
    %v2008 = vadd.f32 %v2006, %v2007
    %v2009 = vsel %vm1713, %v1897, 0.0
    %v2010 = vadd.f32 %v2008, %v2009
    %v2011 = vsel %vm1713, %v1898, 0.0
    %v2012 = vadd.f32 %v2010, %v2011
    %v2013 = vsel %vm1713, %v1899, 0.0
    %v2014 = vadd.f32 %v2012, %v2013
    %v2015 = vsel %vm1713, %v1900, 0.0
    %v2016 = vadd.f32 %v2014, %v2015
    %v2017 = vsel %vm1713, %v1901, 0.0
    %v2018 = vadd.f32 %v2016, %v2017
    %v2019 = vsel %vm1713, %v1902, 0.0
    %v2020 = vadd.f32 %v2018, %v2019
    %v2021 = vsel %vm1713, %v1903, 0.0
    %v2022 = vadd.f32 %v2020, %v2021
    %v2023 = vsel %vm1713, %v1904, 0.0
    %v2024 = vadd.f32 %v2022, %v2023
    %v2025 = vsel %vm1713, %v1905, 0.0
    %v2026 = vadd.f32 %v2024, %v2025
    %v2027 = vsel %vm1713, %v1906, 0.0
    %v2028 = vadd.f32 %v2026, %v2027
    %v2029 = vsel %vm1713, %v1907, 0.0
    %v2030 = vadd.f32 %v2028, %v2029
    %v2031 = vsel %vm1713, %v1908, 0.0
    %v2032 = vadd.f32 %v2030, %v2031
    %v2033 = vsel %vm1713, %v1909, 0.0
    %v2034 = vadd.f32 %v2032, %v2033
    %v2035 = vsel %vm1713, %v1910, 0.0
    %v2036 = vadd.f32 %v2034, %v2035
    %v2037 = vsel %vm1713, %v1911, 0.0
    %v2038 = vadd.f32 %v2036, %v2037
    %v2039 = vrot.slane %v2038, 4
    %v2040 = vadd.f32 %v2038, %v2039
    %v2041 = vrot.slane %v2040, 2
    %v2042 = vadd.f32 %v2040, %v2041
    %v2043 = vrot.slane %v2042, 1
    %v2044 = vadd.f32 %v2042, %v2043
    %v2045 = vmul.f32 %v2044, 0.001953125
    %v2046 = vmul.f32 %v1847, %v1847
    %v2047 = vsub.f32 %v2045, %v2046
    %v2048 = vmax.f32 %v2047, 0.0
    %v2049 = vsub.f32 %v1522, %v1847
    %v2050 = vsub.f32 %v1525, %v1847
    %v2051 = vsub.f32 %v1528, %v1847
    %v2052 = vsub.f32 %v1531, %v1847
    %v2053 = vsub.f32 %v1534, %v1847
    %v2054 = vsub.f32 %v1537, %v1847
    %v2055 = vsub.f32 %v1540, %v1847
    %v2056 = vsub.f32 %v1543, %v1847
    %v2057 = vsub.f32 %v1546, %v1847
    %v2058 = vsub.f32 %v1549, %v1847
    %v2059 = vsub.f32 %v1552, %v1847
    %v2060 = vsub.f32 %v1555, %v1847
    %v2061 = vsub.f32 %v1558, %v1847
    %v2062 = vsub.f32 %v1561, %v1847
    %v2063 = vsub.f32 %v1564, %v1847
    %v2064 = vsub.f32 %v1567, %v1847
    %v2065 = vsub.f32 %v1570, %v1847
    %v2066 = vsub.f32 %v1573, %v1847
    %v2067 = vsub.f32 %v1576, %v1847
    %v2068 = vsub.f32 %v1579, %v1847
    %v2069 = vsub.f32 %v1582, %v1847
    %v2070 = vsub.f32 %v1585, %v1847
    %v2071 = vsub.f32 %v1588, %v1847
    %v2072 = vsub.f32 %v1591, %v1847
    %v2073 = vsub.f32 %v1594, %v1847
    %v2074 = vsub.f32 %v1597, %v1847
    %v2075 = vsub.f32 %v1600, %v1847
    %v2076 = vsub.f32 %v1603, %v1847
    %v2077 = vsub.f32 %v1606, %v1847
    %v2078 = vsub.f32 %v1609, %v1847
    %v2079 = vsub.f32 %v1612, %v1847
    %v2080 = vsub.f32 %v1615, %v1847
    %v2081 = vsub.f32 %v1618, %v1847
    %v2082 = vsub.f32 %v1621, %v1847
    %v2083 = vsub.f32 %v1624, %v1847
    %v2084 = vsub.f32 %v1627, %v1847
    %v2085 = vsub.f32 %v1630, %v1847
    %v2086 = vsub.f32 %v1633, %v1847
    %v2087 = vsub.f32 %v1636, %v1847
    %v2088 = vsub.f32 %v1639, %v1847
    %v2089 = vsub.f32 %v1642, %v1847
    %v2090 = vsub.f32 %v1645, %v1847
    %v2091 = vsub.f32 %v1648, %v1847
    %v2092 = vsub.f32 %v1651, %v1847
    %v2093 = vsub.f32 %v1654, %v1847
    %v2094 = vsub.f32 %v1657, %v1847
    %v2095 = vsub.f32 %v1660, %v1847
    %v2096 = vsub.f32 %v1663, %v1847
    %v2097 = vsub.f32 %v1666, %v1847
    %v2098 = vsub.f32 %v1669, %v1847
    %v2099 = vsub.f32 %v1672, %v1847
    %v2100 = vsub.f32 %v1675, %v1847
    %v2101 = vsub.f32 %v1678, %v1847
    %v2102 = vsub.f32 %v1681, %v1847
    %v2103 = vsub.f32 %v1684, %v1847
    %v2104 = vsub.f32 %v1687, %v1847
    %v2105 = vsub.f32 %v1690, %v1847
    %v2106 = vsub.f32 %v1693, %v1847
    %v2107 = vsub.f32 %v1696, %v1847
    %v2108 = vsub.f32 %v1699, %v1847
    %v2109 = vsub.f32 %v1702, %v1847
    %v2110 = vsub.f32 %v1705, %v1847
    %v2111 = vsub.f32 %v1708, %v1847
    %v2112 = vsub.f32 %v1711, %v1847
    %v2113 = vadd.f32 %v2048, 1e-05
    %v2114 = vrsqrt.pop %v2113
    %v2115 = vmul.f32 %v2114, %v2113
    %v2116 = vmul.f32 %v2115, %v2114
    %v2117 = vmul.f32 0.5, %v2116
    %v2118 = vsub.f32 1.5, %v2117
    %v2119 = vmul.f32 %v2114, %v2118
    %vm2120 = vweird.f32 %v2113
    %vm2121 = vweird.f32 %v2114
    %vm2122 = vmor %vm2120, %vm2121
    %v2123 = vsel %vm2122, %v2114, %v2119
    %v2124 = vmul.f32 %v2049, %v2123
    %v2125 = vmul.f32 %v2050, %v2123
    %v2126 = vmul.f32 %v2051, %v2123
    %v2127 = vmul.f32 %v2052, %v2123
    %v2128 = vmul.f32 %v2053, %v2123
    %v2129 = vmul.f32 %v2054, %v2123
    %v2130 = vmul.f32 %v2055, %v2123
    %v2131 = vmul.f32 %v2056, %v2123
    %v2132 = vmul.f32 %v2057, %v2123
    %v2133 = vmul.f32 %v2058, %v2123
    %v2134 = vmul.f32 %v2059, %v2123
    %v2135 = vmul.f32 %v2060, %v2123
    %v2136 = vmul.f32 %v2061, %v2123
    %v2137 = vmul.f32 %v2062, %v2123
    %v2138 = vmul.f32 %v2063, %v2123
    %v2139 = vmul.f32 %v2064, %v2123
    %v2140 = vmul.f32 %v2065, %v2123
    %v2141 = vmul.f32 %v2066, %v2123
    %v2142 = vmul.f32 %v2067, %v2123
    %v2143 = vmul.f32 %v2068, %v2123
    %v2144 = vmul.f32 %v2069, %v2123
    %v2145 = vmul.f32 %v2070, %v2123
    %v2146 = vmul.f32 %v2071, %v2123
    %v2147 = vmul.f32 %v2072, %v2123
    %v2148 = vmul.f32 %v2073, %v2123
    %v2149 = vmul.f32 %v2074, %v2123
    %v2150 = vmul.f32 %v2075, %v2123
    %v2151 = vmul.f32 %v2076, %v2123
    %v2152 = vmul.f32 %v2077, %v2123
    %v2153 = vmul.f32 %v2078, %v2123
    %v2154 = vmul.f32 %v2079, %v2123
    %v2155 = vmul.f32 %v2080, %v2123
    %v2156 = vmul.f32 %v2081, %v2123
    %v2157 = vmul.f32 %v2082, %v2123
    %v2158 = vmul.f32 %v2083, %v2123
    %v2159 = vmul.f32 %v2084, %v2123
    %v2160 = vmul.f32 %v2085, %v2123
    %v2161 = vmul.f32 %v2086, %v2123
    %v2162 = vmul.f32 %v2087, %v2123
    %v2163 = vmul.f32 %v2088, %v2123
    %v2164 = vmul.f32 %v2089, %v2123
    %v2165 = vmul.f32 %v2090, %v2123
    %v2166 = vmul.f32 %v2091, %v2123
    %v2167 = vmul.f32 %v2092, %v2123
    %v2168 = vmul.f32 %v2093, %v2123
    %v2169 = vmul.f32 %v2094, %v2123
    %v2170 = vmul.f32 %v2095, %v2123
    %v2171 = vmul.f32 %v2096, %v2123
    %v2172 = vmul.f32 %v2097, %v2123
    %v2173 = vmul.f32 %v2098, %v2123
    %v2174 = vmul.f32 %v2099, %v2123
    %v2175 = vmul.f32 %v2100, %v2123
    %v2176 = vmul.f32 %v2101, %v2123
    %v2177 = vmul.f32 %v2102, %v2123
    %v2178 = vmul.f32 %v2103, %v2123
    %v2179 = vmul.f32 %v2104, %v2123
    %v2180 = vmul.f32 %v2105, %v2123
    %v2181 = vmul.f32 %v2106, %v2123
    %v2182 = vmul.f32 %v2107, %v2123
    %v2183 = vmul.f32 %v2108, %v2123
    %v2184 = vmul.f32 %v2109, %v2123
    %v2185 = vmul.f32 %v2110, %v2123
    %v2186 = vmul.f32 %v2111, %v2123
    %v2187 = vmul.f32 %v2112, %v2123
    %v2188 = vperm.slane %v92, 2
    %v2189 = vmul.f32 %v2124, %v2188
    %v2190 = vmul.f32 %v2125, %v2188
    %v2191 = vmul.f32 %v2126, %v2188
    %v2192 = vmul.f32 %v2127, %v2188
    %v2193 = vmul.f32 %v2128, %v2188
    %v2194 = vmul.f32 %v2129, %v2188
    %v2195 = vmul.f32 %v2130, %v2188
    %v2196 = vmul.f32 %v2131, %v2188
    %v2197 = vmul.f32 %v2132, %v2188
    %v2198 = vmul.f32 %v2133, %v2188
    %v2199 = vmul.f32 %v2134, %v2188
    %v2200 = vmul.f32 %v2135, %v2188
    %v2201 = vmul.f32 %v2136, %v2188
    %v2202 = vmul.f32 %v2137, %v2188
    %v2203 = vmul.f32 %v2138, %v2188
    %v2204 = vmul.f32 %v2139, %v2188
    %v2205 = vmul.f32 %v2140, %v2188
    %v2206 = vmul.f32 %v2141, %v2188
    %v2207 = vmul.f32 %v2142, %v2188
    %v2208 = vmul.f32 %v2143, %v2188
    %v2209 = vmul.f32 %v2144, %v2188
    %v2210 = vmul.f32 %v2145, %v2188
    %v2211 = vmul.f32 %v2146, %v2188
    %v2212 = vmul.f32 %v2147, %v2188
    %v2213 = vmul.f32 %v2148, %v2188
    %v2214 = vmul.f32 %v2149, %v2188
    %v2215 = vmul.f32 %v2150, %v2188
    %v2216 = vmul.f32 %v2151, %v2188
    %v2217 = vmul.f32 %v2152, %v2188
    %v2218 = vmul.f32 %v2153, %v2188
    %v2219 = vmul.f32 %v2154, %v2188
    %v2220 = vmul.f32 %v2155, %v2188
    %v2221 = vmul.f32 %v2156, %v2188
    %v2222 = vmul.f32 %v2157, %v2188
    %v2223 = vmul.f32 %v2158, %v2188
    %v2224 = vmul.f32 %v2159, %v2188
    %v2225 = vmul.f32 %v2160, %v2188
    %v2226 = vmul.f32 %v2161, %v2188
    %v2227 = vmul.f32 %v2162, %v2188
    %v2228 = vmul.f32 %v2163, %v2188
    %v2229 = vmul.f32 %v2164, %v2188
    %v2230 = vmul.f32 %v2165, %v2188
    %v2231 = vmul.f32 %v2166, %v2188
    %v2232 = vmul.f32 %v2167, %v2188
    %v2233 = vmul.f32 %v2168, %v2188
    %v2234 = vmul.f32 %v2169, %v2188
    %v2235 = vmul.f32 %v2170, %v2188
    %v2236 = vmul.f32 %v2171, %v2188
    %v2237 = vmul.f32 %v2172, %v2188
    %v2238 = vmul.f32 %v2173, %v2188
    %v2239 = vmul.f32 %v2174, %v2188
    %v2240 = vmul.f32 %v2175, %v2188
    %v2241 = vmul.f32 %v2176, %v2188
    %v2242 = vmul.f32 %v2177, %v2188
    %v2243 = vmul.f32 %v2178, %v2188
    %v2244 = vmul.f32 %v2179, %v2188
    %v2245 = vmul.f32 %v2180, %v2188
    %v2246 = vmul.f32 %v2181, %v2188
    %v2247 = vmul.f32 %v2182, %v2188
    %v2248 = vmul.f32 %v2183, %v2188
    %v2249 = vmul.f32 %v2184, %v2188
    %v2250 = vmul.f32 %v2185, %v2188
    %v2251 = vmul.f32 %v2186, %v2188
    %v2252 = vmul.f32 %v2187, %v2188
    %v2253 = vperm.slane %v92, 3
    %v2254 = vadd.f32 %v2189, %v2253
    %v2255 = vadd.f32 %v2190, %v2253
    %v2256 = vadd.f32 %v2191, %v2253
    %v2257 = vadd.f32 %v2192, %v2253
    %v2258 = vadd.f32 %v2193, %v2253
    %v2259 = vadd.f32 %v2194, %v2253
    %v2260 = vadd.f32 %v2195, %v2253
    %v2261 = vadd.f32 %v2196, %v2253
    %v2262 = vadd.f32 %v2197, %v2253
    %v2263 = vadd.f32 %v2198, %v2253
    %v2264 = vadd.f32 %v2199, %v2253
    %v2265 = vadd.f32 %v2200, %v2253
    %v2266 = vadd.f32 %v2201, %v2253
    %v2267 = vadd.f32 %v2202, %v2253
    %v2268 = vadd.f32 %v2203, %v2253
    %v2269 = vadd.f32 %v2204, %v2253
    %v2270 = vadd.f32 %v2205, %v2253
    %v2271 = vadd.f32 %v2206, %v2253
    %v2272 = vadd.f32 %v2207, %v2253
    %v2273 = vadd.f32 %v2208, %v2253
    %v2274 = vadd.f32 %v2209, %v2253
    %v2275 = vadd.f32 %v2210, %v2253
    %v2276 = vadd.f32 %v2211, %v2253
    %v2277 = vadd.f32 %v2212, %v2253
    %v2278 = vadd.f32 %v2213, %v2253
    %v2279 = vadd.f32 %v2214, %v2253
    %v2280 = vadd.f32 %v2215, %v2253
    %v2281 = vadd.f32 %v2216, %v2253
    %v2282 = vadd.f32 %v2217, %v2253
    %v2283 = vadd.f32 %v2218, %v2253
    %v2284 = vadd.f32 %v2219, %v2253
    %v2285 = vadd.f32 %v2220, %v2253
    %v2286 = vadd.f32 %v2221, %v2253
    %v2287 = vadd.f32 %v2222, %v2253
    %v2288 = vadd.f32 %v2223, %v2253
    %v2289 = vadd.f32 %v2224, %v2253
    %v2290 = vadd.f32 %v2225, %v2253
    %v2291 = vadd.f32 %v2226, %v2253
    %v2292 = vadd.f32 %v2227, %v2253
    %v2293 = vadd.f32 %v2228, %v2253
    %v2294 = vadd.f32 %v2229, %v2253
    %v2295 = vadd.f32 %v2230, %v2253
    %v2296 = vadd.f32 %v2231, %v2253
    %v2297 = vadd.f32 %v2232, %v2253
    %v2298 = vadd.f32 %v2233, %v2253
    %v2299 = vadd.f32 %v2234, %v2253
    %v2300 = vadd.f32 %v2235, %v2253
    %v2301 = vadd.f32 %v2236, %v2253
    %v2302 = vadd.f32 %v2237, %v2253
    %v2303 = vadd.f32 %v2238, %v2253
    %v2304 = vadd.f32 %v2239, %v2253
    %v2305 = vadd.f32 %v2240, %v2253
    %v2306 = vadd.f32 %v2241, %v2253
    %v2307 = vadd.f32 %v2242, %v2253
    %v2308 = vadd.f32 %v2243, %v2253
    %v2309 = vadd.f32 %v2244, %v2253
    %v2310 = vadd.f32 %v2245, %v2253
    %v2311 = vadd.f32 %v2246, %v2253
    %v2312 = vadd.f32 %v2247, %v2253
    %v2313 = vadd.f32 %v2248, %v2253
    %v2314 = vadd.f32 %v2249, %v2253
    %v2315 = vadd.f32 %v2250, %v2253
    %v2316 = vadd.f32 %v2251, %v2253
    %v2317 = vadd.f32 %v2252, %v2253
    %v2318 = vmax.f32 %v2254, 0.0
    %v2319 = vmax.f32 %v2255, 0.0
    %v2320 = vmax.f32 %v2256, 0.0
    %v2321 = vmax.f32 %v2257, 0.0
    %v2322 = vmax.f32 %v2258, 0.0
    %v2323 = vmax.f32 %v2259, 0.0
    %v2324 = vmax.f32 %v2260, 0.0
    %v2325 = vmax.f32 %v2261, 0.0
    %v2326 = vmax.f32 %v2262, 0.0
    %v2327 = vmax.f32 %v2263, 0.0
    %v2328 = vmax.f32 %v2264, 0.0
    %v2329 = vmax.f32 %v2265, 0.0
    %v2330 = vmax.f32 %v2266, 0.0
    %v2331 = vmax.f32 %v2267, 0.0
    %v2332 = vmax.f32 %v2268, 0.0
    %v2333 = vmax.f32 %v2269, 0.0
    %v2334 = vmax.f32 %v2270, 0.0
    %v2335 = vmax.f32 %v2271, 0.0
    %v2336 = vmax.f32 %v2272, 0.0
    %v2337 = vmax.f32 %v2273, 0.0
    %v2338 = vmax.f32 %v2274, 0.0
    %v2339 = vmax.f32 %v2275, 0.0
    %v2340 = vmax.f32 %v2276, 0.0
    %v2341 = vmax.f32 %v2277, 0.0
    %v2342 = vmax.f32 %v2278, 0.0
    %v2343 = vmax.f32 %v2279, 0.0
    %v2344 = vmax.f32 %v2280, 0.0
    %v2345 = vmax.f32 %v2281, 0.0
    %v2346 = vmax.f32 %v2282, 0.0
    %v2347 = vmax.f32 %v2283, 0.0
    %v2348 = vmax.f32 %v2284, 0.0
    %v2349 = vmax.f32 %v2285, 0.0
    %v2350 = vmax.f32 %v2286, 0.0
    %v2351 = vmax.f32 %v2287, 0.0
    %v2352 = vmax.f32 %v2288, 0.0
    %v2353 = vmax.f32 %v2289, 0.0
    %v2354 = vmax.f32 %v2290, 0.0
    %v2355 = vmax.f32 %v2291, 0.0
    %v2356 = vmax.f32 %v2292, 0.0
    %v2357 = vmax.f32 %v2293, 0.0
    %v2358 = vmax.f32 %v2294, 0.0
    %v2359 = vmax.f32 %v2295, 0.0
    %v2360 = vmax.f32 %v2296, 0.0
    %v2361 = vmax.f32 %v2297, 0.0
    %v2362 = vmax.f32 %v2298, 0.0
    %v2363 = vmax.f32 %v2299, 0.0
    %v2364 = vmax.f32 %v2300, 0.0
    %v2365 = vmax.f32 %v2301, 0.0
    %v2366 = vmax.f32 %v2302, 0.0
    %v2367 = vmax.f32 %v2303, 0.0
    %v2368 = vmax.f32 %v2304, 0.0
    %v2369 = vmax.f32 %v2305, 0.0
    %v2370 = vmax.f32 %v2306, 0.0
    %v2371 = vmax.f32 %v2307, 0.0
    %v2372 = vmax.f32 %v2308, 0.0
    %v2373 = vmax.f32 %v2309, 0.0
    %v2374 = vmax.f32 %v2310, 0.0
    %v2375 = vmax.f32 %v2311, 0.0
    %v2376 = vmax.f32 %v2312, 0.0
    %v2377 = vmax.f32 %v2313, 0.0
    %v2378 = vmax.f32 %v2314, 0.0
    %v2379 = vmax.f32 %v2315, 0.0
    %v2380 = vmax.f32 %v2316, 0.0
    %v2381 = vmax.f32 %v2317, 0.0
    %v2382 = vld [vmem:[#allocation2] sm:$0xff]
    %v2383 = vld [vmem:[#allocation2 + $0x8] sm:$0xff]
    %v2384 = vld [vmem:[#allocation2 + $0x10] sm:$0xff]
    %v2385 = vld [vmem:[#allocation2 + $0x18] sm:$0xff]
    %v2387 = vsel %vm1713, %v2318, 0
    %v2390 = vsel %vm1713, %v2319, 0
    %v2393 = vsel %vm1713, %v2320, 0
    %v2396 = vsel %vm1713, %v2321, 0
    %v2399 = vsel %vm1713, %v2322, 0
    %v2402 = vsel %vm1713, %v2323, 0
    %v2405 = vsel %vm1713, %v2324, 0
    %v2408 = vsel %vm1713, %v2325, 0
    %v2411 = vsel %vm1713, %v2326, 0
    %v2414 = vsel %vm1713, %v2327, 0
    %v2417 = vsel %vm1713, %v2328, 0
    %v2420 = vsel %vm1713, %v2329, 0
    %v2423 = vsel %vm1713, %v2330, 0
    %v2426 = vsel %vm1713, %v2331, 0
    %v2429 = vsel %vm1713, %v2332, 0
    %v2432 = vsel %vm1713, %v2333, 0
    %v2435 = vsel %vm1713, %v2334, 0
    %v2438 = vsel %vm1713, %v2335, 0
    %v2441 = vsel %vm1713, %v2336, 0
    %v2444 = vsel %vm1713, %v2337, 0
    %v2447 = vsel %vm1713, %v2338, 0
    %v2450 = vsel %vm1713, %v2339, 0
    %v2453 = vsel %vm1713, %v2340, 0
    %v2456 = vsel %vm1713, %v2341, 0
    %v2459 = vsel %vm1713, %v2342, 0
    %v2462 = vsel %vm1713, %v2343, 0
    %v2465 = vsel %vm1713, %v2344, 0
    %v2468 = vsel %vm1713, %v2345, 0
    %v2471 = vsel %vm1713, %v2346, 0
    %v2474 = vsel %vm1713, %v2347, 0
    %v2477 = vsel %vm1713, %v2348, 0
    %v2480 = vsel %vm1713, %v2349, 0
    %v2483 = vsel %vm1713, %v2350, 0
    %v2486 = vsel %vm1713, %v2351, 0
    %v2489 = vsel %vm1713, %v2352, 0
    %v2492 = vsel %vm1713, %v2353, 0
    %v2495 = vsel %vm1713, %v2354, 0
    %v2498 = vsel %vm1713, %v2355, 0
    %v2501 = vsel %vm1713, %v2356, 0
    %v2504 = vsel %vm1713, %v2357, 0
    %v2507 = vsel %vm1713, %v2358, 0
    %v2510 = vsel %vm1713, %v2359, 0
    %v2513 = vsel %vm1713, %v2360, 0
    %v2516 = vsel %vm1713, %v2361, 0
    %v2519 = vsel %vm1713, %v2362, 0
    %v2522 = vsel %vm1713, %v2363, 0
    %v2525 = vsel %vm1713, %v2364, 0
    %v2528 = vsel %vm1713, %v2365, 0
    %v2531 = vsel %vm1713, %v2366, 0
    %v2534 = vsel %vm1713, %v2367, 0
    %v2537 = vsel %vm1713, %v2368, 0
    %v2540 = vsel %vm1713, %v2369, 0
    %v2543 = vsel %vm1713, %v2370, 0
    %v2546 = vsel %vm1713, %v2371, 0
    %v2549 = vsel %vm1713, %v2372, 0
    %v2552 = vsel %vm1713, %v2373, 0
    %v2555 = vsel %vm1713, %v2374, 0
    %v2558 = vsel %vm1713, %v2375, 0
    %v2561 = vsel %vm1713, %v2376, 0
    %v2564 = vsel %vm1713, %v2377, 0
    %v2567 = vsel %vm1713, %v2378, 0
    %v2570 = vsel %vm1713, %v2379, 0
    %v2573 = vsel %vm1713, %v2380, 0
    %v2576 = vsel %vm1713, %v2381, 0
    %2578 = vmatpush.msra.mxu0 0.0
    %2579 = vmatpush.msra.mxu0 0.0
    %2580 = vmatpush.msra.mxu0 0.0
    %2581 = vmatpush.msra.mxu0 0.0
    %2582 = vmatpush.msra.mxu0 0.0
    %2583 = vmatpush.msra.mxu0 0.0
    %2584 = vmatpush.msra.mxu0 0.0
    %2585 = vmatpush.msra.mxu0 0.0
    %2586 = vmatpush.msra.mxu0 0.0
    %2587 = vmatpush.msra.mxu0 0.0
    %2588 = vmatpush.msra.mxu0 0.0
    %2589 = vmatpush.msra.mxu0 0.0
    %2590 = vmatpush.msra.mxu0 %v2385
    %2591 = vmatpush.msra.mxu0 %v2384
    %2592 = vmatpush.msra.mxu0 %v2383
    %2593 = vmatpush.msra.mxu0 %v2382
    %2594 = vmatmul.f32.gmra.mxu0 %v2387
    %v2595 = vpop.f32.mrf.mxu0
    %v2596 = vadd.f32 0.0, %v2595
    %2597 = vmatmul.f32.gmra.mxu0 %v2390
    %v2598 = vpop.f32.mrf.mxu0
    %v2599 = vadd.f32 0.0, %v2598
    %2600 = vmatmul.f32.gmra.mxu0 %v2393
    %v2601 = vpop.f32.mrf.mxu0
    %v2602 = vadd.f32 0.0, %v2601
    %2603 = vmatmul.f32.gmra.mxu0 %v2396
    %v2604 = vpop.f32.mrf.mxu0
    %v2605 = vadd.f32 0.0, %v2604
    %2606 = vmatmul.f32.gmra.mxu0 %v2399
    %v2607 = vpop.f32.mrf.mxu0
    %v2608 = vadd.f32 0.0, %v2607
    %2609 = vmatmul.f32.gmra.mxu0 %v2402
    %v2610 = vpop.f32.mrf.mxu0
    %v2611 = vadd.f32 0.0, %v2610
    %2612 = vmatmul.f32.gmra.mxu0 %v2405
    %v2613 = vpop.f32.mrf.mxu0
    %v2614 = vadd.f32 0.0, %v2613
    %2615 = vmatmul.f32.gmra.mxu0 %v2408
    %v2616 = vpop.f32.mrf.mxu0
    %v2617 = vadd.f32 0.0, %v2616
    %2618 = vmatmul.f32.gmra.mxu0 %v2411
    %v2619 = vpop.f32.mrf.mxu0
    %v2620 = vadd.f32 0.0, %v2619
    %2621 = vmatmul.f32.gmra.mxu0 %v2414
    %v2622 = vpop.f32.mrf.mxu0
    %v2623 = vadd.f32 0.0, %v2622
    %2624 = vmatmul.f32.gmra.mxu0 %v2417
    %v2625 = vpop.f32.mrf.mxu0
    %v2626 = vadd.f32 0.0, %v2625
    %2627 = vmatmul.f32.gmra.mxu0 %v2420
    %v2628 = vpop.f32.mrf.mxu0
    %v2629 = vadd.f32 0.0, %v2628
    %2630 = vmatmul.f32.gmra.mxu0 %v2423
    %v2631 = vpop.f32.mrf.mxu0
    %v2632 = vadd.f32 0.0, %v2631
    %2633 = vmatmul.f32.gmra.mxu0 %v2426
    %v2634 = vpop.f32.mrf.mxu0
    %v2635 = vadd.f32 0.0, %v2634
    %2636 = vmatmul.f32.gmra.mxu0 %v2429
    %v2637 = vpop.f32.mrf.mxu0
    %v2638 = vadd.f32 0.0, %v2637
    %2639 = vmatmul.f32.gmra.mxu0 %v2432
    %v2640 = vpop.f32.mrf.mxu0
    %v2641 = vadd.f32 0.0, %v2640
    %2642 = vmatmul.f32.gmra.mxu0 %v2435
    %v2643 = vpop.f32.mrf.mxu0
    %v2644 = vadd.f32 0.0, %v2643
    %2645 = vmatmul.f32.gmra.mxu0 %v2438
    %v2646 = vpop.f32.mrf.mxu0
    %v2647 = vadd.f32 0.0, %v2646
    %2648 = vmatmul.f32.gmra.mxu0 %v2441
    %v2649 = vpop.f32.mrf.mxu0
    %v2650 = vadd.f32 0.0, %v2649
    %2651 = vmatmul.f32.gmra.mxu0 %v2444
    %v2652 = vpop.f32.mrf.mxu0
    %v2653 = vadd.f32 0.0, %v2652
    %2654 = vmatmul.f32.gmra.mxu0 %v2447
    %v2655 = vpop.f32.mrf.mxu0
    %v2656 = vadd.f32 0.0, %v2655
    %2657 = vmatmul.f32.gmra.mxu0 %v2450
    %v2658 = vpop.f32.mrf.mxu0
    %v2659 = vadd.f32 0.0, %v2658
    %2660 = vmatmul.f32.gmra.mxu0 %v2453
    %v2661 = vpop.f32.mrf.mxu0
    %v2662 = vadd.f32 0.0, %v2661
    %2663 = vmatmul.f32.gmra.mxu0 %v2456
    %v2664 = vpop.f32.mrf.mxu0
    %v2665 = vadd.f32 0.0, %v2664
    %2666 = vmatmul.f32.gmra.mxu0 %v2459
    %v2667 = vpop.f32.mrf.mxu0
    %v2668 = vadd.f32 0.0, %v2667
    %2669 = vmatmul.f32.gmra.mxu0 %v2462
    %v2670 = vpop.f32.mrf.mxu0
    %v2671 = vadd.f32 0.0, %v2670
    %2672 = vmatmul.f32.gmra.mxu0 %v2465
    %v2673 = vpop.f32.mrf.mxu0
    %v2674 = vadd.f32 0.0, %v2673
    %2675 = vmatmul.f32.gmra.mxu0 %v2468
    %v2676 = vpop.f32.mrf.mxu0
    %v2677 = vadd.f32 0.0, %v2676
    %2678 = vmatmul.f32.gmra.mxu0 %v2471
    %v2679 = vpop.f32.mrf.mxu0
    %v2680 = vadd.f32 0.0, %v2679
    %2681 = vmatmul.f32.gmra.mxu0 %v2474
    %v2682 = vpop.f32.mrf.mxu0
    %v2683 = vadd.f32 0.0, %v2682
    %2684 = vmatmul.f32.gmra.mxu0 %v2477
    %v2685 = vpop.f32.mrf.mxu0
    %v2686 = vadd.f32 0.0, %v2685
    %2687 = vmatmul.f32.gmra.mxu0 %v2480
    %v2688 = vpop.f32.mrf.mxu0
    %v2689 = vadd.f32 0.0, %v2688
    %2690 = vmatmul.f32.gmra.mxu0 %v2483
    %v2691 = vpop.f32.mrf.mxu0
    %v2692 = vadd.f32 0.0, %v2691
    %2693 = vmatmul.f32.gmra.mxu0 %v2486
    %v2694 = vpop.f32.mrf.mxu0
    %v2695 = vadd.f32 0.0, %v2694
    %2696 = vmatmul.f32.gmra.mxu0 %v2489
    %v2697 = vpop.f32.mrf.mxu0
    %v2698 = vadd.f32 0.0, %v2697
    %2699 = vmatmul.f32.gmra.mxu0 %v2492
    %v2700 = vpop.f32.mrf.mxu0
    %v2701 = vadd.f32 0.0, %v2700
    %2702 = vmatmul.f32.gmra.mxu0 %v2495
    %v2703 = vpop.f32.mrf.mxu0
    %v2704 = vadd.f32 0.0, %v2703
    %2705 = vmatmul.f32.gmra.mxu0 %v2498
    %v2706 = vpop.f32.mrf.mxu0
    %v2707 = vadd.f32 0.0, %v2706
    %2708 = vmatmul.f32.gmra.mxu0 %v2501
    %v2709 = vpop.f32.mrf.mxu0
    %v2710 = vadd.f32 0.0, %v2709
    %2711 = vmatmul.f32.gmra.mxu0 %v2504
    %v2712 = vpop.f32.mrf.mxu0
    %v2713 = vadd.f32 0.0, %v2712
    %2714 = vmatmul.f32.gmra.mxu0 %v2507
    %v2715 = vpop.f32.mrf.mxu0
    %v2716 = vadd.f32 0.0, %v2715
    %2717 = vmatmul.f32.gmra.mxu0 %v2510
    %v2718 = vpop.f32.mrf.mxu0
    %v2719 = vadd.f32 0.0, %v2718
    %2720 = vmatmul.f32.gmra.mxu0 %v2513
    %v2721 = vpop.f32.mrf.mxu0
    %v2722 = vadd.f32 0.0, %v2721
    %2723 = vmatmul.f32.gmra.mxu0 %v2516
    %v2724 = vpop.f32.mrf.mxu0
    %v2725 = vadd.f32 0.0, %v2724
    %2726 = vmatmul.f32.gmra.mxu0 %v2519
    %v2727 = vpop.f32.mrf.mxu0
    %v2728 = vadd.f32 0.0, %v2727
    %2729 = vmatmul.f32.gmra.mxu0 %v2522
    %v2730 = vpop.f32.mrf.mxu0
    %v2731 = vadd.f32 0.0, %v2730
    %2732 = vmatmul.f32.gmra.mxu0 %v2525
    %v2733 = vpop.f32.mrf.mxu0
    %v2734 = vadd.f32 0.0, %v2733
    %2735 = vmatmul.f32.gmra.mxu0 %v2528
    %v2736 = vpop.f32.mrf.mxu0
    %v2737 = vadd.f32 0.0, %v2736
    %2738 = vmatmul.f32.gmra.mxu0 %v2531
    %v2739 = vpop.f32.mrf.mxu0
    %v2740 = vadd.f32 0.0, %v2739
    %2741 = vmatmul.f32.gmra.mxu0 %v2534
    %v2742 = vpop.f32.mrf.mxu0
    %v2743 = vadd.f32 0.0, %v2742
    %2744 = vmatmul.f32.gmra.mxu0 %v2537
    %v2745 = vpop.f32.mrf.mxu0
    %v2746 = vadd.f32 0.0, %v2745
    %2747 = vmatmul.f32.gmra.mxu0 %v2540
    %v2748 = vpop.f32.mrf.mxu0
    %v2749 = vadd.f32 0.0, %v2748
    %2750 = vmatmul.f32.gmra.mxu0 %v2543
    %v2751 = vpop.f32.mrf.mxu0
    %v2752 = vadd.f32 0.0, %v2751
    %2753 = vmatmul.f32.gmra.mxu0 %v2546
    %v2754 = vpop.f32.mrf.mxu0
    %v2755 = vadd.f32 0.0, %v2754
    %2756 = vmatmul.f32.gmra.mxu0 %v2549
    %v2757 = vpop.f32.mrf.mxu0
    %v2758 = vadd.f32 0.0, %v2757
    %2759 = vmatmul.f32.gmra.mxu0 %v2552
    %v2760 = vpop.f32.mrf.mxu0
    %v2761 = vadd.f32 0.0, %v2760
    %2762 = vmatmul.f32.gmra.mxu0 %v2555
    %v2763 = vpop.f32.mrf.mxu0
    %v2764 = vadd.f32 0.0, %v2763
    %2765 = vmatmul.f32.gmra.mxu0 %v2558
    %v2766 = vpop.f32.mrf.mxu0
    %v2767 = vadd.f32 0.0, %v2766
    %2768 = vmatmul.f32.gmra.mxu0 %v2561
    %v2769 = vpop.f32.mrf.mxu0
    %v2770 = vadd.f32 0.0, %v2769
    %2771 = vmatmul.f32.gmra.mxu0 %v2564
    %v2772 = vpop.f32.mrf.mxu0
    %v2773 = vadd.f32 0.0, %v2772
    %2774 = vmatmul.f32.gmra.mxu0 %v2567
    %v2775 = vpop.f32.mrf.mxu0
    %v2776 = vadd.f32 0.0, %v2775
    %2777 = vmatmul.f32.gmra.mxu0 %v2570
    %v2778 = vpop.f32.mrf.mxu0
    %v2779 = vadd.f32 0.0, %v2778
    %2780 = vmatmul.f32.gmra.mxu0 %v2573
    %v2781 = vpop.f32.mrf.mxu0
    %v2782 = vadd.f32 0.0, %v2781
    %2783 = vmatmul.f32.gmra.mxu0 %v2576
    %v2784 = vpop.f32.mrf.mxu0
    %v2785 = vadd.f32 0.0, %v2784
    %2786 = vdwg.mxu0
    %vm2787 = vcmask 523264
    %v2788 = vsel %vm2787, %v2596, 0.0
    %v2789 = vsel %vm2787, %v2599, 0.0
    %v2790 = vadd.f32 %v2788, %v2789
    %v2791 = vsel %vm2787, %v2602, 0.0
    %v2792 = vadd.f32 %v2790, %v2791
    %v2793 = vsel %vm2787, %v2605, 0.0
    %v2794 = vadd.f32 %v2792, %v2793
    %v2795 = vsel %vm2787, %v2608, 0.0
    %v2796 = vadd.f32 %v2794, %v2795
    %v2797 = vsel %vm2787, %v2611, 0.0
    %v2798 = vadd.f32 %v2796, %v2797
    %v2799 = vsel %vm2787, %v2614, 0.0
    %v2800 = vadd.f32 %v2798, %v2799
    %v2801 = vsel %vm2787, %v2617, 0.0
    %v2802 = vadd.f32 %v2800, %v2801
    %v2803 = vsel %vm2787, %v2620, 0.0
    %v2804 = vadd.f32 %v2802, %v2803
    %v2805 = vsel %vm2787, %v2623, 0.0
    %v2806 = vadd.f32 %v2804, %v2805
    %v2807 = vsel %vm2787, %v2626, 0.0
    %v2808 = vadd.f32 %v2806, %v2807
    %v2809 = vsel %vm2787, %v2629, 0.0
    %v2810 = vadd.f32 %v2808, %v2809
    %v2811 = vsel %vm2787, %v2632, 0.0
    %v2812 = vadd.f32 %v2810, %v2811
    %v2813 = vsel %vm2787, %v2635, 0.0
    %v2814 = vadd.f32 %v2812, %v2813
    %v2815 = vsel %vm2787, %v2638, 0.0
    %v2816 = vadd.f32 %v2814, %v2815
    %v2817 = vsel %vm2787, %v2641, 0.0
    %v2818 = vadd.f32 %v2816, %v2817
    %v2819 = vsel %vm2787, %v2644, 0.0
    %v2820 = vadd.f32 %v2818, %v2819
    %v2821 = vsel %vm2787, %v2647, 0.0
    %v2822 = vadd.f32 %v2820, %v2821
    %v2823 = vsel %vm2787, %v2650, 0.0
    %v2824 = vadd.f32 %v2822, %v2823
    %v2825 = vsel %vm2787, %v2653, 0.0
    %v2826 = vadd.f32 %v2824, %v2825
    %v2827 = vsel %vm2787, %v2656, 0.0
    %v2828 = vadd.f32 %v2826, %v2827
    %v2829 = vsel %vm2787, %v2659, 0.0
    %v2830 = vadd.f32 %v2828, %v2829
    %v2831 = vsel %vm2787, %v2662, 0.0
    %v2832 = vadd.f32 %v2830, %v2831
    %v2833 = vsel %vm2787, %v2665, 0.0
    %v2834 = vadd.f32 %v2832, %v2833
    %v2835 = vsel %vm2787, %v2668, 0.0
    %v2836 = vadd.f32 %v2834, %v2835
    %v2837 = vsel %vm2787, %v2671, 0.0
    %v2838 = vadd.f32 %v2836, %v2837
    %v2839 = vsel %vm2787, %v2674, 0.0
    %v2840 = vadd.f32 %v2838, %v2839
    %v2841 = vsel %vm2787, %v2677, 0.0
    %v2842 = vadd.f32 %v2840, %v2841
    %v2843 = vsel %vm2787, %v2680, 0.0
    %v2844 = vadd.f32 %v2842, %v2843
    %v2845 = vsel %vm2787, %v2683, 0.0
    %v2846 = vadd.f32 %v2844, %v2845
    %v2847 = vsel %vm2787, %v2686, 0.0
    %v2848 = vadd.f32 %v2846, %v2847
    %v2849 = vsel %vm2787, %v2689, 0.0
    %v2850 = vadd.f32 %v2848, %v2849
    %v2851 = vsel %vm2787, %v2692, 0.0
    %v2852 = vadd.f32 %v2850, %v2851
    %v2853 = vsel %vm2787, %v2695, 0.0
    %v2854 = vadd.f32 %v2852, %v2853
    %v2855 = vsel %vm2787, %v2698, 0.0
    %v2856 = vadd.f32 %v2854, %v2855
    %v2857 = vsel %vm2787, %v2701, 0.0
    %v2858 = vadd.f32 %v2856, %v2857
    %v2859 = vsel %vm2787, %v2704, 0.0
    %v2860 = vadd.f32 %v2858, %v2859
    %v2861 = vsel %vm2787, %v2707, 0.0
    %v2862 = vadd.f32 %v2860, %v2861
    %v2863 = vsel %vm2787, %v2710, 0.0
    %v2864 = vadd.f32 %v2862, %v2863
    %v2865 = vsel %vm2787, %v2713, 0.0
    %v2866 = vadd.f32 %v2864, %v2865
    %v2867 = vsel %vm2787, %v2716, 0.0
    %v2868 = vadd.f32 %v2866, %v2867
    %v2869 = vsel %vm2787, %v2719, 0.0
    %v2870 = vadd.f32 %v2868, %v2869
    %v2871 = vsel %vm2787, %v2722, 0.0
    %v2872 = vadd.f32 %v2870, %v2871
    %v2873 = vsel %vm2787, %v2725, 0.0
    %v2874 = vadd.f32 %v2872, %v2873
    %v2875 = vsel %vm2787, %v2728, 0.0
    %v2876 = vadd.f32 %v2874, %v2875
    %v2877 = vsel %vm2787, %v2731, 0.0
    %v2878 = vadd.f32 %v2876, %v2877
    %v2879 = vsel %vm2787, %v2734, 0.0
    %v2880 = vadd.f32 %v2878, %v2879
    %v2881 = vsel %vm2787, %v2737, 0.0
    %v2882 = vadd.f32 %v2880, %v2881
    %v2883 = vsel %vm2787, %v2740, 0.0
    %v2884 = vadd.f32 %v2882, %v2883
    %v2885 = vsel %vm2787, %v2743, 0.0
    %v2886 = vadd.f32 %v2884, %v2885
    %v2887 = vsel %vm2787, %v2746, 0.0
    %v2888 = vadd.f32 %v2886, %v2887
    %v2889 = vsel %vm2787, %v2749, 0.0
    %v2890 = vadd.f32 %v2888, %v2889
    %v2891 = vsel %vm2787, %v2752, 0.0
    %v2892 = vadd.f32 %v2890, %v2891
    %v2893 = vsel %vm2787, %v2755, 0.0
    %v2894 = vadd.f32 %v2892, %v2893
    %v2895 = vsel %vm2787, %v2758, 0.0
    %v2896 = vadd.f32 %v2894, %v2895
    %v2897 = vsel %vm2787, %v2761, 0.0
    %v2898 = vadd.f32 %v2896, %v2897
    %v2899 = vsel %vm2787, %v2764, 0.0
    %v2900 = vadd.f32 %v2898, %v2899
    %v2901 = vsel %vm2787, %v2767, 0.0
    %v2902 = vadd.f32 %v2900, %v2901
    %v2903 = vsel %vm2787, %v2770, 0.0
    %v2904 = vadd.f32 %v2902, %v2903
    %v2905 = vsel %vm2787, %v2773, 0.0
    %v2906 = vadd.f32 %v2904, %v2905
    %v2907 = vsel %vm2787, %v2776, 0.0
    %v2908 = vadd.f32 %v2906, %v2907
    %v2909 = vsel %vm2787, %v2779, 0.0
    %v2910 = vadd.f32 %v2908, %v2909
    %v2911 = vsel %vm2787, %v2782, 0.0
    %v2912 = vadd.f32 %v2910, %v2911
    %v2913 = vsel %vm2787, %v2785, 0.0
    %v2914 = vadd.f32 %v2912, %v2913
    %v2915 = vrot.slane %v2914, 4
    %v2916 = vadd.f32 %v2914, %v2915
    %v2917 = vrot.slane %v2916, 2
    %v2918 = vadd.f32 %v2916, %v2917
    %v2919 = vrot.slane %v2918, 1
    %v2920 = vadd.f32 %v2918, %v2919
    %v2921 = vmul.f32 %v2920, 0.001953125
    %v2922 = vmul.f32 %v2596, %v2596
    %v2923 = vmul.f32 %v2599, %v2599
    %v2924 = vmul.f32 %v2602, %v2602
    %v2925 = vmul.f32 %v2605, %v2605
    %v2926 = vmul.f32 %v2608, %v2608
    %v2927 = vmul.f32 %v2611, %v2611
    %v2928 = vmul.f32 %v2614, %v2614
    %v2929 = vmul.f32 %v2617, %v2617
    %v2930 = vmul.f32 %v2620, %v2620
    %v2931 = vmul.f32 %v2623, %v2623
    %v2932 = vmul.f32 %v2626, %v2626
    %v2933 = vmul.f32 %v2629, %v2629
    %v2934 = vmul.f32 %v2632, %v2632
    %v2935 = vmul.f32 %v2635, %v2635
    %v2936 = vmul.f32 %v2638, %v2638
    %v2937 = vmul.f32 %v2641, %v2641
    %v2938 = vmul.f32 %v2644, %v2644
    %v2939 = vmul.f32 %v2647, %v2647
    %v2940 = vmul.f32 %v2650, %v2650
    %v2941 = vmul.f32 %v2653, %v2653
    %v2942 = vmul.f32 %v2656, %v2656
    %v2943 = vmul.f32 %v2659, %v2659
    %v2944 = vmul.f32 %v2662, %v2662
    %v2945 = vmul.f32 %v2665, %v2665
    %v2946 = vmul.f32 %v2668, %v2668
    %v2947 = vmul.f32 %v2671, %v2671
    %v2948 = vmul.f32 %v2674, %v2674
    %v2949 = vmul.f32 %v2677, %v2677
    %v2950 = vmul.f32 %v2680, %v2680
    %v2951 = vmul.f32 %v2683, %v2683
    %v2952 = vmul.f32 %v2686, %v2686
    %v2953 = vmul.f32 %v2689, %v2689
    %v2954 = vmul.f32 %v2692, %v2692
    %v2955 = vmul.f32 %v2695, %v2695
    %v2956 = vmul.f32 %v2698, %v2698
    %v2957 = vmul.f32 %v2701, %v2701
    %v2958 = vmul.f32 %v2704, %v2704
    %v2959 = vmul.f32 %v2707, %v2707
    %v2960 = vmul.f32 %v2710, %v2710
    %v2961 = vmul.f32 %v2713, %v2713
    %v2962 = vmul.f32 %v2716, %v2716
    %v2963 = vmul.f32 %v2719, %v2719
    %v2964 = vmul.f32 %v2722, %v2722
    %v2965 = vmul.f32 %v2725, %v2725
    %v2966 = vmul.f32 %v2728, %v2728
    %v2967 = vmul.f32 %v2731, %v2731
    %v2968 = vmul.f32 %v2734, %v2734
    %v2969 = vmul.f32 %v2737, %v2737
    %v2970 = vmul.f32 %v2740, %v2740
    %v2971 = vmul.f32 %v2743, %v2743
    %v2972 = vmul.f32 %v2746, %v2746
    %v2973 = vmul.f32 %v2749, %v2749
    %v2974 = vmul.f32 %v2752, %v2752
    %v2975 = vmul.f32 %v2755, %v2755
    %v2976 = vmul.f32 %v2758, %v2758
    %v2977 = vmul.f32 %v2761, %v2761
    %v2978 = vmul.f32 %v2764, %v2764
    %v2979 = vmul.f32 %v2767, %v2767
    %v2980 = vmul.f32 %v2770, %v2770
    %v2981 = vmul.f32 %v2773, %v2773
    %v2982 = vmul.f32 %v2776, %v2776
    %v2983 = vmul.f32 %v2779, %v2779
    %v2984 = vmul.f32 %v2782, %v2782
    %v2985 = vmul.f32 %v2785, %v2785
    %v2986 = vsel %vm2787, %v2922, 0.0
    %v2987 = vsel %vm2787, %v2923, 0.0
    %v2988 = vadd.f32 %v2986, %v2987
    %v2989 = vsel %vm2787, %v2924, 0.0
    %v2990 = vadd.f32 %v2988, %v2989
    %v2991 = vsel %vm2787, %v2925, 0.0
    %v2992 = vadd.f32 %v2990, %v2991
    %v2993 = vsel %vm2787, %v2926, 0.0
    %v2994 = vadd.f32 %v2992, %v2993
    %v2995 = vsel %vm2787, %v2927, 0.0
    %v2996 = vadd.f32 %v2994, %v2995
    %v2997 = vsel %vm2787, %v2928, 0.0
    %v2998 = vadd.f32 %v2996, %v2997
    %v2999 = vsel %vm2787, %v2929, 0.0
    %v3000 = vadd.f32 %v2998, %v2999
    %v3001 = vsel %vm2787, %v2930, 0.0
    %v3002 = vadd.f32 %v3000, %v3001
    %v3003 = vsel %vm2787, %v2931, 0.0
    %v3004 = vadd.f32 %v3002, %v3003
    %v3005 = vsel %vm2787, %v2932, 0.0
    %v3006 = vadd.f32 %v3004, %v3005
    %v3007 = vsel %vm2787, %v2933, 0.0
    %v3008 = vadd.f32 %v3006, %v3007
    %v3009 = vsel %vm2787, %v2934, 0.0
    %v3010 = vadd.f32 %v3008, %v3009
    %v3011 = vsel %vm2787, %v2935, 0.0
    %v3012 = vadd.f32 %v3010, %v3011
    %v3013 = vsel %vm2787, %v2936, 0.0
    %v3014 = vadd.f32 %v3012, %v3013
    %v3015 = vsel %vm2787, %v2937, 0.0
    %v3016 = vadd.f32 %v3014, %v3015
    %v3017 = vsel %vm2787, %v2938, 0.0
    %v3018 = vadd.f32 %v3016, %v3017
    %v3019 = vsel %vm2787, %v2939, 0.0
    %v3020 = vadd.f32 %v3018, %v3019
    %v3021 = vsel %vm2787, %v2940, 0.0
    %v3022 = vadd.f32 %v3020, %v3021
    %v3023 = vsel %vm2787, %v2941, 0.0
    %v3024 = vadd.f32 %v3022, %v3023
    %v3025 = vsel %vm2787, %v2942, 0.0
    %v3026 = vadd.f32 %v3024, %v3025
    %v3027 = vsel %vm2787, %v2943, 0.0
    %v3028 = vadd.f32 %v3026, %v3027
    %v3029 = vsel %vm2787, %v2944, 0.0
    %v3030 = vadd.f32 %v3028, %v3029
    %v3031 = vsel %vm2787, %v2945, 0.0
    %v3032 = vadd.f32 %v3030, %v3031
    %v3033 = vsel %vm2787, %v2946, 0.0
    %v3034 = vadd.f32 %v3032, %v3033
    %v3035 = vsel %vm2787, %v2947, 0.0
    %v3036 = vadd.f32 %v3034, %v3035
    %v3037 = vsel %vm2787, %v2948, 0.0
    %v3038 = vadd.f32 %v3036, %v3037
    %v3039 = vsel %vm2787, %v2949, 0.0
    %v3040 = vadd.f32 %v3038, %v3039
    %v3041 = vsel %vm2787, %v2950, 0.0
    %v3042 = vadd.f32 %v3040, %v3041
    %v3043 = vsel %vm2787, %v2951, 0.0
    %v3044 = vadd.f32 %v3042, %v3043
    %v3045 = vsel %vm2787, %v2952, 0.0
    %v3046 = vadd.f32 %v3044, %v3045
    %v3047 = vsel %vm2787, %v2953, 0.0
    %v3048 = vadd.f32 %v3046, %v3047
    %v3049 = vsel %vm2787, %v2954, 0.0
    %v3050 = vadd.f32 %v3048, %v3049
    %v3051 = vsel %vm2787, %v2955, 0.0
    %v3052 = vadd.f32 %v3050, %v3051
    %v3053 = vsel %vm2787, %v2956, 0.0
    %v3054 = vadd.f32 %v3052, %v3053
    %v3055 = vsel %vm2787, %v2957, 0.0
    %v3056 = vadd.f32 %v3054, %v3055
    %v3057 = vsel %vm2787, %v2958, 0.0
    %v3058 = vadd.f32 %v3056, %v3057
    %v3059 = vsel %vm2787, %v2959, 0.0
    %v3060 = vadd.f32 %v3058, %v3059
    %v3061 = vsel %vm2787, %v2960, 0.0
    %v3062 = vadd.f32 %v3060, %v3061
    %v3063 = vsel %vm2787, %v2961, 0.0
    %v3064 = vadd.f32 %v3062, %v3063
    %v3065 = vsel %vm2787, %v2962, 0.0
    %v3066 = vadd.f32 %v3064, %v3065
    %v3067 = vsel %vm2787, %v2963, 0.0
    %v3068 = vadd.f32 %v3066, %v3067
    %v3069 = vsel %vm2787, %v2964, 0.0
    %v3070 = vadd.f32 %v3068, %v3069
    %v3071 = vsel %vm2787, %v2965, 0.0
    %v3072 = vadd.f32 %v3070, %v3071
    %v3073 = vsel %vm2787, %v2966, 0.0
    %v3074 = vadd.f32 %v3072, %v3073
    %v3075 = vsel %vm2787, %v2967, 0.0
    %v3076 = vadd.f32 %v3074, %v3075
    %v3077 = vsel %vm2787, %v2968, 0.0
    %v3078 = vadd.f32 %v3076, %v3077
    %v3079 = vsel %vm2787, %v2969, 0.0
    %v3080 = vadd.f32 %v3078, %v3079
    %v3081 = vsel %vm2787, %v2970, 0.0
    %v3082 = vadd.f32 %v3080, %v3081
    %v3083 = vsel %vm2787, %v2971, 0.0
    %v3084 = vadd.f32 %v3082, %v3083
    %v3085 = vsel %vm2787, %v2972, 0.0
    %v3086 = vadd.f32 %v3084, %v3085
    %v3087 = vsel %vm2787, %v2973, 0.0
    %v3088 = vadd.f32 %v3086, %v3087
    %v3089 = vsel %vm2787, %v2974, 0.0
    %v3090 = vadd.f32 %v3088, %v3089
    %v3091 = vsel %vm2787, %v2975, 0.0
    %v3092 = vadd.f32 %v3090, %v3091
    %v3093 = vsel %vm2787, %v2976, 0.0
    %v3094 = vadd.f32 %v3092, %v3093
    %v3095 = vsel %vm2787, %v2977, 0.0
    %v3096 = vadd.f32 %v3094, %v3095
    %v3097 = vsel %vm2787, %v2978, 0.0
    %v3098 = vadd.f32 %v3096, %v3097
    %v3099 = vsel %vm2787, %v2979, 0.0
    %v3100 = vadd.f32 %v3098, %v3099
    %v3101 = vsel %vm2787, %v2980, 0.0
    %v3102 = vadd.f32 %v3100, %v3101
    %v3103 = vsel %vm2787, %v2981, 0.0
    %v3104 = vadd.f32 %v3102, %v3103
    %v3105 = vsel %vm2787, %v2982, 0.0
    %v3106 = vadd.f32 %v3104, %v3105
    %v3107 = vsel %vm2787, %v2983, 0.0
    %v3108 = vadd.f32 %v3106, %v3107
    %v3109 = vsel %vm2787, %v2984, 0.0
    %v3110 = vadd.f32 %v3108, %v3109
    %v3111 = vsel %vm2787, %v2985, 0.0
    %v3112 = vadd.f32 %v3110, %v3111
    %v3113 = vrot.slane %v3112, 4
    %v3114 = vadd.f32 %v3112, %v3113
    %v3115 = vrot.slane %v3114, 2
    %v3116 = vadd.f32 %v3114, %v3115
    %v3117 = vrot.slane %v3116, 1
    %v3118 = vadd.f32 %v3116, %v3117
    %v3119 = vmul.f32 %v3118, 0.001953125
    %v3120 = vmul.f32 %v2921, %v2921
    %v3121 = vsub.f32 %v3119, %v3120
    %v3122 = vmax.f32 %v3121, 0.0
    %v3123 = vsub.f32 %v2596, %v2921
    %v3124 = vsub.f32 %v2599, %v2921
    %v3125 = vsub.f32 %v2602, %v2921
    %v3126 = vsub.f32 %v2605, %v2921
    %v3127 = vsub.f32 %v2608, %v2921
    %v3128 = vsub.f32 %v2611, %v2921
    %v3129 = vsub.f32 %v2614, %v2921
    %v3130 = vsub.f32 %v2617, %v2921
    %v3131 = vsub.f32 %v2620, %v2921
    %v3132 = vsub.f32 %v2623, %v2921
    %v3133 = vsub.f32 %v2626, %v2921
    %v3134 = vsub.f32 %v2629, %v2921
    %v3135 = vsub.f32 %v2632, %v2921
    %v3136 = vsub.f32 %v2635, %v2921
    %v3137 = vsub.f32 %v2638, %v2921
    %v3138 = vsub.f32 %v2641, %v2921
    %v3139 = vsub.f32 %v2644, %v2921
    %v3140 = vsub.f32 %v2647, %v2921
    %v3141 = vsub.f32 %v2650, %v2921
    %v3142 = vsub.f32 %v2653, %v2921
    %v3143 = vsub.f32 %v2656, %v2921
    %v3144 = vsub.f32 %v2659, %v2921
    %v3145 = vsub.f32 %v2662, %v2921
    %v3146 = vsub.f32 %v2665, %v2921
    %v3147 = vsub.f32 %v2668, %v2921
    %v3148 = vsub.f32 %v2671, %v2921
    %v3149 = vsub.f32 %v2674, %v2921
    %v3150 = vsub.f32 %v2677, %v2921
    %v3151 = vsub.f32 %v2680, %v2921
    %v3152 = vsub.f32 %v2683, %v2921
    %v3153 = vsub.f32 %v2686, %v2921
    %v3154 = vsub.f32 %v2689, %v2921
    %v3155 = vsub.f32 %v2692, %v2921
    %v3156 = vsub.f32 %v2695, %v2921
    %v3157 = vsub.f32 %v2698, %v2921
    %v3158 = vsub.f32 %v2701, %v2921
    %v3159 = vsub.f32 %v2704, %v2921
    %v3160 = vsub.f32 %v2707, %v2921
    %v3161 = vsub.f32 %v2710, %v2921
    %v3162 = vsub.f32 %v2713, %v2921
    %v3163 = vsub.f32 %v2716, %v2921
    %v3164 = vsub.f32 %v2719, %v2921
    %v3165 = vsub.f32 %v2722, %v2921
    %v3166 = vsub.f32 %v2725, %v2921
    %v3167 = vsub.f32 %v2728, %v2921
    %v3168 = vsub.f32 %v2731, %v2921
    %v3169 = vsub.f32 %v2734, %v2921
    %v3170 = vsub.f32 %v2737, %v2921
    %v3171 = vsub.f32 %v2740, %v2921
    %v3172 = vsub.f32 %v2743, %v2921
    %v3173 = vsub.f32 %v2746, %v2921
    %v3174 = vsub.f32 %v2749, %v2921
    %v3175 = vsub.f32 %v2752, %v2921
    %v3176 = vsub.f32 %v2755, %v2921
    %v3177 = vsub.f32 %v2758, %v2921
    %v3178 = vsub.f32 %v2761, %v2921
    %v3179 = vsub.f32 %v2764, %v2921
    %v3180 = vsub.f32 %v2767, %v2921
    %v3181 = vsub.f32 %v2770, %v2921
    %v3182 = vsub.f32 %v2773, %v2921
    %v3183 = vsub.f32 %v2776, %v2921
    %v3184 = vsub.f32 %v2779, %v2921
    %v3185 = vsub.f32 %v2782, %v2921
    %v3186 = vsub.f32 %v2785, %v2921
    %v3187 = vadd.f32 %v3122, 1e-05
    %v3188 = vrsqrt.pop %v3187
    %v3189 = vmul.f32 %v3188, %v3187
    %v3190 = vmul.f32 %v3189, %v3188
    %v3191 = vmul.f32 0.5, %v3190
    %v3192 = vsub.f32 1.5, %v3191
    %v3193 = vmul.f32 %v3188, %v3192
    %vm3194 = vweird.f32 %v3187
    %vm3195 = vweird.f32 %v3188
    %vm3196 = vmor %vm3194, %vm3195
    %v3197 = vsel %vm3196, %v3188, %v3193
    %v3198 = vmul.f32 %v3123, %v3197
    %v3199 = vmul.f32 %v3124, %v3197
    %v3200 = vmul.f32 %v3125, %v3197
    %v3201 = vmul.f32 %v3126, %v3197
    %v3202 = vmul.f32 %v3127, %v3197
    %v3203 = vmul.f32 %v3128, %v3197
    %v3204 = vmul.f32 %v3129, %v3197
    %v3205 = vmul.f32 %v3130, %v3197
    %v3206 = vmul.f32 %v3131, %v3197
    %v3207 = vmul.f32 %v3132, %v3197
    %v3208 = vmul.f32 %v3133, %v3197
    %v3209 = vmul.f32 %v3134, %v3197
    %v3210 = vmul.f32 %v3135, %v3197
    %v3211 = vmul.f32 %v3136, %v3197
    %v3212 = vmul.f32 %v3137, %v3197
    %v3213 = vmul.f32 %v3138, %v3197
    %v3214 = vmul.f32 %v3139, %v3197
    %v3215 = vmul.f32 %v3140, %v3197
    %v3216 = vmul.f32 %v3141, %v3197
    %v3217 = vmul.f32 %v3142, %v3197
    %v3218 = vmul.f32 %v3143, %v3197
    %v3219 = vmul.f32 %v3144, %v3197
    %v3220 = vmul.f32 %v3145, %v3197
    %v3221 = vmul.f32 %v3146, %v3197
    %v3222 = vmul.f32 %v3147, %v3197
    %v3223 = vmul.f32 %v3148, %v3197
    %v3224 = vmul.f32 %v3149, %v3197
    %v3225 = vmul.f32 %v3150, %v3197
    %v3226 = vmul.f32 %v3151, %v3197
    %v3227 = vmul.f32 %v3152, %v3197
    %v3228 = vmul.f32 %v3153, %v3197
    %v3229 = vmul.f32 %v3154, %v3197
    %v3230 = vmul.f32 %v3155, %v3197
    %v3231 = vmul.f32 %v3156, %v3197
    %v3232 = vmul.f32 %v3157, %v3197
    %v3233 = vmul.f32 %v3158, %v3197
    %v3234 = vmul.f32 %v3159, %v3197
    %v3235 = vmul.f32 %v3160, %v3197
    %v3236 = vmul.f32 %v3161, %v3197
    %v3237 = vmul.f32 %v3162, %v3197
    %v3238 = vmul.f32 %v3163, %v3197
    %v3239 = vmul.f32 %v3164, %v3197
    %v3240 = vmul.f32 %v3165, %v3197
    %v3241 = vmul.f32 %v3166, %v3197
    %v3242 = vmul.f32 %v3167, %v3197
    %v3243 = vmul.f32 %v3168, %v3197
    %v3244 = vmul.f32 %v3169, %v3197
    %v3245 = vmul.f32 %v3170, %v3197
    %v3246 = vmul.f32 %v3171, %v3197
    %v3247 = vmul.f32 %v3172, %v3197
    %v3248 = vmul.f32 %v3173, %v3197
    %v3249 = vmul.f32 %v3174, %v3197
    %v3250 = vmul.f32 %v3175, %v3197
    %v3251 = vmul.f32 %v3176, %v3197
    %v3252 = vmul.f32 %v3177, %v3197
    %v3253 = vmul.f32 %v3178, %v3197
    %v3254 = vmul.f32 %v3179, %v3197
    %v3255 = vmul.f32 %v3180, %v3197
    %v3256 = vmul.f32 %v3181, %v3197
    %v3257 = vmul.f32 %v3182, %v3197
    %v3258 = vmul.f32 %v3183, %v3197
    %v3259 = vmul.f32 %v3184, %v3197
    %v3260 = vmul.f32 %v3185, %v3197
    %v3261 = vmul.f32 %v3186, %v3197
    %v3262 = vperm.slane %v92, 4
    %v3263 = vmul.f32 %v3198, %v3262
    %v3264 = vmul.f32 %v3199, %v3262
    %v3265 = vmul.f32 %v3200, %v3262
    %v3266 = vmul.f32 %v3201, %v3262
    %v3267 = vmul.f32 %v3202, %v3262
    %v3268 = vmul.f32 %v3203, %v3262
    %v3269 = vmul.f32 %v3204, %v3262
    %v3270 = vmul.f32 %v3205, %v3262
    %v3271 = vmul.f32 %v3206, %v3262
    %v3272 = vmul.f32 %v3207, %v3262
    %v3273 = vmul.f32 %v3208, %v3262
    %v3274 = vmul.f32 %v3209, %v3262
    %v3275 = vmul.f32 %v3210, %v3262
    %v3276 = vmul.f32 %v3211, %v3262
    %v3277 = vmul.f32 %v3212, %v3262
    %v3278 = vmul.f32 %v3213, %v3262
    %v3279 = vmul.f32 %v3214, %v3262
    %v3280 = vmul.f32 %v3215, %v3262
    %v3281 = vmul.f32 %v3216, %v3262
    %v3282 = vmul.f32 %v3217, %v3262
    %v3283 = vmul.f32 %v3218, %v3262
    %v3284 = vmul.f32 %v3219, %v3262
    %v3285 = vmul.f32 %v3220, %v3262
    %v3286 = vmul.f32 %v3221, %v3262
    %v3287 = vmul.f32 %v3222, %v3262
    %v3288 = vmul.f32 %v3223, %v3262
    %v3289 = vmul.f32 %v3224, %v3262
    %v3290 = vmul.f32 %v3225, %v3262
    %v3291 = vmul.f32 %v3226, %v3262
    %v3292 = vmul.f32 %v3227, %v3262
    %v3293 = vmul.f32 %v3228, %v3262
    %v3294 = vmul.f32 %v3229, %v3262
    %v3295 = vmul.f32 %v3230, %v3262
    %v3296 = vmul.f32 %v3231, %v3262
    %v3297 = vmul.f32 %v3232, %v3262
    %v3298 = vmul.f32 %v3233, %v3262
    %v3299 = vmul.f32 %v3234, %v3262
    %v3300 = vmul.f32 %v3235, %v3262
    %v3301 = vmul.f32 %v3236, %v3262
    %v3302 = vmul.f32 %v3237, %v3262
    %v3303 = vmul.f32 %v3238, %v3262
    %v3304 = vmul.f32 %v3239, %v3262
    %v3305 = vmul.f32 %v3240, %v3262
    %v3306 = vmul.f32 %v3241, %v3262
    %v3307 = vmul.f32 %v3242, %v3262
    %v3308 = vmul.f32 %v3243, %v3262
    %v3309 = vmul.f32 %v3244, %v3262
    %v3310 = vmul.f32 %v3245, %v3262
    %v3311 = vmul.f32 %v3246, %v3262
    %v3312 = vmul.f32 %v3247, %v3262
    %v3313 = vmul.f32 %v3248, %v3262
    %v3314 = vmul.f32 %v3249, %v3262
    %v3315 = vmul.f32 %v3250, %v3262
    %v3316 = vmul.f32 %v3251, %v3262
    %v3317 = vmul.f32 %v3252, %v3262
    %v3318 = vmul.f32 %v3253, %v3262
    %v3319 = vmul.f32 %v3254, %v3262
    %v3320 = vmul.f32 %v3255, %v3262
    %v3321 = vmul.f32 %v3256, %v3262
    %v3322 = vmul.f32 %v3257, %v3262
    %v3323 = vmul.f32 %v3258, %v3262
    %v3324 = vmul.f32 %v3259, %v3262
    %v3325 = vmul.f32 %v3260, %v3262
    %v3326 = vmul.f32 %v3261, %v3262
    %v3327 = vperm.slane %v92, 5
    %v3328 = vadd.f32 %v3263, %v3327
    %v3329 = vadd.f32 %v3264, %v3327
    %v3330 = vadd.f32 %v3265, %v3327
    %v3331 = vadd.f32 %v3266, %v3327
    %v3332 = vadd.f32 %v3267, %v3327
    %v3333 = vadd.f32 %v3268, %v3327
    %v3334 = vadd.f32 %v3269, %v3327
    %v3335 = vadd.f32 %v3270, %v3327
    %v3336 = vadd.f32 %v3271, %v3327
    %v3337 = vadd.f32 %v3272, %v3327
    %v3338 = vadd.f32 %v3273, %v3327
    %v3339 = vadd.f32 %v3274, %v3327
    %v3340 = vadd.f32 %v3275, %v3327
    %v3341 = vadd.f32 %v3276, %v3327
    %v3342 = vadd.f32 %v3277, %v3327
    %v3343 = vadd.f32 %v3278, %v3327
    %v3344 = vadd.f32 %v3279, %v3327
    %v3345 = vadd.f32 %v3280, %v3327
    %v3346 = vadd.f32 %v3281, %v3327
    %v3347 = vadd.f32 %v3282, %v3327
    %v3348 = vadd.f32 %v3283, %v3327
    %v3349 = vadd.f32 %v3284, %v3327
    %v3350 = vadd.f32 %v3285, %v3327
    %v3351 = vadd.f32 %v3286, %v3327
    %v3352 = vadd.f32 %v3287, %v3327
    %v3353 = vadd.f32 %v3288, %v3327
    %v3354 = vadd.f32 %v3289, %v3327
    %v3355 = vadd.f32 %v3290, %v3327
    %v3356 = vadd.f32 %v3291, %v3327
    %v3357 = vadd.f32 %v3292, %v3327
    %v3358 = vadd.f32 %v3293, %v3327
    %v3359 = vadd.f32 %v3294, %v3327
    %v3360 = vadd.f32 %v3295, %v3327
    %v3361 = vadd.f32 %v3296, %v3327
    %v3362 = vadd.f32 %v3297, %v3327
    %v3363 = vadd.f32 %v3298, %v3327
    %v3364 = vadd.f32 %v3299, %v3327
    %v3365 = vadd.f32 %v3300, %v3327
    %v3366 = vadd.f32 %v3301, %v3327
    %v3367 = vadd.f32 %v3302, %v3327
    %v3368 = vadd.f32 %v3303, %v3327
    %v3369 = vadd.f32 %v3304, %v3327
    %v3370 = vadd.f32 %v3305, %v3327
    %v3371 = vadd.f32 %v3306, %v3327
    %v3372 = vadd.f32 %v3307, %v3327
    %v3373 = vadd.f32 %v3308, %v3327
    %v3374 = vadd.f32 %v3309, %v3327
    %v3375 = vadd.f32 %v3310, %v3327
    %v3376 = vadd.f32 %v3311, %v3327
    %v3377 = vadd.f32 %v3312, %v3327
    %v3378 = vadd.f32 %v3313, %v3327
    %v3379 = vadd.f32 %v3314, %v3327
    %v3380 = vadd.f32 %v3315, %v3327
    %v3381 = vadd.f32 %v3316, %v3327
    %v3382 = vadd.f32 %v3317, %v3327
    %v3383 = vadd.f32 %v3318, %v3327
    %v3384 = vadd.f32 %v3319, %v3327
    %v3385 = vadd.f32 %v3320, %v3327
    %v3386 = vadd.f32 %v3321, %v3327
    %v3387 = vadd.f32 %v3322, %v3327
    %v3388 = vadd.f32 %v3323, %v3327
    %v3389 = vadd.f32 %v3324, %v3327
    %v3390 = vadd.f32 %v3325, %v3327
    %v3391 = vadd.f32 %v3326, %v3327
    %v3392 = vmax.f32 %v3328, 0.0
    %v3393 = vmax.f32 %v3329, 0.0
    %v3394 = vmax.f32 %v3330, 0.0
    %v3395 = vmax.f32 %v3331, 0.0
    %v3396 = vmax.f32 %v3332, 0.0
    %v3397 = vmax.f32 %v3333, 0.0
    %v3398 = vmax.f32 %v3334, 0.0
    %v3399 = vmax.f32 %v3335, 0.0
    %v3400 = vmax.f32 %v3336, 0.0
    %v3401 = vmax.f32 %v3337, 0.0
    %v3402 = vmax.f32 %v3338, 0.0
    %v3403 = vmax.f32 %v3339, 0.0
    %v3404 = vmax.f32 %v3340, 0.0
    %v3405 = vmax.f32 %v3341, 0.0
    %v3406 = vmax.f32 %v3342, 0.0
    %v3407 = vmax.f32 %v3343, 0.0
    %v3408 = vmax.f32 %v3344, 0.0
    %v3409 = vmax.f32 %v3345, 0.0
    %v3410 = vmax.f32 %v3346, 0.0
    %v3411 = vmax.f32 %v3347, 0.0
    %v3412 = vmax.f32 %v3348, 0.0
    %v3413 = vmax.f32 %v3349, 0.0
    %v3414 = vmax.f32 %v3350, 0.0
    %v3415 = vmax.f32 %v3351, 0.0
    %v3416 = vmax.f32 %v3352, 0.0
    %v3417 = vmax.f32 %v3353, 0.0
    %v3418 = vmax.f32 %v3354, 0.0
    %v3419 = vmax.f32 %v3355, 0.0
    %v3420 = vmax.f32 %v3356, 0.0
    %v3421 = vmax.f32 %v3357, 0.0
    %v3422 = vmax.f32 %v3358, 0.0
    %v3423 = vmax.f32 %v3359, 0.0
    %v3424 = vmax.f32 %v3360, 0.0
    %v3425 = vmax.f32 %v3361, 0.0
    %v3426 = vmax.f32 %v3362, 0.0
    %v3427 = vmax.f32 %v3363, 0.0
    %v3428 = vmax.f32 %v3364, 0.0
    %v3429 = vmax.f32 %v3365, 0.0
    %v3430 = vmax.f32 %v3366, 0.0
    %v3431 = vmax.f32 %v3367, 0.0
    %v3432 = vmax.f32 %v3368, 0.0
    %v3433 = vmax.f32 %v3369, 0.0
    %v3434 = vmax.f32 %v3370, 0.0
    %v3435 = vmax.f32 %v3371, 0.0
    %v3436 = vmax.f32 %v3372, 0.0
    %v3437 = vmax.f32 %v3373, 0.0
    %v3438 = vmax.f32 %v3374, 0.0
    %v3439 = vmax.f32 %v3375, 0.0
    %v3440 = vmax.f32 %v3376, 0.0
    %v3441 = vmax.f32 %v3377, 0.0
    %v3442 = vmax.f32 %v3378, 0.0
    %v3443 = vmax.f32 %v3379, 0.0
    %v3444 = vmax.f32 %v3380, 0.0
    %v3445 = vmax.f32 %v3381, 0.0
    %v3446 = vmax.f32 %v3382, 0.0
    %v3447 = vmax.f32 %v3383, 0.0
    %v3448 = vmax.f32 %v3384, 0.0
    %v3449 = vmax.f32 %v3385, 0.0
    %v3450 = vmax.f32 %v3386, 0.0
    %v3451 = vmax.f32 %v3387, 0.0
    %v3452 = vmax.f32 %v3388, 0.0
    %v3453 = vmax.f32 %v3389, 0.0
    %v3454 = vmax.f32 %v3390, 0.0
    %v3455 = vmax.f32 %v3391, 0.0
    %v3456 = vsel %vm2787, %v3392, 0.0
    %3457 = vadd.xlane.f32.xlu0 %v3456
    %v3458 = vpop.xlane.xlu0 %3457
    %v3459 = vsel %vm2787, %v3393, 0.0
    %3460 = vadd.xlane.f32.xlu0 %v3459
    %v3461 = vpop.xlane.xlu0 %3460
    %v3462 = vsel %vm2787, %v3394, 0.0
    %3463 = vadd.xlane.f32.xlu0 %v3462
    %v3464 = vpop.xlane.xlu0 %3463
    %v3465 = vsel %vm2787, %v3395, 0.0
    %3466 = vadd.xlane.f32.xlu0 %v3465
    %v3467 = vpop.xlane.xlu0 %3466
    %v3468 = vsel %vm2787, %v3396, 0.0
    %3469 = vadd.xlane.f32.xlu0 %v3468
    %v3470 = vpop.xlane.xlu0 %3469
    %v3471 = vsel %vm2787, %v3397, 0.0
    %3472 = vadd.xlane.f32.xlu0 %v3471
    %v3473 = vpop.xlane.xlu0 %3472
    %v3474 = vsel %vm2787, %v3398, 0.0
    %3475 = vadd.xlane.f32.xlu0 %v3474
    %v3476 = vpop.xlane.xlu0 %3475
    %v3477 = vsel %vm2787, %v3399, 0.0
    %3478 = vadd.xlane.f32.xlu0 %v3477
    %v3479 = vpop.xlane.xlu0 %3478
    %v3480 = vsel %vm2787, %v3400, 0.0
    %3481 = vadd.xlane.f32.xlu0 %v3480
    %v3482 = vpop.xlane.xlu0 %3481
    %v3483 = vsel %vm2787, %v3401, 0.0
    %3484 = vadd.xlane.f32.xlu0 %v3483
    %v3485 = vpop.xlane.xlu0 %3484
    %v3486 = vsel %vm2787, %v3402, 0.0
    %3487 = vadd.xlane.f32.xlu0 %v3486
    %v3488 = vpop.xlane.xlu0 %3487
    %v3489 = vsel %vm2787, %v3403, 0.0
    %3490 = vadd.xlane.f32.xlu0 %v3489
    %v3491 = vpop.xlane.xlu0 %3490
    %v3492 = vsel %vm2787, %v3404, 0.0
    %3493 = vadd.xlane.f32.xlu0 %v3492
    %v3494 = vpop.xlane.xlu0 %3493
    %v3495 = vsel %vm2787, %v3405, 0.0
    %3496 = vadd.xlane.f32.xlu0 %v3495
    %v3497 = vpop.xlane.xlu0 %3496
    %v3498 = vsel %vm2787, %v3406, 0.0
    %3499 = vadd.xlane.f32.xlu0 %v3498
    %v3500 = vpop.xlane.xlu0 %3499
    %v3501 = vsel %vm2787, %v3407, 0.0
    %3502 = vadd.xlane.f32.xlu0 %v3501
    %v3503 = vpop.xlane.xlu0 %3502
    %v3504 = vsel %vm2787, %v3408, 0.0
    %3505 = vadd.xlane.f32.xlu0 %v3504
    %v3506 = vpop.xlane.xlu0 %3505
    %v3507 = vsel %vm2787, %v3409, 0.0
    %3508 = vadd.xlane.f32.xlu0 %v3507
    %v3509 = vpop.xlane.xlu0 %3508
    %v3510 = vsel %vm2787, %v3410, 0.0
    %3511 = vadd.xlane.f32.xlu0 %v3510
    %v3512 = vpop.xlane.xlu0 %3511
    %v3513 = vsel %vm2787, %v3411, 0.0
    %3514 = vadd.xlane.f32.xlu0 %v3513
    %v3515 = vpop.xlane.xlu0 %3514
    %v3516 = vsel %vm2787, %v3412, 0.0
    %3517 = vadd.xlane.f32.xlu0 %v3516
    %v3518 = vpop.xlane.xlu0 %3517
    %v3519 = vsel %vm2787, %v3413, 0.0
    %3520 = vadd.xlane.f32.xlu0 %v3519
    %v3521 = vpop.xlane.xlu0 %3520
    %v3522 = vsel %vm2787, %v3414, 0.0
    %3523 = vadd.xlane.f32.xlu0 %v3522
    %v3524 = vpop.xlane.xlu0 %3523
    %v3525 = vsel %vm2787, %v3415, 0.0
    %3526 = vadd.xlane.f32.xlu0 %v3525
    %v3527 = vpop.xlane.xlu0 %3526
    %v3528 = vsel %vm2787, %v3416, 0.0
    %3529 = vadd.xlane.f32.xlu0 %v3528
    %v3530 = vpop.xlane.xlu0 %3529
    %v3531 = vsel %vm2787, %v3417, 0.0
    %3532 = vadd.xlane.f32.xlu0 %v3531
    %v3533 = vpop.xlane.xlu0 %3532
    %v3534 = vsel %vm2787, %v3418, 0.0
    %3535 = vadd.xlane.f32.xlu0 %v3534
    %v3536 = vpop.xlane.xlu0 %3535
    %v3537 = vsel %vm2787, %v3419, 0.0
    %3538 = vadd.xlane.f32.xlu0 %v3537
    %v3539 = vpop.xlane.xlu0 %3538
    %v3540 = vsel %vm2787, %v3420, 0.0
    %3541 = vadd.xlane.f32.xlu0 %v3540
    %v3542 = vpop.xlane.xlu0 %3541
    %v3543 = vsel %vm2787, %v3421, 0.0
    %3544 = vadd.xlane.f32.xlu0 %v3543
    %v3545 = vpop.xlane.xlu0 %3544
    %v3546 = vsel %vm2787, %v3422, 0.0
    %3547 = vadd.xlane.f32.xlu0 %v3546
    %v3548 = vpop.xlane.xlu0 %3547
    %v3549 = vsel %vm2787, %v3423, 0.0
    %3550 = vadd.xlane.f32.xlu0 %v3549
    %v3551 = vpop.xlane.xlu0 %3550
    %v3552 = vsel %vm2787, %v3424, 0.0
    %3553 = vadd.xlane.f32.xlu0 %v3552
    %v3554 = vpop.xlane.xlu0 %3553
    %v3555 = vsel %vm2787, %v3425, 0.0
    %3556 = vadd.xlane.f32.xlu0 %v3555
    %v3557 = vpop.xlane.xlu0 %3556
    %v3558 = vsel %vm2787, %v3426, 0.0
    %3559 = vadd.xlane.f32.xlu0 %v3558
    %v3560 = vpop.xlane.xlu0 %3559
    %v3561 = vsel %vm2787, %v3427, 0.0
    %3562 = vadd.xlane.f32.xlu0 %v3561
    %v3563 = vpop.xlane.xlu0 %3562
    %v3564 = vsel %vm2787, %v3428, 0.0
    %3565 = vadd.xlane.f32.xlu0 %v3564
    %v3566 = vpop.xlane.xlu0 %3565
    %v3567 = vsel %vm2787, %v3429, 0.0
    %3568 = vadd.xlane.f32.xlu0 %v3567
    %v3569 = vpop.xlane.xlu0 %3568
    %v3570 = vsel %vm2787, %v3430, 0.0
    %3571 = vadd.xlane.f32.xlu0 %v3570
    %v3572 = vpop.xlane.xlu0 %3571
    %v3573 = vsel %vm2787, %v3431, 0.0
    %3574 = vadd.xlane.f32.xlu0 %v3573
    %v3575 = vpop.xlane.xlu0 %3574
    %v3576 = vsel %vm2787, %v3432, 0.0
    %3577 = vadd.xlane.f32.xlu0 %v3576
    %v3578 = vpop.xlane.xlu0 %3577
    %v3579 = vsel %vm2787, %v3433, 0.0
    %3580 = vadd.xlane.f32.xlu0 %v3579
    %v3581 = vpop.xlane.xlu0 %3580
    %v3582 = vsel %vm2787, %v3434, 0.0
    %3583 = vadd.xlane.f32.xlu0 %v3582
    %v3584 = vpop.xlane.xlu0 %3583
    %v3585 = vsel %vm2787, %v3435, 0.0
    %3586 = vadd.xlane.f32.xlu0 %v3585
    %v3587 = vpop.xlane.xlu0 %3586
    %v3588 = vsel %vm2787, %v3436, 0.0
    %3589 = vadd.xlane.f32.xlu0 %v3588
    %v3590 = vpop.xlane.xlu0 %3589
    %v3591 = vsel %vm2787, %v3437, 0.0
    %3592 = vadd.xlane.f32.xlu0 %v3591
    %v3593 = vpop.xlane.xlu0 %3592
    %v3594 = vsel %vm2787, %v3438, 0.0
    %3595 = vadd.xlane.f32.xlu0 %v3594
    %v3596 = vpop.xlane.xlu0 %3595
    %v3597 = vsel %vm2787, %v3439, 0.0
    %3598 = vadd.xlane.f32.xlu0 %v3597
    %v3599 = vpop.xlane.xlu0 %3598
    %v3600 = vsel %vm2787, %v3440, 0.0
    %3601 = vadd.xlane.f32.xlu0 %v3600
    %v3602 = vpop.xlane.xlu0 %3601
    %v3603 = vsel %vm2787, %v3441, 0.0
    %3604 = vadd.xlane.f32.xlu0 %v3603
    %v3605 = vpop.xlane.xlu0 %3604
    %v3606 = vsel %vm2787, %v3442, 0.0
    %3607 = vadd.xlane.f32.xlu0 %v3606
    %v3608 = vpop.xlane.xlu0 %3607
    %v3609 = vsel %vm2787, %v3443, 0.0
    %3610 = vadd.xlane.f32.xlu0 %v3609
    %v3611 = vpop.xlane.xlu0 %3610
    %v3612 = vsel %vm2787, %v3444, 0.0
    %3613 = vadd.xlane.f32.xlu0 %v3612
    %v3614 = vpop.xlane.xlu0 %3613
    %v3615 = vsel %vm2787, %v3445, 0.0
    %3616 = vadd.xlane.f32.xlu0 %v3615
    %v3617 = vpop.xlane.xlu0 %3616
    %v3618 = vsel %vm2787, %v3446, 0.0
    %3619 = vadd.xlane.f32.xlu0 %v3618
    %v3620 = vpop.xlane.xlu0 %3619
    %v3621 = vsel %vm2787, %v3447, 0.0
    %3622 = vadd.xlane.f32.xlu0 %v3621
    %v3623 = vpop.xlane.xlu0 %3622
    %v3624 = vsel %vm2787, %v3448, 0.0
    %3625 = vadd.xlane.f32.xlu0 %v3624
    %v3626 = vpop.xlane.xlu0 %3625
    %v3627 = vsel %vm2787, %v3449, 0.0
    %3628 = vadd.xlane.f32.xlu0 %v3627
    %v3629 = vpop.xlane.xlu0 %3628
    %v3630 = vsel %vm2787, %v3450, 0.0
    %3631 = vadd.xlane.f32.xlu0 %v3630
    %v3632 = vpop.xlane.xlu0 %3631
    %v3633 = vsel %vm2787, %v3451, 0.0
    %3634 = vadd.xlane.f32.xlu0 %v3633
    %v3635 = vpop.xlane.xlu0 %3634
    %v3636 = vsel %vm2787, %v3452, 0.0
    %3637 = vadd.xlane.f32.xlu0 %v3636
    %v3638 = vpop.xlane.xlu0 %3637
    %v3639 = vsel %vm2787, %v3453, 0.0
    %3640 = vadd.xlane.f32.xlu0 %v3639
    %v3641 = vpop.xlane.xlu0 %3640
    %v3642 = vsel %vm2787, %v3454, 0.0
    %3643 = vadd.xlane.f32.xlu0 %v3642
    %v3644 = vpop.xlane.xlu0 %3643
    %v3645 = vsel %vm2787, %v3455, 0.0
    %3646 = vadd.xlane.f32.xlu0 %v3645
    %v3647 = vpop.xlane.xlu0 %3646
    %v3648 = vrcp.pop 64.0
    %v3649 = vmul.f32 64.0, %v3648
    %v3650 = vsub.f32 1.0, %v3649
    %v3651 = vmul.f32 %v3648, %v3650
    %v3652 = vadd.f32 %v3648, %v3651
    %vm3653 = vweird.f32 %v3648
    %v3654 = vsel %vm3653, %v3648, %v3652
    %v3655 = vmul.f32 %v3458, %v3654
    %v3656 = vmul.f32 %v3461, %v3654
    %v3657 = vmul.f32 %v3464, %v3654
    %v3658 = vmul.f32 %v3467, %v3654
    %v3659 = vmul.f32 %v3470, %v3654
    %v3660 = vmul.f32 %v3473, %v3654
    %v3661 = vmul.f32 %v3476, %v3654
    %v3662 = vmul.f32 %v3479, %v3654
    %v3663 = vmul.f32 %v3482, %v3654
    %v3664 = vmul.f32 %v3485, %v3654
    %v3665 = vmul.f32 %v3488, %v3654
    %v3666 = vmul.f32 %v3491, %v3654
    %v3667 = vmul.f32 %v3494, %v3654
    %v3668 = vmul.f32 %v3497, %v3654
    %v3669 = vmul.f32 %v3500, %v3654
    %v3670 = vmul.f32 %v3503, %v3654
    %v3671 = vmul.f32 %v3506, %v3654
    %v3672 = vmul.f32 %v3509, %v3654
    %v3673 = vmul.f32 %v3512, %v3654
    %v3674 = vmul.f32 %v3515, %v3654
    %v3675 = vmul.f32 %v3518, %v3654
    %v3676 = vmul.f32 %v3521, %v3654
    %v3677 = vmul.f32 %v3524, %v3654
    %v3678 = vmul.f32 %v3527, %v3654
    %v3679 = vmul.f32 %v3530, %v3654
    %v3680 = vmul.f32 %v3533, %v3654
    %v3681 = vmul.f32 %v3536, %v3654
    %v3682 = vmul.f32 %v3539, %v3654
    %v3683 = vmul.f32 %v3542, %v3654
    %v3684 = vmul.f32 %v3545, %v3654
    %v3685 = vmul.f32 %v3548, %v3654
    %v3686 = vmul.f32 %v3551, %v3654
    %v3687 = vmul.f32 %v3554, %v3654
    %v3688 = vmul.f32 %v3557, %v3654
    %v3689 = vmul.f32 %v3560, %v3654
    %v3690 = vmul.f32 %v3563, %v3654
    %v3691 = vmul.f32 %v3566, %v3654
    %v3692 = vmul.f32 %v3569, %v3654
    %v3693 = vmul.f32 %v3572, %v3654
    %v3694 = vmul.f32 %v3575, %v3654
    %v3695 = vmul.f32 %v3578, %v3654
    %v3696 = vmul.f32 %v3581, %v3654
    %v3697 = vmul.f32 %v3584, %v3654
    %v3698 = vmul.f32 %v3587, %v3654
    %v3699 = vmul.f32 %v3590, %v3654
    %v3700 = vmul.f32 %v3593, %v3654
    %v3701 = vmul.f32 %v3596, %v3654
    %v3702 = vmul.f32 %v3599, %v3654
    %v3703 = vmul.f32 %v3602, %v3654
    %v3704 = vmul.f32 %v3605, %v3654
    %v3705 = vmul.f32 %v3608, %v3654
    %v3706 = vmul.f32 %v3611, %v3654
    %v3707 = vmul.f32 %v3614, %v3654
    %v3708 = vmul.f32 %v3617, %v3654
    %v3709 = vmul.f32 %v3620, %v3654
    %v3710 = vmul.f32 %v3623, %v3654
    %v3711 = vmul.f32 %v3626, %v3654
    %v3712 = vmul.f32 %v3629, %v3654
    %v3713 = vmul.f32 %v3632, %v3654
    %v3714 = vmul.f32 %v3635, %v3654
    %v3715 = vmul.f32 %v3638, %v3654
    %v3716 = vmul.f32 %v3641, %v3654
    %v3717 = vmul.f32 %v3644, %v3654
    %v3718 = vmul.f32 %v3647, %v3654
    %v3719 = vmul.f32 %v3392, %v3392
    %v3720 = vmul.f32 %v3393, %v3393
    %v3721 = vmul.f32 %v3394, %v3394
    %v3722 = vmul.f32 %v3395, %v3395
    %v3723 = vmul.f32 %v3396, %v3396
    %v3724 = vmul.f32 %v3397, %v3397
    %v3725 = vmul.f32 %v3398, %v3398
    %v3726 = vmul.f32 %v3399, %v3399
    %v3727 = vmul.f32 %v3400, %v3400
    %v3728 = vmul.f32 %v3401, %v3401
    %v3729 = vmul.f32 %v3402, %v3402
    %v3730 = vmul.f32 %v3403, %v3403
    %v3731 = vmul.f32 %v3404, %v3404
    %v3732 = vmul.f32 %v3405, %v3405
    %v3733 = vmul.f32 %v3406, %v3406
    %v3734 = vmul.f32 %v3407, %v3407
    %v3735 = vmul.f32 %v3408, %v3408
    %v3736 = vmul.f32 %v3409, %v3409
    %v3737 = vmul.f32 %v3410, %v3410
    %v3738 = vmul.f32 %v3411, %v3411
    %v3739 = vmul.f32 %v3412, %v3412
    %v3740 = vmul.f32 %v3413, %v3413
    %v3741 = vmul.f32 %v3414, %v3414
    %v3742 = vmul.f32 %v3415, %v3415
    %v3743 = vmul.f32 %v3416, %v3416
    %v3744 = vmul.f32 %v3417, %v3417
    %v3745 = vmul.f32 %v3418, %v3418
    %v3746 = vmul.f32 %v3419, %v3419
    %v3747 = vmul.f32 %v3420, %v3420
    %v3748 = vmul.f32 %v3421, %v3421
    %v3749 = vmul.f32 %v3422, %v3422
    %v3750 = vmul.f32 %v3423, %v3423
    %v3751 = vmul.f32 %v3424, %v3424
    %v3752 = vmul.f32 %v3425, %v3425
    %v3753 = vmul.f32 %v3426, %v3426
    %v3754 = vmul.f32 %v3427, %v3427
    %v3755 = vmul.f32 %v3428, %v3428
    %v3756 = vmul.f32 %v3429, %v3429
    %v3757 = vmul.f32 %v3430, %v3430
    %v3758 = vmul.f32 %v3431, %v3431
    %v3759 = vmul.f32 %v3432, %v3432
    %v3760 = vmul.f32 %v3433, %v3433
    %v3761 = vmul.f32 %v3434, %v3434
    %v3762 = vmul.f32 %v3435, %v3435
    %v3763 = vmul.f32 %v3436, %v3436
    %v3764 = vmul.f32 %v3437, %v3437
    %v3765 = vmul.f32 %v3438, %v3438
    %v3766 = vmul.f32 %v3439, %v3439
    %v3767 = vmul.f32 %v3440, %v3440
    %v3768 = vmul.f32 %v3441, %v3441
    %v3769 = vmul.f32 %v3442, %v3442
    %v3770 = vmul.f32 %v3443, %v3443
    %v3771 = vmul.f32 %v3444, %v3444
    %v3772 = vmul.f32 %v3445, %v3445
    %v3773 = vmul.f32 %v3446, %v3446
    %v3774 = vmul.f32 %v3447, %v3447
    %v3775 = vmul.f32 %v3448, %v3448
    %v3776 = vmul.f32 %v3449, %v3449
    %v3777 = vmul.f32 %v3450, %v3450
    %v3778 = vmul.f32 %v3451, %v3451
    %v3779 = vmul.f32 %v3452, %v3452
    %v3780 = vmul.f32 %v3453, %v3453
    %v3781 = vmul.f32 %v3454, %v3454
    %v3782 = vmul.f32 %v3455, %v3455
    %v3783 = vsel %vm2787, %v3719, 0.0
    %3784 = vadd.xlane.f32.xlu0 %v3783
    %v3785 = vpop.xlane.xlu0 %3784
    %v3786 = vsel %vm2787, %v3720, 0.0
    %3787 = vadd.xlane.f32.xlu0 %v3786
    %v3788 = vpop.xlane.xlu0 %3787
    %v3789 = vsel %vm2787, %v3721, 0.0
    %3790 = vadd.xlane.f32.xlu0 %v3789
    %v3791 = vpop.xlane.xlu0 %3790
    %v3792 = vsel %vm2787, %v3722, 0.0
    %3793 = vadd.xlane.f32.xlu0 %v3792
    %v3794 = vpop.xlane.xlu0 %3793
    %v3795 = vsel %vm2787, %v3723, 0.0
    %3796 = vadd.xlane.f32.xlu0 %v3795
    %v3797 = vpop.xlane.xlu0 %3796
    %v3798 = vsel %vm2787, %v3724, 0.0
    %3799 = vadd.xlane.f32.xlu0 %v3798
    %v3800 = vpop.xlane.xlu0 %3799
    %v3801 = vsel %vm2787, %v3725, 0.0
    %3802 = vadd.xlane.f32.xlu0 %v3801
    %v3803 = vpop.xlane.xlu0 %3802
    %v3804 = vsel %vm2787, %v3726, 0.0
    %3805 = vadd.xlane.f32.xlu0 %v3804
    %v3806 = vpop.xlane.xlu0 %3805
    %v3807 = vsel %vm2787, %v3727, 0.0
    %3808 = vadd.xlane.f32.xlu0 %v3807
    %v3809 = vpop.xlane.xlu0 %3808
    %v3810 = vsel %vm2787, %v3728, 0.0
    %3811 = vadd.xlane.f32.xlu0 %v3810
    %v3812 = vpop.xlane.xlu0 %3811
    %v3813 = vsel %vm2787, %v3729, 0.0
    %3814 = vadd.xlane.f32.xlu0 %v3813
    %v3815 = vpop.xlane.xlu0 %3814
    %v3816 = vsel %vm2787, %v3730, 0.0
    %3817 = vadd.xlane.f32.xlu0 %v3816
    %v3818 = vpop.xlane.xlu0 %3817
    %v3819 = vsel %vm2787, %v3731, 0.0
    %3820 = vadd.xlane.f32.xlu0 %v3819
    %v3821 = vpop.xlane.xlu0 %3820
    %v3822 = vsel %vm2787, %v3732, 0.0
    %3823 = vadd.xlane.f32.xlu0 %v3822
    %v3824 = vpop.xlane.xlu0 %3823
    %v3825 = vsel %vm2787, %v3733, 0.0
    %3826 = vadd.xlane.f32.xlu0 %v3825
    %v3827 = vpop.xlane.xlu0 %3826
    %v3828 = vsel %vm2787, %v3734, 0.0
    %3829 = vadd.xlane.f32.xlu0 %v3828
    %v3830 = vpop.xlane.xlu0 %3829
    %v3831 = vsel %vm2787, %v3735, 0.0
    %3832 = vadd.xlane.f32.xlu0 %v3831
    %v3833 = vpop.xlane.xlu0 %3832
    %v3834 = vsel %vm2787, %v3736, 0.0
    %3835 = vadd.xlane.f32.xlu0 %v3834
    %v3836 = vpop.xlane.xlu0 %3835
    %v3837 = vsel %vm2787, %v3737, 0.0
    %3838 = vadd.xlane.f32.xlu0 %v3837
    %v3839 = vpop.xlane.xlu0 %3838
    %v3840 = vsel %vm2787, %v3738, 0.0
    %3841 = vadd.xlane.f32.xlu0 %v3840
    %v3842 = vpop.xlane.xlu0 %3841
    %v3843 = vsel %vm2787, %v3739, 0.0
    %3844 = vadd.xlane.f32.xlu0 %v3843
    %v3845 = vpop.xlane.xlu0 %3844
    %v3846 = vsel %vm2787, %v3740, 0.0
    %3847 = vadd.xlane.f32.xlu0 %v3846
    %v3848 = vpop.xlane.xlu0 %3847
    %v3849 = vsel %vm2787, %v3741, 0.0
    %3850 = vadd.xlane.f32.xlu0 %v3849
    %v3851 = vpop.xlane.xlu0 %3850
    %v3852 = vsel %vm2787, %v3742, 0.0
    %3853 = vadd.xlane.f32.xlu0 %v3852
    %v3854 = vpop.xlane.xlu0 %3853
    %v3855 = vsel %vm2787, %v3743, 0.0
    %3856 = vadd.xlane.f32.xlu0 %v3855
    %v3857 = vpop.xlane.xlu0 %3856
    %v3858 = vsel %vm2787, %v3744, 0.0
    %3859 = vadd.xlane.f32.xlu0 %v3858
    %v3860 = vpop.xlane.xlu0 %3859
    %v3861 = vsel %vm2787, %v3745, 0.0
    %3862 = vadd.xlane.f32.xlu0 %v3861
    %v3863 = vpop.xlane.xlu0 %3862
    %v3864 = vsel %vm2787, %v3746, 0.0
    %3865 = vadd.xlane.f32.xlu0 %v3864
    %v3866 = vpop.xlane.xlu0 %3865
    %v3867 = vsel %vm2787, %v3747, 0.0
    %3868 = vadd.xlane.f32.xlu0 %v3867
    %v3869 = vpop.xlane.xlu0 %3868
    %v3870 = vsel %vm2787, %v3748, 0.0
    %3871 = vadd.xlane.f32.xlu0 %v3870
    %v3872 = vpop.xlane.xlu0 %3871
    %v3873 = vsel %vm2787, %v3749, 0.0
    %3874 = vadd.xlane.f32.xlu0 %v3873
    %v3875 = vpop.xlane.xlu0 %3874
    %v3876 = vsel %vm2787, %v3750, 0.0
    %3877 = vadd.xlane.f32.xlu0 %v3876
    %v3878 = vpop.xlane.xlu0 %3877
    %v3879 = vsel %vm2787, %v3751, 0.0
    %3880 = vadd.xlane.f32.xlu0 %v3879
    %v3881 = vpop.xlane.xlu0 %3880
    %v3882 = vsel %vm2787, %v3752, 0.0
    %3883 = vadd.xlane.f32.xlu0 %v3882
    %v3884 = vpop.xlane.xlu0 %3883
    %v3885 = vsel %vm2787, %v3753, 0.0
    %3886 = vadd.xlane.f32.xlu0 %v3885
    %v3887 = vpop.xlane.xlu0 %3886
    %v3888 = vsel %vm2787, %v3754, 0.0
    %3889 = vadd.xlane.f32.xlu0 %v3888
    %v3890 = vpop.xlane.xlu0 %3889
    %v3891 = vsel %vm2787, %v3755, 0.0
    %3892 = vadd.xlane.f32.xlu0 %v3891
    %v3893 = vpop.xlane.xlu0 %3892
    %v3894 = vsel %vm2787, %v3756, 0.0
    %3895 = vadd.xlane.f32.xlu0 %v3894
    %v3896 = vpop.xlane.xlu0 %3895
    %v3897 = vsel %vm2787, %v3757, 0.0
    %3898 = vadd.xlane.f32.xlu0 %v3897
    %v3899 = vpop.xlane.xlu0 %3898
    %v3900 = vsel %vm2787, %v3758, 0.0
    %3901 = vadd.xlane.f32.xlu0 %v3900
    %v3902 = vpop.xlane.xlu0 %3901
    %v3903 = vsel %vm2787, %v3759, 0.0
    %3904 = vadd.xlane.f32.xlu0 %v3903
    %v3905 = vpop.xlane.xlu0 %3904
    %v3906 = vsel %vm2787, %v3760, 0.0
    %3907 = vadd.xlane.f32.xlu0 %v3906
    %v3908 = vpop.xlane.xlu0 %3907
    %v3909 = vsel %vm2787, %v3761, 0.0
    %3910 = vadd.xlane.f32.xlu0 %v3909
    %v3911 = vpop.xlane.xlu0 %3910
    %v3912 = vsel %vm2787, %v3762, 0.0
    %3913 = vadd.xlane.f32.xlu0 %v3912
    %v3914 = vpop.xlane.xlu0 %3913
    %v3915 = vsel %vm2787, %v3763, 0.0
    %3916 = vadd.xlane.f32.xlu0 %v3915
    %v3917 = vpop.xlane.xlu0 %3916
    %v3918 = vsel %vm2787, %v3764, 0.0
    %3919 = vadd.xlane.f32.xlu0 %v3918
    %v3920 = vpop.xlane.xlu0 %3919
    %v3921 = vsel %vm2787, %v3765, 0.0
    %3922 = vadd.xlane.f32.xlu0 %v3921
    %v3923 = vpop.xlane.xlu0 %3922
    %v3924 = vsel %vm2787, %v3766, 0.0
    %3925 = vadd.xlane.f32.xlu0 %v3924
    %v3926 = vpop.xlane.xlu0 %3925
    %v3927 = vsel %vm2787, %v3767, 0.0
    %3928 = vadd.xlane.f32.xlu0 %v3927
    %v3929 = vpop.xlane.xlu0 %3928
    %v3930 = vsel %vm2787, %v3768, 0.0
    %3931 = vadd.xlane.f32.xlu0 %v3930
    %v3932 = vpop.xlane.xlu0 %3931
    %v3933 = vsel %vm2787, %v3769, 0.0
    %3934 = vadd.xlane.f32.xlu0 %v3933
    %v3935 = vpop.xlane.xlu0 %3934
    %v3936 = vsel %vm2787, %v3770, 0.0
    %3937 = vadd.xlane.f32.xlu0 %v3936
    %v3938 = vpop.xlane.xlu0 %3937
    %v3939 = vsel %vm2787, %v3771, 0.0
    %3940 = vadd.xlane.f32.xlu0 %v3939
    %v3941 = vpop.xlane.xlu0 %3940
    %v3942 = vsel %vm2787, %v3772, 0.0
    %3943 = vadd.xlane.f32.xlu0 %v3942
    %v3944 = vpop.xlane.xlu0 %3943
    %v3945 = vsel %vm2787, %v3773, 0.0
    %3946 = vadd.xlane.f32.xlu0 %v3945
    %v3947 = vpop.xlane.xlu0 %3946
    %v3948 = vsel %vm2787, %v3774, 0.0
    %3949 = vadd.xlane.f32.xlu0 %v3948
    %v3950 = vpop.xlane.xlu0 %3949
    %v3951 = vsel %vm2787, %v3775, 0.0
    %3952 = vadd.xlane.f32.xlu0 %v3951
    %v3953 = vpop.xlane.xlu0 %3952
    %v3954 = vsel %vm2787, %v3776, 0.0
    %3955 = vadd.xlane.f32.xlu0 %v3954
    %v3956 = vpop.xlane.xlu0 %3955
    %v3957 = vsel %vm2787, %v3777, 0.0
    %3958 = vadd.xlane.f32.xlu0 %v3957
    %v3959 = vpop.xlane.xlu0 %3958
    %v3960 = vsel %vm2787, %v3778, 0.0
    %3961 = vadd.xlane.f32.xlu0 %v3960
    %v3962 = vpop.xlane.xlu0 %3961
    %v3963 = vsel %vm2787, %v3779, 0.0
    %3964 = vadd.xlane.f32.xlu0 %v3963
    %v3965 = vpop.xlane.xlu0 %3964
    %v3966 = vsel %vm2787, %v3780, 0.0
    %3967 = vadd.xlane.f32.xlu0 %v3966
    %v3968 = vpop.xlane.xlu0 %3967
    %v3969 = vsel %vm2787, %v3781, 0.0
    %3970 = vadd.xlane.f32.xlu0 %v3969
    %v3971 = vpop.xlane.xlu0 %3970
    %v3972 = vsel %vm2787, %v3782, 0.0
    %3973 = vadd.xlane.f32.xlu0 %v3972
    %v3974 = vpop.xlane.xlu0 %3973
    %v3975 = vmul.f32 %v3785, %v3654
    %v3976 = vmul.f32 %v3788, %v3654
    %v3977 = vmul.f32 %v3791, %v3654
    %v3978 = vmul.f32 %v3794, %v3654
    %v3979 = vmul.f32 %v3797, %v3654
    %v3980 = vmul.f32 %v3800, %v3654
    %v3981 = vmul.f32 %v3803, %v3654
    %v3982 = vmul.f32 %v3806, %v3654
    %v3983 = vmul.f32 %v3809, %v3654
    %v3984 = vmul.f32 %v3812, %v3654
    %v3985 = vmul.f32 %v3815, %v3654
    %v3986 = vmul.f32 %v3818, %v3654
    %v3987 = vmul.f32 %v3821, %v3654
    %v3988 = vmul.f32 %v3824, %v3654
    %v3989 = vmul.f32 %v3827, %v3654
    %v3990 = vmul.f32 %v3830, %v3654
    %v3991 = vmul.f32 %v3833, %v3654
    %v3992 = vmul.f32 %v3836, %v3654
    %v3993 = vmul.f32 %v3839, %v3654
    %v3994 = vmul.f32 %v3842, %v3654
    %v3995 = vmul.f32 %v3845, %v3654
    %v3996 = vmul.f32 %v3848, %v3654
    %v3997 = vmul.f32 %v3851, %v3654
    %v3998 = vmul.f32 %v3854, %v3654
    %v3999 = vmul.f32 %v3857, %v3654
    %v4000 = vmul.f32 %v3860, %v3654
    %v4001 = vmul.f32 %v3863, %v3654
    %v4002 = vmul.f32 %v3866, %v3654
    %v4003 = vmul.f32 %v3869, %v3654
    %v4004 = vmul.f32 %v3872, %v3654
    %v4005 = vmul.f32 %v3875, %v3654
    %v4006 = vmul.f32 %v3878, %v3654
    %v4007 = vmul.f32 %v3881, %v3654
    %v4008 = vmul.f32 %v3884, %v3654
    %v4009 = vmul.f32 %v3887, %v3654
    %v4010 = vmul.f32 %v3890, %v3654
    %v4011 = vmul.f32 %v3893, %v3654
    %v4012 = vmul.f32 %v3896, %v3654
    %v4013 = vmul.f32 %v3899, %v3654
    %v4014 = vmul.f32 %v3902, %v3654
    %v4015 = vmul.f32 %v3905, %v3654
    %v4016 = vmul.f32 %v3908, %v3654
    %v4017 = vmul.f32 %v3911, %v3654
    %v4018 = vmul.f32 %v3914, %v3654
    %v4019 = vmul.f32 %v3917, %v3654
    %v4020 = vmul.f32 %v3920, %v3654
    %v4021 = vmul.f32 %v3923, %v3654
    %v4022 = vmul.f32 %v3926, %v3654
    %v4023 = vmul.f32 %v3929, %v3654
    %v4024 = vmul.f32 %v3932, %v3654
    %v4025 = vmul.f32 %v3935, %v3654
    %v4026 = vmul.f32 %v3938, %v3654
    %v4027 = vmul.f32 %v3941, %v3654
    %v4028 = vmul.f32 %v3944, %v3654
    %v4029 = vmul.f32 %v3947, %v3654
    %v4030 = vmul.f32 %v3950, %v3654
    %v4031 = vmul.f32 %v3953, %v3654
    %v4032 = vmul.f32 %v3956, %v3654
    %v4033 = vmul.f32 %v3959, %v3654
    %v4034 = vmul.f32 %v3962, %v3654
    %v4035 = vmul.f32 %v3965, %v3654
    %v4036 = vmul.f32 %v3968, %v3654
    %v4037 = vmul.f32 %v3971, %v3654
    %v4038 = vmul.f32 %v3974, %v3654
    %v4039 = vmul.f32 %v3655, %v3655
    %v4040 = vmul.f32 %v3656, %v3656
    %v4041 = vmul.f32 %v3657, %v3657
    %v4042 = vmul.f32 %v3658, %v3658
    %v4043 = vmul.f32 %v3659, %v3659
    %v4044 = vmul.f32 %v3660, %v3660
    %v4045 = vmul.f32 %v3661, %v3661
    %v4046 = vmul.f32 %v3662, %v3662
    %v4047 = vmul.f32 %v3663, %v3663
    %v4048 = vmul.f32 %v3664, %v3664
    %v4049 = vmul.f32 %v3665, %v3665
    %v4050 = vmul.f32 %v3666, %v3666
    %v4051 = vmul.f32 %v3667, %v3667
    %v4052 = vmul.f32 %v3668, %v3668
    %v4053 = vmul.f32 %v3669, %v3669
    %v4054 = vmul.f32 %v3670, %v3670
    %v4055 = vmul.f32 %v3671, %v3671
    %v4056 = vmul.f32 %v3672, %v3672
    %v4057 = vmul.f32 %v3673, %v3673
    %v4058 = vmul.f32 %v3674, %v3674
    %v4059 = vmul.f32 %v3675, %v3675
    %v4060 = vmul.f32 %v3676, %v3676
    %v4061 = vmul.f32 %v3677, %v3677
    %v4062 = vmul.f32 %v3678, %v3678
    %v4063 = vmul.f32 %v3679, %v3679
    %v4064 = vmul.f32 %v3680, %v3680
    %v4065 = vmul.f32 %v3681, %v3681
    %v4066 = vmul.f32 %v3682, %v3682
    %v4067 = vmul.f32 %v3683, %v3683
    %v4068 = vmul.f32 %v3684, %v3684
    %v4069 = vmul.f32 %v3685, %v3685
    %v4070 = vmul.f32 %v3686, %v3686
    %v4071 = vmul.f32 %v3687, %v3687
    %v4072 = vmul.f32 %v3688, %v3688
    %v4073 = vmul.f32 %v3689, %v3689
    %v4074 = vmul.f32 %v3690, %v3690
    %v4075 = vmul.f32 %v3691, %v3691
    %v4076 = vmul.f32 %v3692, %v3692
    %v4077 = vmul.f32 %v3693, %v3693
    %v4078 = vmul.f32 %v3694, %v3694
    %v4079 = vmul.f32 %v3695, %v3695
    %v4080 = vmul.f32 %v3696, %v3696
    %v4081 = vmul.f32 %v3697, %v3697
    %v4082 = vmul.f32 %v3698, %v3698
    %v4083 = vmul.f32 %v3699, %v3699
    %v4084 = vmul.f32 %v3700, %v3700
    %v4085 = vmul.f32 %v3701, %v3701
    %v4086 = vmul.f32 %v3702, %v3702
    %v4087 = vmul.f32 %v3703, %v3703
    %v4088 = vmul.f32 %v3704, %v3704
    %v4089 = vmul.f32 %v3705, %v3705
    %v4090 = vmul.f32 %v3706, %v3706
    %v4091 = vmul.f32 %v3707, %v3707
    %v4092 = vmul.f32 %v3708, %v3708
    %v4093 = vmul.f32 %v3709, %v3709
    %v4094 = vmul.f32 %v3710, %v3710
    %v4095 = vmul.f32 %v3711, %v3711
    %v4096 = vmul.f32 %v3712, %v3712
    %v4097 = vmul.f32 %v3713, %v3713
    %v4098 = vmul.f32 %v3714, %v3714
    %v4099 = vmul.f32 %v3715, %v3715
    %v4100 = vmul.f32 %v3716, %v3716
    %v4101 = vmul.f32 %v3717, %v3717
    %v4102 = vmul.f32 %v3718, %v3718
    %v4103 = vsub.f32 %v3975, %v4039
    %v4104 = vsub.f32 %v3976, %v4040
    %v4105 = vsub.f32 %v3977, %v4041
    %v4106 = vsub.f32 %v3978, %v4042
    %v4107 = vsub.f32 %v3979, %v4043
    %v4108 = vsub.f32 %v3980, %v4044
    %v4109 = vsub.f32 %v3981, %v4045
    %v4110 = vsub.f32 %v3982, %v4046
    %v4111 = vsub.f32 %v3983, %v4047
    %v4112 = vsub.f32 %v3984, %v4048
    %v4113 = vsub.f32 %v3985, %v4049
    %v4114 = vsub.f32 %v3986, %v4050
    %v4115 = vsub.f32 %v3987, %v4051
    %v4116 = vsub.f32 %v3988, %v4052
    %v4117 = vsub.f32 %v3989, %v4053
    %v4118 = vsub.f32 %v3990, %v4054
    %v4119 = vsub.f32 %v3991, %v4055
    %v4120 = vsub.f32 %v3992, %v4056
    %v4121 = vsub.f32 %v3993, %v4057
    %v4122 = vsub.f32 %v3994, %v4058
    %v4123 = vsub.f32 %v3995, %v4059
    %v4124 = vsub.f32 %v3996, %v4060
    %v4125 = vsub.f32 %v3997, %v4061
    %v4126 = vsub.f32 %v3998, %v4062
    %v4127 = vsub.f32 %v3999, %v4063
    %v4128 = vsub.f32 %v4000, %v4064
    %v4129 = vsub.f32 %v4001, %v4065
    %v4130 = vsub.f32 %v4002, %v4066
    %v4131 = vsub.f32 %v4003, %v4067
    %v4132 = vsub.f32 %v4004, %v4068
    %v4133 = vsub.f32 %v4005, %v4069
    %v4134 = vsub.f32 %v4006, %v4070
    %v4135 = vsub.f32 %v4007, %v4071
    %v4136 = vsub.f32 %v4008, %v4072
    %v4137 = vsub.f32 %v4009, %v4073
    %v4138 = vsub.f32 %v4010, %v4074
    %v4139 = vsub.f32 %v4011, %v4075
    %v4140 = vsub.f32 %v4012, %v4076
    %v4141 = vsub.f32 %v4013, %v4077
    %v4142 = vsub.f32 %v4014, %v4078
    %v4143 = vsub.f32 %v4015, %v4079
    %v4144 = vsub.f32 %v4016, %v4080
    %v4145 = vsub.f32 %v4017, %v4081
    %v4146 = vsub.f32 %v4018, %v4082
    %v4147 = vsub.f32 %v4019, %v4083
    %v4148 = vsub.f32 %v4020, %v4084
    %v4149 = vsub.f32 %v4021, %v4085
    %v4150 = vsub.f32 %v4022, %v4086
    %v4151 = vsub.f32 %v4023, %v4087
    %v4152 = vsub.f32 %v4024, %v4088
    %v4153 = vsub.f32 %v4025, %v4089
    %v4154 = vsub.f32 %v4026, %v4090
    %v4155 = vsub.f32 %v4027, %v4091
    %v4156 = vsub.f32 %v4028, %v4092
    %v4157 = vsub.f32 %v4029, %v4093
    %v4158 = vsub.f32 %v4030, %v4094
    %v4159 = vsub.f32 %v4031, %v4095
    %v4160 = vsub.f32 %v4032, %v4096
    %v4161 = vsub.f32 %v4033, %v4097
    %v4162 = vsub.f32 %v4034, %v4098
    %v4163 = vsub.f32 %v4035, %v4099
    %v4164 = vsub.f32 %v4036, %v4100
    %v4165 = vsub.f32 %v4037, %v4101
    %v4166 = vsub.f32 %v4038, %v4102
    %v4167 = vmax.f32 %v4103, 0.0
    %v4168 = vmax.f32 %v4104, 0.0
    %v4169 = vmax.f32 %v4105, 0.0
    %v4170 = vmax.f32 %v4106, 0.0
    %v4171 = vmax.f32 %v4107, 0.0
    %v4172 = vmax.f32 %v4108, 0.0
    %v4173 = vmax.f32 %v4109, 0.0
    %v4174 = vmax.f32 %v4110, 0.0
    %v4175 = vmax.f32 %v4111, 0.0
    %v4176 = vmax.f32 %v4112, 0.0
    %v4177 = vmax.f32 %v4113, 0.0
    %v4178 = vmax.f32 %v4114, 0.0
    %v4179 = vmax.f32 %v4115, 0.0
    %v4180 = vmax.f32 %v4116, 0.0
    %v4181 = vmax.f32 %v4117, 0.0
    %v4182 = vmax.f32 %v4118, 0.0
    %v4183 = vmax.f32 %v4119, 0.0
    %v4184 = vmax.f32 %v4120, 0.0
    %v4185 = vmax.f32 %v4121, 0.0
    %v4186 = vmax.f32 %v4122, 0.0
    %v4187 = vmax.f32 %v4123, 0.0
    %v4188 = vmax.f32 %v4124, 0.0
    %v4189 = vmax.f32 %v4125, 0.0
    %v4190 = vmax.f32 %v4126, 0.0
    %v4191 = vmax.f32 %v4127, 0.0
    %v4192 = vmax.f32 %v4128, 0.0
    %v4193 = vmax.f32 %v4129, 0.0
    %v4194 = vmax.f32 %v4130, 0.0
    %v4195 = vmax.f32 %v4131, 0.0
    %v4196 = vmax.f32 %v4132, 0.0
    %v4197 = vmax.f32 %v4133, 0.0
    %v4198 = vmax.f32 %v4134, 0.0
    %v4199 = vmax.f32 %v4135, 0.0
    %v4200 = vmax.f32 %v4136, 0.0
    %v4201 = vmax.f32 %v4137, 0.0
    %v4202 = vmax.f32 %v4138, 0.0
    %v4203 = vmax.f32 %v4139, 0.0
    %v4204 = vmax.f32 %v4140, 0.0
    %v4205 = vmax.f32 %v4141, 0.0
    %v4206 = vmax.f32 %v4142, 0.0
    %v4207 = vmax.f32 %v4143, 0.0
    %v4208 = vmax.f32 %v4144, 0.0
    %v4209 = vmax.f32 %v4145, 0.0
    %v4210 = vmax.f32 %v4146, 0.0
    %v4211 = vmax.f32 %v4147, 0.0
    %v4212 = vmax.f32 %v4148, 0.0
    %v4213 = vmax.f32 %v4149, 0.0
    %v4214 = vmax.f32 %v4150, 0.0
    %v4215 = vmax.f32 %v4151, 0.0
    %v4216 = vmax.f32 %v4152, 0.0
    %v4217 = vmax.f32 %v4153, 0.0
    %v4218 = vmax.f32 %v4154, 0.0
    %v4219 = vmax.f32 %v4155, 0.0
    %v4220 = vmax.f32 %v4156, 0.0
    %v4221 = vmax.f32 %v4157, 0.0
    %v4222 = vmax.f32 %v4158, 0.0
    %v4223 = vmax.f32 %v4159, 0.0
    %v4224 = vmax.f32 %v4160, 0.0
    %v4225 = vmax.f32 %v4161, 0.0
    %v4226 = vmax.f32 %v4162, 0.0
    %v4227 = vmax.f32 %v4163, 0.0
    %v4228 = vmax.f32 %v4164, 0.0
    %v4229 = vmax.f32 %v4165, 0.0
    %v4230 = vmax.f32 %v4166, 0.0
    %v4231 = vsub.f32 %v3392, %v3655
    %v4232 = vsub.f32 %v3393, %v3656
    %v4233 = vsub.f32 %v3394, %v3657
    %v4234 = vsub.f32 %v3395, %v3658
    %v4235 = vsub.f32 %v3396, %v3659
    %v4236 = vsub.f32 %v3397, %v3660
    %v4237 = vsub.f32 %v3398, %v3661
    %v4238 = vsub.f32 %v3399, %v3662
    %v4239 = vsub.f32 %v3400, %v3663
    %v4240 = vsub.f32 %v3401, %v3664
    %v4241 = vsub.f32 %v3402, %v3665
    %v4242 = vsub.f32 %v3403, %v3666
    %v4243 = vsub.f32 %v3404, %v3667
    %v4244 = vsub.f32 %v3405, %v3668
    %v4245 = vsub.f32 %v3406, %v3669
    %v4246 = vsub.f32 %v3407, %v3670
    %v4247 = vsub.f32 %v3408, %v3671
    %v4248 = vsub.f32 %v3409, %v3672
    %v4249 = vsub.f32 %v3410, %v3673
    %v4250 = vsub.f32 %v3411, %v3674
    %v4251 = vsub.f32 %v3412, %v3675
    %v4252 = vsub.f32 %v3413, %v3676
    %v4253 = vsub.f32 %v3414, %v3677
    %v4254 = vsub.f32 %v3415, %v3678
    %v4255 = vsub.f32 %v3416, %v3679
    %v4256 = vsub.f32 %v3417, %v3680
    %v4257 = vsub.f32 %v3418, %v3681
    %v4258 = vsub.f32 %v3419, %v3682
    %v4259 = vsub.f32 %v3420, %v3683
    %v4260 = vsub.f32 %v3421, %v3684
    %v4261 = vsub.f32 %v3422, %v3685
    %v4262 = vsub.f32 %v3423, %v3686
    %v4263 = vsub.f32 %v3424, %v3687
    %v4264 = vsub.f32 %v3425, %v3688
    %v4265 = vsub.f32 %v3426, %v3689
    %v4266 = vsub.f32 %v3427, %v3690
    %v4267 = vsub.f32 %v3428, %v3691
    %v4268 = vsub.f32 %v3429, %v3692
    %v4269 = vsub.f32 %v3430, %v3693
    %v4270 = vsub.f32 %v3431, %v3694
    %v4271 = vsub.f32 %v3432, %v3695
    %v4272 = vsub.f32 %v3433, %v3696
    %v4273 = vsub.f32 %v3434, %v3697
    %v4274 = vsub.f32 %v3435, %v3698
    %v4275 = vsub.f32 %v3436, %v3699
    %v4276 = vsub.f32 %v3437, %v3700
    %v4277 = vsub.f32 %v3438, %v3701
    %v4278 = vsub.f32 %v3439, %v3702
    %v4279 = vsub.f32 %v3440, %v3703
    %v4280 = vsub.f32 %v3441, %v3704
    %v4281 = vsub.f32 %v3442, %v3705
    %v4282 = vsub.f32 %v3443, %v3706
    %v4283 = vsub.f32 %v3444, %v3707
    %v4284 = vsub.f32 %v3445, %v3708
    %v4285 = vsub.f32 %v3446, %v3709
    %v4286 = vsub.f32 %v3447, %v3710
    %v4287 = vsub.f32 %v3448, %v3711
    %v4288 = vsub.f32 %v3449, %v3712
    %v4289 = vsub.f32 %v3450, %v3713
    %v4290 = vsub.f32 %v3451, %v3714
    %v4291 = vsub.f32 %v3452, %v3715
    %v4292 = vsub.f32 %v3453, %v3716
    %v4293 = vsub.f32 %v3454, %v3717
    %v4294 = vsub.f32 %v3455, %v3718
    %v4295 = vadd.f32 %v4167, 1e-05
    %v4296 = vadd.f32 %v4168, 1e-05
    %v4297 = vadd.f32 %v4169, 1e-05
    %v4298 = vadd.f32 %v4170, 1e-05
    %v4299 = vadd.f32 %v4171, 1e-05
    %v4300 = vadd.f32 %v4172, 1e-05
    %v4301 = vadd.f32 %v4173, 1e-05
    %v4302 = vadd.f32 %v4174, 1e-05
    %v4303 = vadd.f32 %v4175, 1e-05
    %v4304 = vadd.f32 %v4176, 1e-05
    %v4305 = vadd.f32 %v4177, 1e-05
    %v4306 = vadd.f32 %v4178, 1e-05
    %v4307 = vadd.f32 %v4179, 1e-05
    %v4308 = vadd.f32 %v4180, 1e-05
    %v4309 = vadd.f32 %v4181, 1e-05
    %v4310 = vadd.f32 %v4182, 1e-05
    %v4311 = vadd.f32 %v4183, 1e-05
    %v4312 = vadd.f32 %v4184, 1e-05
    %v4313 = vadd.f32 %v4185, 1e-05
    %v4314 = vadd.f32 %v4186, 1e-05
    %v4315 = vadd.f32 %v4187, 1e-05
    %v4316 = vadd.f32 %v4188, 1e-05
    %v4317 = vadd.f32 %v4189, 1e-05
    %v4318 = vadd.f32 %v4190, 1e-05
    %v4319 = vadd.f32 %v4191, 1e-05
    %v4320 = vadd.f32 %v4192, 1e-05
    %v4321 = vadd.f32 %v4193, 1e-05
    %v4322 = vadd.f32 %v4194, 1e-05
    %v4323 = vadd.f32 %v4195, 1e-05
    %v4324 = vadd.f32 %v4196, 1e-05
    %v4325 = vadd.f32 %v4197, 1e-05
    %v4326 = vadd.f32 %v4198, 1e-05
    %v4327 = vadd.f32 %v4199, 1e-05
    %v4328 = vadd.f32 %v4200, 1e-05
    %v4329 = vadd.f32 %v4201, 1e-05
    %v4330 = vadd.f32 %v4202, 1e-05
    %v4331 = vadd.f32 %v4203, 1e-05
    %v4332 = vadd.f32 %v4204, 1e-05
    %v4333 = vadd.f32 %v4205, 1e-05
    %v4334 = vadd.f32 %v4206, 1e-05
    %v4335 = vadd.f32 %v4207, 1e-05
    %v4336 = vadd.f32 %v4208, 1e-05
    %v4337 = vadd.f32 %v4209, 1e-05
    %v4338 = vadd.f32 %v4210, 1e-05
    %v4339 = vadd.f32 %v4211, 1e-05
    %v4340 = vadd.f32 %v4212, 1e-05
    %v4341 = vadd.f32 %v4213, 1e-05
    %v4342 = vadd.f32 %v4214, 1e-05
    %v4343 = vadd.f32 %v4215, 1e-05
    %v4344 = vadd.f32 %v4216, 1e-05
    %v4345 = vadd.f32 %v4217, 1e-05
    %v4346 = vadd.f32 %v4218, 1e-05
    %v4347 = vadd.f32 %v4219, 1e-05
    %v4348 = vadd.f32 %v4220, 1e-05
    %v4349 = vadd.f32 %v4221, 1e-05
    %v4350 = vadd.f32 %v4222, 1e-05
    %v4351 = vadd.f32 %v4223, 1e-05
    %v4352 = vadd.f32 %v4224, 1e-05
    %v4353 = vadd.f32 %v4225, 1e-05
    %v4354 = vadd.f32 %v4226, 1e-05
    %v4355 = vadd.f32 %v4227, 1e-05
    %v4356 = vadd.f32 %v4228, 1e-05
    %v4357 = vadd.f32 %v4229, 1e-05
    %v4358 = vadd.f32 %v4230, 1e-05
    %v4359 = vrsqrt.pop %v4295
    %v4360 = vmul.f32 %v4359, %v4295
    %v4361 = vmul.f32 %v4360, %v4359
    %v4362 = vmul.f32 0.5, %v4361
    %v4363 = vsub.f32 1.5, %v4362
    %v4364 = vmul.f32 %v4359, %v4363
    %vm4365 = vweird.f32 %v4295
    %vm4366 = vweird.f32 %v4359
    %vm4367 = vmor %vm4365, %vm4366
    %v4368 = vsel %vm4367, %v4359, %v4364
    %v4369 = vrsqrt.pop %v4296
    %v4370 = vmul.f32 %v4369, %v4296
    %v4371 = vmul.f32 %v4370, %v4369
    %v4372 = vmul.f32 0.5, %v4371
    %v4373 = vsub.f32 1.5, %v4372
    %v4374 = vmul.f32 %v4369, %v4373
    %vm4375 = vweird.f32 %v4296
    %vm4376 = vweird.f32 %v4369
    %vm4377 = vmor %vm4375, %vm4376
    %v4378 = vsel %vm4377, %v4369, %v4374
    %v4379 = vrsqrt.pop %v4297
    %v4380 = vmul.f32 %v4379, %v4297
    %v4381 = vmul.f32 %v4380, %v4379
    %v4382 = vmul.f32 0.5, %v4381
    %v4383 = vsub.f32 1.5, %v4382
    %v4384 = vmul.f32 %v4379, %v4383
    %vm4385 = vweird.f32 %v4297
    %vm4386 = vweird.f32 %v4379
    %vm4387 = vmor %vm4385, %vm4386
    %v4388 = vsel %vm4387, %v4379, %v4384
    %v4389 = vrsqrt.pop %v4298
    %v4390 = vmul.f32 %v4389, %v4298
    %v4391 = vmul.f32 %v4390, %v4389
    %v4392 = vmul.f32 0.5, %v4391
    %v4393 = vsub.f32 1.5, %v4392
    %v4394 = vmul.f32 %v4389, %v4393
    %vm4395 = vweird.f32 %v4298
    %vm4396 = vweird.f32 %v4389
    %vm4397 = vmor %vm4395, %vm4396
    %v4398 = vsel %vm4397, %v4389, %v4394
    %v4399 = vrsqrt.pop %v4299
    %v4400 = vmul.f32 %v4399, %v4299
    %v4401 = vmul.f32 %v4400, %v4399
    %v4402 = vmul.f32 0.5, %v4401
    %v4403 = vsub.f32 1.5, %v4402
    %v4404 = vmul.f32 %v4399, %v4403
    %vm4405 = vweird.f32 %v4299
    %vm4406 = vweird.f32 %v4399
    %vm4407 = vmor %vm4405, %vm4406
    %v4408 = vsel %vm4407, %v4399, %v4404
    %v4409 = vrsqrt.pop %v4300
    %v4410 = vmul.f32 %v4409, %v4300
    %v4411 = vmul.f32 %v4410, %v4409
    %v4412 = vmul.f32 0.5, %v4411
    %v4413 = vsub.f32 1.5, %v4412
    %v4414 = vmul.f32 %v4409, %v4413
    %vm4415 = vweird.f32 %v4300
    %vm4416 = vweird.f32 %v4409
    %vm4417 = vmor %vm4415, %vm4416
    %v4418 = vsel %vm4417, %v4409, %v4414
    %v4419 = vrsqrt.pop %v4301
    %v4420 = vmul.f32 %v4419, %v4301
    %v4421 = vmul.f32 %v4420, %v4419
    %v4422 = vmul.f32 0.5, %v4421
    %v4423 = vsub.f32 1.5, %v4422
    %v4424 = vmul.f32 %v4419, %v4423
    %vm4425 = vweird.f32 %v4301
    %vm4426 = vweird.f32 %v4419
    %vm4427 = vmor %vm4425, %vm4426
    %v4428 = vsel %vm4427, %v4419, %v4424
    %v4429 = vrsqrt.pop %v4302
    %v4430 = vmul.f32 %v4429, %v4302
    %v4431 = vmul.f32 %v4430, %v4429
    %v4432 = vmul.f32 0.5, %v4431
    %v4433 = vsub.f32 1.5, %v4432
    %v4434 = vmul.f32 %v4429, %v4433
    %vm4435 = vweird.f32 %v4302
    %vm4436 = vweird.f32 %v4429
    %vm4437 = vmor %vm4435, %vm4436
    %v4438 = vsel %vm4437, %v4429, %v4434
    %v4439 = vrsqrt.pop %v4303
    %v4440 = vmul.f32 %v4439, %v4303
    %v4441 = vmul.f32 %v4440, %v4439
    %v4442 = vmul.f32 0.5, %v4441
    %v4443 = vsub.f32 1.5, %v4442
    %v4444 = vmul.f32 %v4439, %v4443
    %vm4445 = vweird.f32 %v4303
    %vm4446 = vweird.f32 %v4439
    %vm4447 = vmor %vm4445, %vm4446
    %v4448 = vsel %vm4447, %v4439, %v4444
    %v4449 = vrsqrt.pop %v4304
    %v4450 = vmul.f32 %v4449, %v4304
    %v4451 = vmul.f32 %v4450, %v4449
    %v4452 = vmul.f32 0.5, %v4451
    %v4453 = vsub.f32 1.5, %v4452
    %v4454 = vmul.f32 %v4449, %v4453
    %vm4455 = vweird.f32 %v4304
    %vm4456 = vweird.f32 %v4449
    %vm4457 = vmor %vm4455, %vm4456
    %v4458 = vsel %vm4457, %v4449, %v4454
    %v4459 = vrsqrt.pop %v4305
    %v4460 = vmul.f32 %v4459, %v4305
    %v4461 = vmul.f32 %v4460, %v4459
    %v4462 = vmul.f32 0.5, %v4461
    %v4463 = vsub.f32 1.5, %v4462
    %v4464 = vmul.f32 %v4459, %v4463
    %vm4465 = vweird.f32 %v4305
    %vm4466 = vweird.f32 %v4459
    %vm4467 = vmor %vm4465, %vm4466
    %v4468 = vsel %vm4467, %v4459, %v4464
    %v4469 = vrsqrt.pop %v4306
    %v4470 = vmul.f32 %v4469, %v4306
    %v4471 = vmul.f32 %v4470, %v4469
    %v4472 = vmul.f32 0.5, %v4471
    %v4473 = vsub.f32 1.5, %v4472
    %v4474 = vmul.f32 %v4469, %v4473
    %vm4475 = vweird.f32 %v4306
    %vm4476 = vweird.f32 %v4469
    %vm4477 = vmor %vm4475, %vm4476
    %v4478 = vsel %vm4477, %v4469, %v4474
    %v4479 = vrsqrt.pop %v4307
    %v4480 = vmul.f32 %v4479, %v4307
    %v4481 = vmul.f32 %v4480, %v4479
    %v4482 = vmul.f32 0.5, %v4481
    %v4483 = vsub.f32 1.5, %v4482
    %v4484 = vmul.f32 %v4479, %v4483
    %vm4485 = vweird.f32 %v4307
    %vm4486 = vweird.f32 %v4479
    %vm4487 = vmor %vm4485, %vm4486
    %v4488 = vsel %vm4487, %v4479, %v4484
    %v4489 = vrsqrt.pop %v4308
    %v4490 = vmul.f32 %v4489, %v4308
    %v4491 = vmul.f32 %v4490, %v4489
    %v4492 = vmul.f32 0.5, %v4491
    %v4493 = vsub.f32 1.5, %v4492
    %v4494 = vmul.f32 %v4489, %v4493
    %vm4495 = vweird.f32 %v4308
    %vm4496 = vweird.f32 %v4489
    %vm4497 = vmor %vm4495, %vm4496
    %v4498 = vsel %vm4497, %v4489, %v4494
    %v4499 = vrsqrt.pop %v4309
    %v4500 = vmul.f32 %v4499, %v4309
    %v4501 = vmul.f32 %v4500, %v4499
    %v4502 = vmul.f32 0.5, %v4501
    %v4503 = vsub.f32 1.5, %v4502
    %v4504 = vmul.f32 %v4499, %v4503
    %vm4505 = vweird.f32 %v4309
    %vm4506 = vweird.f32 %v4499
    %vm4507 = vmor %vm4505, %vm4506
    %v4508 = vsel %vm4507, %v4499, %v4504
    %v4509 = vrsqrt.pop %v4310
    %v4510 = vmul.f32 %v4509, %v4310
    %v4511 = vmul.f32 %v4510, %v4509
    %v4512 = vmul.f32 0.5, %v4511
    %v4513 = vsub.f32 1.5, %v4512
    %v4514 = vmul.f32 %v4509, %v4513
    %vm4515 = vweird.f32 %v4310
    %vm4516 = vweird.f32 %v4509
    %vm4517 = vmor %vm4515, %vm4516
    %v4518 = vsel %vm4517, %v4509, %v4514
    %v4519 = vrsqrt.pop %v4311
    %v4520 = vmul.f32 %v4519, %v4311
    %v4521 = vmul.f32 %v4520, %v4519
    %v4522 = vmul.f32 0.5, %v4521
    %v4523 = vsub.f32 1.5, %v4522
    %v4524 = vmul.f32 %v4519, %v4523
    %vm4525 = vweird.f32 %v4311
    %vm4526 = vweird.f32 %v4519
    %vm4527 = vmor %vm4525, %vm4526
    %v4528 = vsel %vm4527, %v4519, %v4524
    %v4529 = vrsqrt.pop %v4312
    %v4530 = vmul.f32 %v4529, %v4312
    %v4531 = vmul.f32 %v4530, %v4529
    %v4532 = vmul.f32 0.5, %v4531
    %v4533 = vsub.f32 1.5, %v4532
    %v4534 = vmul.f32 %v4529, %v4533
    %vm4535 = vweird.f32 %v4312
    %vm4536 = vweird.f32 %v4529
    %vm4537 = vmor %vm4535, %vm4536
    %v4538 = vsel %vm4537, %v4529, %v4534
    %v4539 = vrsqrt.pop %v4313
    %v4540 = vmul.f32 %v4539, %v4313
    %v4541 = vmul.f32 %v4540, %v4539
    %v4542 = vmul.f32 0.5, %v4541
    %v4543 = vsub.f32 1.5, %v4542
    %v4544 = vmul.f32 %v4539, %v4543
    %vm4545 = vweird.f32 %v4313
    %vm4546 = vweird.f32 %v4539
    %vm4547 = vmor %vm4545, %vm4546
    %v4548 = vsel %vm4547, %v4539, %v4544
    %v4549 = vrsqrt.pop %v4314
    %v4550 = vmul.f32 %v4549, %v4314
    %v4551 = vmul.f32 %v4550, %v4549
    %v4552 = vmul.f32 0.5, %v4551
    %v4553 = vsub.f32 1.5, %v4552
    %v4554 = vmul.f32 %v4549, %v4553
    %vm4555 = vweird.f32 %v4314
    %vm4556 = vweird.f32 %v4549
    %vm4557 = vmor %vm4555, %vm4556
    %v4558 = vsel %vm4557, %v4549, %v4554
    %v4559 = vrsqrt.pop %v4315
    %v4560 = vmul.f32 %v4559, %v4315
    %v4561 = vmul.f32 %v4560, %v4559
    %v4562 = vmul.f32 0.5, %v4561
    %v4563 = vsub.f32 1.5, %v4562
    %v4564 = vmul.f32 %v4559, %v4563
    %vm4565 = vweird.f32 %v4315
    %vm4566 = vweird.f32 %v4559
    %vm4567 = vmor %vm4565, %vm4566
    %v4568 = vsel %vm4567, %v4559, %v4564
    %v4569 = vrsqrt.pop %v4316
    %v4570 = vmul.f32 %v4569, %v4316
    %v4571 = vmul.f32 %v4570, %v4569
    %v4572 = vmul.f32 0.5, %v4571
    %v4573 = vsub.f32 1.5, %v4572
    %v4574 = vmul.f32 %v4569, %v4573
    %vm4575 = vweird.f32 %v4316
    %vm4576 = vweird.f32 %v4569
    %vm4577 = vmor %vm4575, %vm4576
    %v4578 = vsel %vm4577, %v4569, %v4574
    %v4579 = vrsqrt.pop %v4317
    %v4580 = vmul.f32 %v4579, %v4317
    %v4581 = vmul.f32 %v4580, %v4579
    %v4582 = vmul.f32 0.5, %v4581
    %v4583 = vsub.f32 1.5, %v4582
    %v4584 = vmul.f32 %v4579, %v4583
    %vm4585 = vweird.f32 %v4317
    %vm4586 = vweird.f32 %v4579
    %vm4587 = vmor %vm4585, %vm4586
    %v4588 = vsel %vm4587, %v4579, %v4584
    %v4589 = vrsqrt.pop %v4318
    %v4590 = vmul.f32 %v4589, %v4318
    %v4591 = vmul.f32 %v4590, %v4589
    %v4592 = vmul.f32 0.5, %v4591
    %v4593 = vsub.f32 1.5, %v4592
    %v4594 = vmul.f32 %v4589, %v4593
    %vm4595 = vweird.f32 %v4318
    %vm4596 = vweird.f32 %v4589
    %vm4597 = vmor %vm4595, %vm4596
    %v4598 = vsel %vm4597, %v4589, %v4594
    %v4599 = vrsqrt.pop %v4319
    %v4600 = vmul.f32 %v4599, %v4319
    %v4601 = vmul.f32 %v4600, %v4599
    %v4602 = vmul.f32 0.5, %v4601
    %v4603 = vsub.f32 1.5, %v4602
    %v4604 = vmul.f32 %v4599, %v4603
    %vm4605 = vweird.f32 %v4319
    %vm4606 = vweird.f32 %v4599
    %vm4607 = vmor %vm4605, %vm4606
    %v4608 = vsel %vm4607, %v4599, %v4604
    %v4609 = vrsqrt.pop %v4320
    %v4610 = vmul.f32 %v4609, %v4320
    %v4611 = vmul.f32 %v4610, %v4609
    %v4612 = vmul.f32 0.5, %v4611
    %v4613 = vsub.f32 1.5, %v4612
    %v4614 = vmul.f32 %v4609, %v4613
    %vm4615 = vweird.f32 %v4320
    %vm4616 = vweird.f32 %v4609
    %vm4617 = vmor %vm4615, %vm4616
    %v4618 = vsel %vm4617, %v4609, %v4614
    %v4619 = vrsqrt.pop %v4321
    %v4620 = vmul.f32 %v4619, %v4321
    %v4621 = vmul.f32 %v4620, %v4619
    %v4622 = vmul.f32 0.5, %v4621
    %v4623 = vsub.f32 1.5, %v4622
    %v4624 = vmul.f32 %v4619, %v4623
    %vm4625 = vweird.f32 %v4321
    %vm4626 = vweird.f32 %v4619
    %vm4627 = vmor %vm4625, %vm4626
    %v4628 = vsel %vm4627, %v4619, %v4624
    %v4629 = vrsqrt.pop %v4322
    %v4630 = vmul.f32 %v4629, %v4322
    %v4631 = vmul.f32 %v4630, %v4629
    %v4632 = vmul.f32 0.5, %v4631
    %v4633 = vsub.f32 1.5, %v4632
    %v4634 = vmul.f32 %v4629, %v4633
    %vm4635 = vweird.f32 %v4322
    %vm4636 = vweird.f32 %v4629
    %vm4637 = vmor %vm4635, %vm4636
    %v4638 = vsel %vm4637, %v4629, %v4634
    %v4639 = vrsqrt.pop %v4323
    %v4640 = vmul.f32 %v4639, %v4323
    %v4641 = vmul.f32 %v4640, %v4639
    %v4642 = vmul.f32 0.5, %v4641
    %v4643 = vsub.f32 1.5, %v4642
    %v4644 = vmul.f32 %v4639, %v4643
    %vm4645 = vweird.f32 %v4323
    %vm4646 = vweird.f32 %v4639
    %vm4647 = vmor %vm4645, %vm4646
    %v4648 = vsel %vm4647, %v4639, %v4644
    %v4649 = vrsqrt.pop %v4324
    %v4650 = vmul.f32 %v4649, %v4324
    %v4651 = vmul.f32 %v4650, %v4649
    %v4652 = vmul.f32 0.5, %v4651
    %v4653 = vsub.f32 1.5, %v4652
    %v4654 = vmul.f32 %v4649, %v4653
    %vm4655 = vweird.f32 %v4324
    %vm4656 = vweird.f32 %v4649
    %vm4657 = vmor %vm4655, %vm4656
    %v4658 = vsel %vm4657, %v4649, %v4654
    %v4659 = vrsqrt.pop %v4325
    %v4660 = vmul.f32 %v4659, %v4325
    %v4661 = vmul.f32 %v4660, %v4659
    %v4662 = vmul.f32 0.5, %v4661
    %v4663 = vsub.f32 1.5, %v4662
    %v4664 = vmul.f32 %v4659, %v4663
    %vm4665 = vweird.f32 %v4325
    %vm4666 = vweird.f32 %v4659
    %vm4667 = vmor %vm4665, %vm4666
    %v4668 = vsel %vm4667, %v4659, %v4664
    %v4669 = vrsqrt.pop %v4326
    %v4670 = vmul.f32 %v4669, %v4326
    %v4671 = vmul.f32 %v4670, %v4669
    %v4672 = vmul.f32 0.5, %v4671
    %v4673 = vsub.f32 1.5, %v4672
    %v4674 = vmul.f32 %v4669, %v4673
    %vm4675 = vweird.f32 %v4326
    %vm4676 = vweird.f32 %v4669
    %vm4677 = vmor %vm4675, %vm4676
    %v4678 = vsel %vm4677, %v4669, %v4674
    %v4679 = vrsqrt.pop %v4327
    %v4680 = vmul.f32 %v4679, %v4327
    %v4681 = vmul.f32 %v4680, %v4679
    %v4682 = vmul.f32 0.5, %v4681
    %v4683 = vsub.f32 1.5, %v4682
    %v4684 = vmul.f32 %v4679, %v4683
    %vm4685 = vweird.f32 %v4327
    %vm4686 = vweird.f32 %v4679
    %vm4687 = vmor %vm4685, %vm4686
    %v4688 = vsel %vm4687, %v4679, %v4684
    %v4689 = vrsqrt.pop %v4328
    %v4690 = vmul.f32 %v4689, %v4328
    %v4691 = vmul.f32 %v4690, %v4689
    %v4692 = vmul.f32 0.5, %v4691
    %v4693 = vsub.f32 1.5, %v4692
    %v4694 = vmul.f32 %v4689, %v4693
    %vm4695 = vweird.f32 %v4328
    %vm4696 = vweird.f32 %v4689
    %vm4697 = vmor %vm4695, %vm4696
    %v4698 = vsel %vm4697, %v4689, %v4694
    %v4699 = vrsqrt.pop %v4329
    %v4700 = vmul.f32 %v4699, %v4329
    %v4701 = vmul.f32 %v4700, %v4699
    %v4702 = vmul.f32 0.5, %v4701
    %v4703 = vsub.f32 1.5, %v4702
    %v4704 = vmul.f32 %v4699, %v4703
    %vm4705 = vweird.f32 %v4329
    %vm4706 = vweird.f32 %v4699
    %vm4707 = vmor %vm4705, %vm4706
    %v4708 = vsel %vm4707, %v4699, %v4704
    %v4709 = vrsqrt.pop %v4330
    %v4710 = vmul.f32 %v4709, %v4330
    %v4711 = vmul.f32 %v4710, %v4709
    %v4712 = vmul.f32 0.5, %v4711
    %v4713 = vsub.f32 1.5, %v4712
    %v4714 = vmul.f32 %v4709, %v4713
    %vm4715 = vweird.f32 %v4330
    %vm4716 = vweird.f32 %v4709
    %vm4717 = vmor %vm4715, %vm4716
    %v4718 = vsel %vm4717, %v4709, %v4714
    %v4719 = vrsqrt.pop %v4331
    %v4720 = vmul.f32 %v4719, %v4331
    %v4721 = vmul.f32 %v4720, %v4719
    %v4722 = vmul.f32 0.5, %v4721
    %v4723 = vsub.f32 1.5, %v4722
    %v4724 = vmul.f32 %v4719, %v4723
    %vm4725 = vweird.f32 %v4331
    %vm4726 = vweird.f32 %v4719
    %vm4727 = vmor %vm4725, %vm4726
    %v4728 = vsel %vm4727, %v4719, %v4724
    %v4729 = vrsqrt.pop %v4332
    %v4730 = vmul.f32 %v4729, %v4332
    %v4731 = vmul.f32 %v4730, %v4729
    %v4732 = vmul.f32 0.5, %v4731
    %v4733 = vsub.f32 1.5, %v4732
    %v4734 = vmul.f32 %v4729, %v4733
    %vm4735 = vweird.f32 %v4332
    %vm4736 = vweird.f32 %v4729
    %vm4737 = vmor %vm4735, %vm4736
    %v4738 = vsel %vm4737, %v4729, %v4734
    %v4739 = vrsqrt.pop %v4333
    %v4740 = vmul.f32 %v4739, %v4333
    %v4741 = vmul.f32 %v4740, %v4739
    %v4742 = vmul.f32 0.5, %v4741
    %v4743 = vsub.f32 1.5, %v4742
    %v4744 = vmul.f32 %v4739, %v4743
    %vm4745 = vweird.f32 %v4333
    %vm4746 = vweird.f32 %v4739
    %vm4747 = vmor %vm4745, %vm4746
    %v4748 = vsel %vm4747, %v4739, %v4744
    %v4749 = vrsqrt.pop %v4334
    %v4750 = vmul.f32 %v4749, %v4334
    %v4751 = vmul.f32 %v4750, %v4749
    %v4752 = vmul.f32 0.5, %v4751
    %v4753 = vsub.f32 1.5, %v4752
    %v4754 = vmul.f32 %v4749, %v4753
    %vm4755 = vweird.f32 %v4334
    %vm4756 = vweird.f32 %v4749
    %vm4757 = vmor %vm4755, %vm4756
    %v4758 = vsel %vm4757, %v4749, %v4754
    %v4759 = vrsqrt.pop %v4335
    %v4760 = vmul.f32 %v4759, %v4335
    %v4761 = vmul.f32 %v4760, %v4759
    %v4762 = vmul.f32 0.5, %v4761
    %v4763 = vsub.f32 1.5, %v4762
    %v4764 = vmul.f32 %v4759, %v4763
    %vm4765 = vweird.f32 %v4335
    %vm4766 = vweird.f32 %v4759
    %vm4767 = vmor %vm4765, %vm4766
    %v4768 = vsel %vm4767, %v4759, %v4764
    %v4769 = vrsqrt.pop %v4336
    %v4770 = vmul.f32 %v4769, %v4336
    %v4771 = vmul.f32 %v4770, %v4769
    %v4772 = vmul.f32 0.5, %v4771
    %v4773 = vsub.f32 1.5, %v4772
    %v4774 = vmul.f32 %v4769, %v4773
    %vm4775 = vweird.f32 %v4336
    %vm4776 = vweird.f32 %v4769
    %vm4777 = vmor %vm4775, %vm4776
    %v4778 = vsel %vm4777, %v4769, %v4774
    %v4779 = vrsqrt.pop %v4337
    %v4780 = vmul.f32 %v4779, %v4337
    %v4781 = vmul.f32 %v4780, %v4779
    %v4782 = vmul.f32 0.5, %v4781
    %v4783 = vsub.f32 1.5, %v4782
    %v4784 = vmul.f32 %v4779, %v4783
    %vm4785 = vweird.f32 %v4337
    %vm4786 = vweird.f32 %v4779
    %vm4787 = vmor %vm4785, %vm4786
    %v4788 = vsel %vm4787, %v4779, %v4784
    %v4789 = vrsqrt.pop %v4338
    %v4790 = vmul.f32 %v4789, %v4338
    %v4791 = vmul.f32 %v4790, %v4789
    %v4792 = vmul.f32 0.5, %v4791
    %v4793 = vsub.f32 1.5, %v4792
    %v4794 = vmul.f32 %v4789, %v4793
    %vm4795 = vweird.f32 %v4338
    %vm4796 = vweird.f32 %v4789
    %vm4797 = vmor %vm4795, %vm4796
    %v4798 = vsel %vm4797, %v4789, %v4794
    %v4799 = vrsqrt.pop %v4339
    %v4800 = vmul.f32 %v4799, %v4339
    %v4801 = vmul.f32 %v4800, %v4799
    %v4802 = vmul.f32 0.5, %v4801
    %v4803 = vsub.f32 1.5, %v4802
    %v4804 = vmul.f32 %v4799, %v4803
    %vm4805 = vweird.f32 %v4339
    %vm4806 = vweird.f32 %v4799
    %vm4807 = vmor %vm4805, %vm4806
    %v4808 = vsel %vm4807, %v4799, %v4804
    %v4809 = vrsqrt.pop %v4340
    %v4810 = vmul.f32 %v4809, %v4340
    %v4811 = vmul.f32 %v4810, %v4809
    %v4812 = vmul.f32 0.5, %v4811
    %v4813 = vsub.f32 1.5, %v4812
    %v4814 = vmul.f32 %v4809, %v4813
    %vm4815 = vweird.f32 %v4340
    %vm4816 = vweird.f32 %v4809
    %vm4817 = vmor %vm4815, %vm4816
    %v4818 = vsel %vm4817, %v4809, %v4814
    %v4819 = vrsqrt.pop %v4341
    %v4820 = vmul.f32 %v4819, %v4341
    %v4821 = vmul.f32 %v4820, %v4819
    %v4822 = vmul.f32 0.5, %v4821
    %v4823 = vsub.f32 1.5, %v4822
    %v4824 = vmul.f32 %v4819, %v4823
    %vm4825 = vweird.f32 %v4341
    %vm4826 = vweird.f32 %v4819
    %vm4827 = vmor %vm4825, %vm4826
    %v4828 = vsel %vm4827, %v4819, %v4824
    %v4829 = vrsqrt.pop %v4342
    %v4830 = vmul.f32 %v4829, %v4342
    %v4831 = vmul.f32 %v4830, %v4829
    %v4832 = vmul.f32 0.5, %v4831
    %v4833 = vsub.f32 1.5, %v4832
    %v4834 = vmul.f32 %v4829, %v4833
    %vm4835 = vweird.f32 %v4342
    %vm4836 = vweird.f32 %v4829
    %vm4837 = vmor %vm4835, %vm4836
    %v4838 = vsel %vm4837, %v4829, %v4834
    %v4839 = vrsqrt.pop %v4343
    %v4840 = vmul.f32 %v4839, %v4343
    %v4841 = vmul.f32 %v4840, %v4839
    %v4842 = vmul.f32 0.5, %v4841
    %v4843 = vsub.f32 1.5, %v4842
    %v4844 = vmul.f32 %v4839, %v4843
    %vm4845 = vweird.f32 %v4343
    %vm4846 = vweird.f32 %v4839
    %vm4847 = vmor %vm4845, %vm4846
    %v4848 = vsel %vm4847, %v4839, %v4844
    %v4849 = vrsqrt.pop %v4344
    %v4850 = vmul.f32 %v4849, %v4344
    %v4851 = vmul.f32 %v4850, %v4849
    %v4852 = vmul.f32 0.5, %v4851
    %v4853 = vsub.f32 1.5, %v4852
    %v4854 = vmul.f32 %v4849, %v4853
    %vm4855 = vweird.f32 %v4344
    %vm4856 = vweird.f32 %v4849
    %vm4857 = vmor %vm4855, %vm4856
    %v4858 = vsel %vm4857, %v4849, %v4854
    %v4859 = vrsqrt.pop %v4345
    %v4860 = vmul.f32 %v4859, %v4345
    %v4861 = vmul.f32 %v4860, %v4859
    %v4862 = vmul.f32 0.5, %v4861
    %v4863 = vsub.f32 1.5, %v4862
    %v4864 = vmul.f32 %v4859, %v4863
    %vm4865 = vweird.f32 %v4345
    %vm4866 = vweird.f32 %v4859
    %vm4867 = vmor %vm4865, %vm4866
    %v4868 = vsel %vm4867, %v4859, %v4864
    %v4869 = vrsqrt.pop %v4346
    %v4870 = vmul.f32 %v4869, %v4346
    %v4871 = vmul.f32 %v4870, %v4869
    %v4872 = vmul.f32 0.5, %v4871
    %v4873 = vsub.f32 1.5, %v4872
    %v4874 = vmul.f32 %v4869, %v4873
    %vm4875 = vweird.f32 %v4346
    %vm4876 = vweird.f32 %v4869
    %vm4877 = vmor %vm4875, %vm4876
    %v4878 = vsel %vm4877, %v4869, %v4874
    %v4879 = vrsqrt.pop %v4347
    %v4880 = vmul.f32 %v4879, %v4347
    %v4881 = vmul.f32 %v4880, %v4879
    %v4882 = vmul.f32 0.5, %v4881
    %v4883 = vsub.f32 1.5, %v4882
    %v4884 = vmul.f32 %v4879, %v4883
    %vm4885 = vweird.f32 %v4347
    %vm4886 = vweird.f32 %v4879
    %vm4887 = vmor %vm4885, %vm4886
    %v4888 = vsel %vm4887, %v4879, %v4884
    %v4889 = vrsqrt.pop %v4348
    %v4890 = vmul.f32 %v4889, %v4348
    %v4891 = vmul.f32 %v4890, %v4889
    %v4892 = vmul.f32 0.5, %v4891
    %v4893 = vsub.f32 1.5, %v4892
    %v4894 = vmul.f32 %v4889, %v4893
    %vm4895 = vweird.f32 %v4348
    %vm4896 = vweird.f32 %v4889
    %vm4897 = vmor %vm4895, %vm4896
    %v4898 = vsel %vm4897, %v4889, %v4894
    %v4899 = vrsqrt.pop %v4349
    %v4900 = vmul.f32 %v4899, %v4349
    %v4901 = vmul.f32 %v4900, %v4899
    %v4902 = vmul.f32 0.5, %v4901
    %v4903 = vsub.f32 1.5, %v4902
    %v4904 = vmul.f32 %v4899, %v4903
    %vm4905 = vweird.f32 %v4349
    %vm4906 = vweird.f32 %v4899
    %vm4907 = vmor %vm4905, %vm4906
    %v4908 = vsel %vm4907, %v4899, %v4904
    %v4909 = vrsqrt.pop %v4350
    %v4910 = vmul.f32 %v4909, %v4350
    %v4911 = vmul.f32 %v4910, %v4909
    %v4912 = vmul.f32 0.5, %v4911
    %v4913 = vsub.f32 1.5, %v4912
    %v4914 = vmul.f32 %v4909, %v4913
    %vm4915 = vweird.f32 %v4350
    %vm4916 = vweird.f32 %v4909
    %vm4917 = vmor %vm4915, %vm4916
    %v4918 = vsel %vm4917, %v4909, %v4914
    %v4919 = vrsqrt.pop %v4351
    %v4920 = vmul.f32 %v4919, %v4351
    %v4921 = vmul.f32 %v4920, %v4919
    %v4922 = vmul.f32 0.5, %v4921
    %v4923 = vsub.f32 1.5, %v4922
    %v4924 = vmul.f32 %v4919, %v4923
    %vm4925 = vweird.f32 %v4351
    %vm4926 = vweird.f32 %v4919
    %vm4927 = vmor %vm4925, %vm4926
    %v4928 = vsel %vm4927, %v4919, %v4924
    %v4929 = vrsqrt.pop %v4352
    %v4930 = vmul.f32 %v4929, %v4352
    %v4931 = vmul.f32 %v4930, %v4929
    %v4932 = vmul.f32 0.5, %v4931
    %v4933 = vsub.f32 1.5, %v4932
    %v4934 = vmul.f32 %v4929, %v4933
    %vm4935 = vweird.f32 %v4352
    %vm4936 = vweird.f32 %v4929
    %vm4937 = vmor %vm4935, %vm4936
    %v4938 = vsel %vm4937, %v4929, %v4934
    %v4939 = vrsqrt.pop %v4353
    %v4940 = vmul.f32 %v4939, %v4353
    %v4941 = vmul.f32 %v4940, %v4939
    %v4942 = vmul.f32 0.5, %v4941
    %v4943 = vsub.f32 1.5, %v4942
    %v4944 = vmul.f32 %v4939, %v4943
    %vm4945 = vweird.f32 %v4353
    %vm4946 = vweird.f32 %v4939
    %vm4947 = vmor %vm4945, %vm4946
    %v4948 = vsel %vm4947, %v4939, %v4944
    %v4949 = vrsqrt.pop %v4354
    %v4950 = vmul.f32 %v4949, %v4354
    %v4951 = vmul.f32 %v4950, %v4949
    %v4952 = vmul.f32 0.5, %v4951
    %v4953 = vsub.f32 1.5, %v4952
    %v4954 = vmul.f32 %v4949, %v4953
    %vm4955 = vweird.f32 %v4354
    %vm4956 = vweird.f32 %v4949
    %vm4957 = vmor %vm4955, %vm4956
    %v4958 = vsel %vm4957, %v4949, %v4954
    %v4959 = vrsqrt.pop %v4355
    %v4960 = vmul.f32 %v4959, %v4355
    %v4961 = vmul.f32 %v4960, %v4959
    %v4962 = vmul.f32 0.5, %v4961
    %v4963 = vsub.f32 1.5, %v4962
    %v4964 = vmul.f32 %v4959, %v4963
    %vm4965 = vweird.f32 %v4355
    %vm4966 = vweird.f32 %v4959
    %vm4967 = vmor %vm4965, %vm4966
    %v4968 = vsel %vm4967, %v4959, %v4964
    %v4969 = vrsqrt.pop %v4356
    %v4970 = vmul.f32 %v4969, %v4356
    %v4971 = vmul.f32 %v4970, %v4969
    %v4972 = vmul.f32 0.5, %v4971
    %v4973 = vsub.f32 1.5, %v4972
    %v4974 = vmul.f32 %v4969, %v4973
    %vm4975 = vweird.f32 %v4356
    %vm4976 = vweird.f32 %v4969
    %vm4977 = vmor %vm4975, %vm4976
    %v4978 = vsel %vm4977, %v4969, %v4974
    %v4979 = vrsqrt.pop %v4357
    %v4980 = vmul.f32 %v4979, %v4357
    %v4981 = vmul.f32 %v4980, %v4979
    %v4982 = vmul.f32 0.5, %v4981
    %v4983 = vsub.f32 1.5, %v4982
    %v4984 = vmul.f32 %v4979, %v4983
    %vm4985 = vweird.f32 %v4357
    %vm4986 = vweird.f32 %v4979
    %vm4987 = vmor %vm4985, %vm4986
    %v4988 = vsel %vm4987, %v4979, %v4984
    %v4989 = vrsqrt.pop %v4358
    %v4990 = vmul.f32 %v4989, %v4358
    %v4991 = vmul.f32 %v4990, %v4989
    %v4992 = vmul.f32 0.5, %v4991
    %v4993 = vsub.f32 1.5, %v4992
    %v4994 = vmul.f32 %v4989, %v4993
    %vm4995 = vweird.f32 %v4358
    %vm4996 = vweird.f32 %v4989
    %vm4997 = vmor %vm4995, %vm4996
    %v4998 = vsel %vm4997, %v4989, %v4994
    %v4999 = vmul.f32 %v4231, %v4368
    %v5000 = vmul.f32 %v4232, %v4378
    %v5001 = vmul.f32 %v4233, %v4388
    %v5002 = vmul.f32 %v4234, %v4398
    %v5003 = vmul.f32 %v4235, %v4408
    %v5004 = vmul.f32 %v4236, %v4418
    %v5005 = vmul.f32 %v4237, %v4428
    %v5006 = vmul.f32 %v4238, %v4438
    %v5007 = vmul.f32 %v4239, %v4448
    %v5008 = vmul.f32 %v4240, %v4458
    %v5009 = vmul.f32 %v4241, %v4468
    %v5010 = vmul.f32 %v4242, %v4478
    %v5011 = vmul.f32 %v4243, %v4488
    %v5012 = vmul.f32 %v4244, %v4498
    %v5013 = vmul.f32 %v4245, %v4508
    %v5014 = vmul.f32 %v4246, %v4518
    %v5015 = vmul.f32 %v4247, %v4528
    %v5016 = vmul.f32 %v4248, %v4538
    %v5017 = vmul.f32 %v4249, %v4548
    %v5018 = vmul.f32 %v4250, %v4558
    %v5019 = vmul.f32 %v4251, %v4568
    %v5020 = vmul.f32 %v4252, %v4578
    %v5021 = vmul.f32 %v4253, %v4588
    %v5022 = vmul.f32 %v4254, %v4598
    %v5023 = vmul.f32 %v4255, %v4608
    %v5024 = vmul.f32 %v4256, %v4618
    %v5025 = vmul.f32 %v4257, %v4628
    %v5026 = vmul.f32 %v4258, %v4638
    %v5027 = vmul.f32 %v4259, %v4648
    %v5028 = vmul.f32 %v4260, %v4658
    %v5029 = vmul.f32 %v4261, %v4668
    %v5030 = vmul.f32 %v4262, %v4678
    %v5031 = vmul.f32 %v4263, %v4688
    %v5032 = vmul.f32 %v4264, %v4698
    %v5033 = vmul.f32 %v4265, %v4708
    %v5034 = vmul.f32 %v4266, %v4718
    %v5035 = vmul.f32 %v4267, %v4728
    %v5036 = vmul.f32 %v4268, %v4738
    %v5037 = vmul.f32 %v4269, %v4748
    %v5038 = vmul.f32 %v4270, %v4758
    %v5039 = vmul.f32 %v4271, %v4768
    %v5040 = vmul.f32 %v4272, %v4778
    %v5041 = vmul.f32 %v4273, %v4788
    %v5042 = vmul.f32 %v4274, %v4798
    %v5043 = vmul.f32 %v4275, %v4808
    %v5044 = vmul.f32 %v4276, %v4818
    %v5045 = vmul.f32 %v4277, %v4828
    %v5046 = vmul.f32 %v4278, %v4838
    %v5047 = vmul.f32 %v4279, %v4848
    %v5048 = vmul.f32 %v4280, %v4858
    %v5049 = vmul.f32 %v4281, %v4868
    %v5050 = vmul.f32 %v4282, %v4878
    %v5051 = vmul.f32 %v4283, %v4888
    %v5052 = vmul.f32 %v4284, %v4898
    %v5053 = vmul.f32 %v4285, %v4908
    %v5054 = vmul.f32 %v4286, %v4918
    %v5055 = vmul.f32 %v4287, %v4928
    %v5056 = vmul.f32 %v4288, %v4938
    %v5057 = vmul.f32 %v4289, %v4948
    %v5058 = vmul.f32 %v4290, %v4958
    %v5059 = vmul.f32 %v4291, %v4968
    %v5060 = vmul.f32 %v4292, %v4978
    %v5061 = vmul.f32 %v4293, %v4988
    %v5062 = vmul.f32 %v4294, %v4998
    %v5063 = vld [vmem:[%s4] sm:$0xff]
    %v5064 = vld [vmem:[%s4 + $0x8] sm:$0xff]
    %v5065 = vld [vmem:[%s4 + $0x10] sm:$0xff]
    %v5066 = vld [vmem:[%s4 + $0x18] sm:$0xff]
    %v5067 = vld [vmem:[%s4 + $0x20] sm:$0xff]
    %v5068 = vld [vmem:[%s4 + $0x28] sm:$0xff]
    %v5069 = vld [vmem:[%s4 + $0x30] sm:$0xff]
    %v5070 = vld [vmem:[%s4 + $0x38] sm:$0xff]
    %v5072 = vsel %vm2787, %v4999, 0
    %v5075 = vsel %vm2787, %v5000, 0
    %v5078 = vsel %vm2787, %v5001, 0
    %v5081 = vsel %vm2787, %v5002, 0
    %v5084 = vsel %vm2787, %v5003, 0
    %v5087 = vsel %vm2787, %v5004, 0
    %v5090 = vsel %vm2787, %v5005, 0
    %v5093 = vsel %vm2787, %v5006, 0
    %v5096 = vsel %vm2787, %v5007, 0
    %v5099 = vsel %vm2787, %v5008, 0
    %v5102 = vsel %vm2787, %v5009, 0
    %v5105 = vsel %vm2787, %v5010, 0
    %v5108 = vsel %vm2787, %v5011, 0
    %v5111 = vsel %vm2787, %v5012, 0
    %v5114 = vsel %vm2787, %v5013, 0
    %v5117 = vsel %vm2787, %v5014, 0
    %v5120 = vsel %vm2787, %v5015, 0
    %v5123 = vsel %vm2787, %v5016, 0
    %v5126 = vsel %vm2787, %v5017, 0
    %v5129 = vsel %vm2787, %v5018, 0
    %v5132 = vsel %vm2787, %v5019, 0
    %v5135 = vsel %vm2787, %v5020, 0
    %v5138 = vsel %vm2787, %v5021, 0
    %v5141 = vsel %vm2787, %v5022, 0
    %v5144 = vsel %vm2787, %v5023, 0
    %v5147 = vsel %vm2787, %v5024, 0
    %v5150 = vsel %vm2787, %v5025, 0
    %v5153 = vsel %vm2787, %v5026, 0
    %v5156 = vsel %vm2787, %v5027, 0
    %v5159 = vsel %vm2787, %v5028, 0
    %v5162 = vsel %vm2787, %v5029, 0
    %v5165 = vsel %vm2787, %v5030, 0
    %v5168 = vsel %vm2787, %v5031, 0
    %v5171 = vsel %vm2787, %v5032, 0
    %v5174 = vsel %vm2787, %v5033, 0
    %v5177 = vsel %vm2787, %v5034, 0
    %v5180 = vsel %vm2787, %v5035, 0
    %v5183 = vsel %vm2787, %v5036, 0
    %v5186 = vsel %vm2787, %v5037, 0
    %v5189 = vsel %vm2787, %v5038, 0
    %v5192 = vsel %vm2787, %v5039, 0
    %v5195 = vsel %vm2787, %v5040, 0
    %v5198 = vsel %vm2787, %v5041, 0
    %v5201 = vsel %vm2787, %v5042, 0
    %v5204 = vsel %vm2787, %v5043, 0
    %v5207 = vsel %vm2787, %v5044, 0
    %v5210 = vsel %vm2787, %v5045, 0
    %v5213 = vsel %vm2787, %v5046, 0
    %v5216 = vsel %vm2787, %v5047, 0
    %v5219 = vsel %vm2787, %v5048, 0
    %v5222 = vsel %vm2787, %v5049, 0
    %v5225 = vsel %vm2787, %v5050, 0
    %v5228 = vsel %vm2787, %v5051, 0
    %v5231 = vsel %vm2787, %v5052, 0
    %v5234 = vsel %vm2787, %v5053, 0
    %v5237 = vsel %vm2787, %v5054, 0
    %v5240 = vsel %vm2787, %v5055, 0
    %v5243 = vsel %vm2787, %v5056, 0
    %v5246 = vsel %vm2787, %v5057, 0
    %v5249 = vsel %vm2787, %v5058, 0
    %v5252 = vsel %vm2787, %v5059, 0
    %v5255 = vsel %vm2787, %v5060, 0
    %v5258 = vsel %vm2787, %v5061, 0
    %v5261 = vsel %vm2787, %v5062, 0
    %5263 = vmatpush.msra.mxu0 0.0
    %5264 = vmatpush.msra.mxu0 0.0
    %5265 = vmatpush.msra.mxu0 0.0
    %5266 = vmatpush.msra.mxu0 0.0
    %5267 = vmatpush.msra.mxu0 0.0
    %5268 = vmatpush.msra.mxu0 0.0
    %5269 = vmatpush.msra.mxu0 0.0
    %5270 = vmatpush.msra.mxu0 0.0
    %5271 = vmatpush.msra.mxu0 %v5070
    %5272 = vmatpush.msra.mxu0 %v5069
    %5273 = vmatpush.msra.mxu0 %v5068
    %5274 = vmatpush.msra.mxu0 %v5067
    %5275 = vmatpush.msra.mxu0 %v5066
    %5276 = vmatpush.msra.mxu0 %v5065
    %5277 = vmatpush.msra.mxu0 %v5064
    %5278 = vmatpush.msra.mxu0 %v5063
    %5279 = vmatmul.f32.gmra.mxu0 %v5072
    %v5280 = vpop.f32.mrf.mxu0
    %v5281 = vadd.f32 0.0, %v5280
    %5282 = vmatmul.f32.gmra.mxu0 %v5075
    %v5283 = vpop.f32.mrf.mxu0
    %v5284 = vadd.f32 0.0, %v5283
    %5285 = vmatmul.f32.gmra.mxu0 %v5078
    %v5286 = vpop.f32.mrf.mxu0
    %v5287 = vadd.f32 0.0, %v5286
    %5288 = vmatmul.f32.gmra.mxu0 %v5081
    %v5289 = vpop.f32.mrf.mxu0
    %v5290 = vadd.f32 0.0, %v5289
    %5291 = vmatmul.f32.gmra.mxu0 %v5084
    %v5292 = vpop.f32.mrf.mxu0
    %v5293 = vadd.f32 0.0, %v5292
    %5294 = vmatmul.f32.gmra.mxu0 %v5087
    %v5295 = vpop.f32.mrf.mxu0
    %v5296 = vadd.f32 0.0, %v5295
    %5297 = vmatmul.f32.gmra.mxu0 %v5090
    %v5298 = vpop.f32.mrf.mxu0
    %v5299 = vadd.f32 0.0, %v5298
    %5300 = vmatmul.f32.gmra.mxu0 %v5093
    %v5301 = vpop.f32.mrf.mxu0
    %v5302 = vadd.f32 0.0, %v5301
    %5303 = vmatmul.f32.gmra.mxu0 %v5096
    %v5304 = vpop.f32.mrf.mxu0
    %v5305 = vadd.f32 0.0, %v5304
    %5306 = vmatmul.f32.gmra.mxu0 %v5099
    %v5307 = vpop.f32.mrf.mxu0
    %v5308 = vadd.f32 0.0, %v5307
    %5309 = vmatmul.f32.gmra.mxu0 %v5102
    %v5310 = vpop.f32.mrf.mxu0
    %v5311 = vadd.f32 0.0, %v5310
    %5312 = vmatmul.f32.gmra.mxu0 %v5105
    %v5313 = vpop.f32.mrf.mxu0
    %v5314 = vadd.f32 0.0, %v5313
    %5315 = vmatmul.f32.gmra.mxu0 %v5108
    %v5316 = vpop.f32.mrf.mxu0
    %v5317 = vadd.f32 0.0, %v5316
    %5318 = vmatmul.f32.gmra.mxu0 %v5111
    %v5319 = vpop.f32.mrf.mxu0
    %v5320 = vadd.f32 0.0, %v5319
    %5321 = vmatmul.f32.gmra.mxu0 %v5114
    %v5322 = vpop.f32.mrf.mxu0
    %v5323 = vadd.f32 0.0, %v5322
    %5324 = vmatmul.f32.gmra.mxu0 %v5117
    %v5325 = vpop.f32.mrf.mxu0
    %v5326 = vadd.f32 0.0, %v5325
    %5327 = vmatmul.f32.gmra.mxu0 %v5120
    %v5328 = vpop.f32.mrf.mxu0
    %v5329 = vadd.f32 0.0, %v5328
    %5330 = vmatmul.f32.gmra.mxu0 %v5123
    %v5331 = vpop.f32.mrf.mxu0
    %v5332 = vadd.f32 0.0, %v5331
    %5333 = vmatmul.f32.gmra.mxu0 %v5126
    %v5334 = vpop.f32.mrf.mxu0
    %v5335 = vadd.f32 0.0, %v5334
    %5336 = vmatmul.f32.gmra.mxu0 %v5129
    %v5337 = vpop.f32.mrf.mxu0
    %v5338 = vadd.f32 0.0, %v5337
    %5339 = vmatmul.f32.gmra.mxu0 %v5132
    %v5340 = vpop.f32.mrf.mxu0
    %v5341 = vadd.f32 0.0, %v5340
    %5342 = vmatmul.f32.gmra.mxu0 %v5135
    %v5343 = vpop.f32.mrf.mxu0
    %v5344 = vadd.f32 0.0, %v5343
    %5345 = vmatmul.f32.gmra.mxu0 %v5138
    %v5346 = vpop.f32.mrf.mxu0
    %v5347 = vadd.f32 0.0, %v5346
    %5348 = vmatmul.f32.gmra.mxu0 %v5141
    %v5349 = vpop.f32.mrf.mxu0
    %v5350 = vadd.f32 0.0, %v5349
    %5351 = vmatmul.f32.gmra.mxu0 %v5144
    %v5352 = vpop.f32.mrf.mxu0
    %v5353 = vadd.f32 0.0, %v5352
    %5354 = vmatmul.f32.gmra.mxu0 %v5147
    %v5355 = vpop.f32.mrf.mxu0
    %v5356 = vadd.f32 0.0, %v5355
    %5357 = vmatmul.f32.gmra.mxu0 %v5150
    %v5358 = vpop.f32.mrf.mxu0
    %v5359 = vadd.f32 0.0, %v5358
    %5360 = vmatmul.f32.gmra.mxu0 %v5153
    %v5361 = vpop.f32.mrf.mxu0
    %v5362 = vadd.f32 0.0, %v5361
    %5363 = vmatmul.f32.gmra.mxu0 %v5156
    %v5364 = vpop.f32.mrf.mxu0
    %v5365 = vadd.f32 0.0, %v5364
    %5366 = vmatmul.f32.gmra.mxu0 %v5159
    %v5367 = vpop.f32.mrf.mxu0
    %v5368 = vadd.f32 0.0, %v5367
    %5369 = vmatmul.f32.gmra.mxu0 %v5162
    %v5370 = vpop.f32.mrf.mxu0
    %v5371 = vadd.f32 0.0, %v5370
    %5372 = vmatmul.f32.gmra.mxu0 %v5165
    %v5373 = vpop.f32.mrf.mxu0
    %v5374 = vadd.f32 0.0, %v5373
    %5375 = vmatmul.f32.gmra.mxu0 %v5168
    %v5376 = vpop.f32.mrf.mxu0
    %v5377 = vadd.f32 0.0, %v5376
    %5378 = vmatmul.f32.gmra.mxu0 %v5171
    %v5379 = vpop.f32.mrf.mxu0
    %v5380 = vadd.f32 0.0, %v5379
    %5381 = vmatmul.f32.gmra.mxu0 %v5174
    %v5382 = vpop.f32.mrf.mxu0
    %v5383 = vadd.f32 0.0, %v5382
    %5384 = vmatmul.f32.gmra.mxu0 %v5177
    %v5385 = vpop.f32.mrf.mxu0
    %v5386 = vadd.f32 0.0, %v5385
    %5387 = vmatmul.f32.gmra.mxu0 %v5180
    %v5388 = vpop.f32.mrf.mxu0
    %v5389 = vadd.f32 0.0, %v5388
    %5390 = vmatmul.f32.gmra.mxu0 %v5183
    %v5391 = vpop.f32.mrf.mxu0
    %v5392 = vadd.f32 0.0, %v5391
    %5393 = vmatmul.f32.gmra.mxu0 %v5186
    %v5394 = vpop.f32.mrf.mxu0
    %v5395 = vadd.f32 0.0, %v5394
    %5396 = vmatmul.f32.gmra.mxu0 %v5189
    %v5397 = vpop.f32.mrf.mxu0
    %v5398 = vadd.f32 0.0, %v5397
    %5399 = vmatmul.f32.gmra.mxu0 %v5192
    %v5400 = vpop.f32.mrf.mxu0
    %v5401 = vadd.f32 0.0, %v5400
    %5402 = vmatmul.f32.gmra.mxu0 %v5195
    %v5403 = vpop.f32.mrf.mxu0
    %v5404 = vadd.f32 0.0, %v5403
    %5405 = vmatmul.f32.gmra.mxu0 %v5198
    %v5406 = vpop.f32.mrf.mxu0
    %v5407 = vadd.f32 0.0, %v5406
    %5408 = vmatmul.f32.gmra.mxu0 %v5201
    %v5409 = vpop.f32.mrf.mxu0
    %v5410 = vadd.f32 0.0, %v5409
    %5411 = vmatmul.f32.gmra.mxu0 %v5204
    %v5412 = vpop.f32.mrf.mxu0
    %v5413 = vadd.f32 0.0, %v5412
    %5414 = vmatmul.f32.gmra.mxu0 %v5207
    %v5415 = vpop.f32.mrf.mxu0
    %v5416 = vadd.f32 0.0, %v5415
    %5417 = vmatmul.f32.gmra.mxu0 %v5210
    %v5418 = vpop.f32.mrf.mxu0
    %v5419 = vadd.f32 0.0, %v5418
    %5420 = vmatmul.f32.gmra.mxu0 %v5213
    %v5421 = vpop.f32.mrf.mxu0
    %v5422 = vadd.f32 0.0, %v5421
    %5423 = vmatmul.f32.gmra.mxu0 %v5216
    %v5424 = vpop.f32.mrf.mxu0
    %v5425 = vadd.f32 0.0, %v5424
    %5426 = vmatmul.f32.gmra.mxu0 %v5219
    %v5427 = vpop.f32.mrf.mxu0
    %v5428 = vadd.f32 0.0, %v5427
    %5429 = vmatmul.f32.gmra.mxu0 %v5222
    %v5430 = vpop.f32.mrf.mxu0
    %v5431 = vadd.f32 0.0, %v5430
    %5432 = vmatmul.f32.gmra.mxu0 %v5225
    %v5433 = vpop.f32.mrf.mxu0
    %v5434 = vadd.f32 0.0, %v5433
    %5435 = vmatmul.f32.gmra.mxu0 %v5228
    %v5436 = vpop.f32.mrf.mxu0
    %v5437 = vadd.f32 0.0, %v5436
    %5438 = vmatmul.f32.gmra.mxu0 %v5231
    %v5439 = vpop.f32.mrf.mxu0
    %v5440 = vadd.f32 0.0, %v5439
    %5441 = vmatmul.f32.gmra.mxu0 %v5234
    %v5442 = vpop.f32.mrf.mxu0
    %v5443 = vadd.f32 0.0, %v5442
    %5444 = vmatmul.f32.gmra.mxu0 %v5237
    %v5445 = vpop.f32.mrf.mxu0
    %v5446 = vadd.f32 0.0, %v5445
    %5447 = vmatmul.f32.gmra.mxu0 %v5240
    %v5448 = vpop.f32.mrf.mxu0
    %v5449 = vadd.f32 0.0, %v5448
    %5450 = vmatmul.f32.gmra.mxu0 %v5243
    %v5451 = vpop.f32.mrf.mxu0
    %v5452 = vadd.f32 0.0, %v5451
    %5453 = vmatmul.f32.gmra.mxu0 %v5246
    %v5454 = vpop.f32.mrf.mxu0
    %v5455 = vadd.f32 0.0, %v5454
    %5456 = vmatmul.f32.gmra.mxu0 %v5249
    %v5457 = vpop.f32.mrf.mxu0
    %v5458 = vadd.f32 0.0, %v5457
    %5459 = vmatmul.f32.gmra.mxu0 %v5252
    %v5460 = vpop.f32.mrf.mxu0
    %v5461 = vadd.f32 0.0, %v5460
    %5462 = vmatmul.f32.gmra.mxu0 %v5255
    %v5463 = vpop.f32.mrf.mxu0
    %v5464 = vadd.f32 0.0, %v5463
    %5465 = vmatmul.f32.gmra.mxu0 %v5258
    %v5466 = vpop.f32.mrf.mxu0
    %v5467 = vadd.f32 0.0, %v5466
    %5468 = vmatmul.f32.gmra.mxu0 %v5261
    %v5469 = vpop.f32.mrf.mxu0
    %v5470 = vadd.f32 0.0, %v5469
    %5471 = vdwg.mxu0
    %v5472 = vsel %vm2787, %v5281, -inf
    %v5473 = vsel %vm2787, %v5284, -inf
    %v5474 = vmax.f32 %v5472, %v5473
    %v5475 = vsel %vm2787, %v5287, -inf
    %v5476 = vmax.f32 %v5474, %v5475
    %v5477 = vsel %vm2787, %v5290, -inf
    %v5478 = vmax.f32 %v5476, %v5477
    %v5479 = vsel %vm2787, %v5293, -inf
    %v5480 = vmax.f32 %v5478, %v5479
    %v5481 = vsel %vm2787, %v5296, -inf
    %v5482 = vmax.f32 %v5480, %v5481
    %v5483 = vsel %vm2787, %v5299, -inf
    %v5484 = vmax.f32 %v5482, %v5483
    %v5485 = vsel %vm2787, %v5302, -inf
    %v5486 = vmax.f32 %v5484, %v5485
    %v5487 = vrot.slane %v5486, 4
    %v5488 = vmax.f32 %v5486, %v5487
    %v5489 = vrot.slane %v5488, 2
    %v5490 = vmax.f32 %v5488, %v5489
    %v5491 = vrot.slane %v5490, 1
    %v5492 = vmax.f32 %v5490, %v5491
    %v5493 = vsel %vm2787, %v5305, -inf
    %v5494 = vsel %vm2787, %v5308, -inf
    %v5495 = vmax.f32 %v5493, %v5494
    %v5496 = vsel %vm2787, %v5311, -inf
    %v5497 = vmax.f32 %v5495, %v5496
    %v5498 = vsel %vm2787, %v5314, -inf
    %v5499 = vmax.f32 %v5497, %v5498
    %v5500 = vsel %vm2787, %v5317, -inf
    %v5501 = vmax.f32 %v5499, %v5500
    %v5502 = vsel %vm2787, %v5320, -inf
    %v5503 = vmax.f32 %v5501, %v5502
    %v5504 = vsel %vm2787, %v5323, -inf
    %v5505 = vmax.f32 %v5503, %v5504
    %v5506 = vsel %vm2787, %v5326, -inf
    %v5507 = vmax.f32 %v5505, %v5506
    %v5508 = vrot.slane %v5507, 4
    %v5509 = vmax.f32 %v5507, %v5508
    %v5510 = vrot.slane %v5509, 2
    %v5511 = vmax.f32 %v5509, %v5510
    %v5512 = vrot.slane %v5511, 1
    %v5513 = vmax.f32 %v5511, %v5512
    %v5514 = vsel %vm2787, %v5329, -inf
    %v5515 = vsel %vm2787, %v5332, -inf
    %v5516 = vmax.f32 %v5514, %v5515
    %v5517 = vsel %vm2787, %v5335, -inf
    %v5518 = vmax.f32 %v5516, %v5517
    %v5519 = vsel %vm2787, %v5338, -inf
    %v5520 = vmax.f32 %v5518, %v5519
    %v5521 = vsel %vm2787, %v5341, -inf
    %v5522 = vmax.f32 %v5520, %v5521
    %v5523 = vsel %vm2787, %v5344, -inf
    %v5524 = vmax.f32 %v5522, %v5523
    %v5525 = vsel %vm2787, %v5347, -inf
    %v5526 = vmax.f32 %v5524, %v5525
    %v5527 = vsel %vm2787, %v5350, -inf
    %v5528 = vmax.f32 %v5526, %v5527
    %v5529 = vrot.slane %v5528, 4
    %v5530 = vmax.f32 %v5528, %v5529
    %v5531 = vrot.slane %v5530, 2
    %v5532 = vmax.f32 %v5530, %v5531
    %v5533 = vrot.slane %v5532, 1
    %v5534 = vmax.f32 %v5532, %v5533
    %v5535 = vsel %vm2787, %v5353, -inf
    %v5536 = vsel %vm2787, %v5356, -inf
    %v5537 = vmax.f32 %v5535, %v5536
    %v5538 = vsel %vm2787, %v5359, -inf
    %v5539 = vmax.f32 %v5537, %v5538
    %v5540 = vsel %vm2787, %v5362, -inf
    %v5541 = vmax.f32 %v5539, %v5540
    %v5542 = vsel %vm2787, %v5365, -inf
    %v5543 = vmax.f32 %v5541, %v5542
    %v5544 = vsel %vm2787, %v5368, -inf
    %v5545 = vmax.f32 %v5543, %v5544
    %v5546 = vsel %vm2787, %v5371, -inf
    %v5547 = vmax.f32 %v5545, %v5546
    %v5548 = vsel %vm2787, %v5374, -inf
    %v5549 = vmax.f32 %v5547, %v5548
    %v5550 = vrot.slane %v5549, 4
    %v5551 = vmax.f32 %v5549, %v5550
    %v5552 = vrot.slane %v5551, 2
    %v5553 = vmax.f32 %v5551, %v5552
    %v5554 = vrot.slane %v5553, 1
    %v5555 = vmax.f32 %v5553, %v5554
    %v5556 = vsel %vm2787, %v5377, -inf
    %v5557 = vsel %vm2787, %v5380, -inf
    %v5558 = vmax.f32 %v5556, %v5557
    %v5559 = vsel %vm2787, %v5383, -inf
    %v5560 = vmax.f32 %v5558, %v5559
    %v5561 = vsel %vm2787, %v5386, -inf
    %v5562 = vmax.f32 %v5560, %v5561
    %v5563 = vsel %vm2787, %v5389, -inf
    %v5564 = vmax.f32 %v5562, %v5563
    %v5565 = vsel %vm2787, %v5392, -inf
    %v5566 = vmax.f32 %v5564, %v5565
    %v5567 = vsel %vm2787, %v5395, -inf
    %v5568 = vmax.f32 %v5566, %v5567
    %v5569 = vsel %vm2787, %v5398, -inf
    %v5570 = vmax.f32 %v5568, %v5569
    %v5571 = vrot.slane %v5570, 4
    %v5572 = vmax.f32 %v5570, %v5571
    %v5573 = vrot.slane %v5572, 2
    %v5574 = vmax.f32 %v5572, %v5573
    %v5575 = vrot.slane %v5574, 1
    %v5576 = vmax.f32 %v5574, %v5575
    %v5577 = vsel %vm2787, %v5401, -inf
    %v5578 = vsel %vm2787, %v5404, -inf
    %v5579 = vmax.f32 %v5577, %v5578
    %v5580 = vsel %vm2787, %v5407, -inf
    %v5581 = vmax.f32 %v5579, %v5580
    %v5582 = vsel %vm2787, %v5410, -inf
    %v5583 = vmax.f32 %v5581, %v5582
    %v5584 = vsel %vm2787, %v5413, -inf
    %v5585 = vmax.f32 %v5583, %v5584
    %v5586 = vsel %vm2787, %v5416, -inf
    %v5587 = vmax.f32 %v5585, %v5586
    %v5588 = vsel %vm2787, %v5419, -inf
    %v5589 = vmax.f32 %v5587, %v5588
    %v5590 = vsel %vm2787, %v5422, -inf
    %v5591 = vmax.f32 %v5589, %v5590
    %v5592 = vrot.slane %v5591, 4
    %v5593 = vmax.f32 %v5591, %v5592
    %v5594 = vrot.slane %v5593, 2
    %v5595 = vmax.f32 %v5593, %v5594
    %v5596 = vrot.slane %v5595, 1
    %v5597 = vmax.f32 %v5595, %v5596
    %v5598 = vsel %vm2787, %v5425, -inf
    %v5599 = vsel %vm2787, %v5428, -inf
    %v5600 = vmax.f32 %v5598, %v5599
    %v5601 = vsel %vm2787, %v5431, -inf
    %v5602 = vmax.f32 %v5600, %v5601
    %v5603 = vsel %vm2787, %v5434, -inf
    %v5604 = vmax.f32 %v5602, %v5603
    %v5605 = vsel %vm2787, %v5437, -inf
    %v5606 = vmax.f32 %v5604, %v5605
    %v5607 = vsel %vm2787, %v5440, -inf
    %v5608 = vmax.f32 %v5606, %v5607
    %v5609 = vsel %vm2787, %v5443, -inf
    %v5610 = vmax.f32 %v5608, %v5609
    %v5611 = vsel %vm2787, %v5446, -inf
    %v5612 = vmax.f32 %v5610, %v5611
    %v5613 = vrot.slane %v5612, 4
    %v5614 = vmax.f32 %v5612, %v5613
    %v5615 = vrot.slane %v5614, 2
    %v5616 = vmax.f32 %v5614, %v5615
    %v5617 = vrot.slane %v5616, 1
    %v5618 = vmax.f32 %v5616, %v5617
    %v5619 = vsel %vm2787, %v5449, -inf
    %v5620 = vsel %vm2787, %v5452, -inf
    %v5621 = vmax.f32 %v5619, %v5620
    %v5622 = vsel %vm2787, %v5455, -inf
    %v5623 = vmax.f32 %v5621, %v5622
    %v5624 = vsel %vm2787, %v5458, -inf
    %v5625 = vmax.f32 %v5623, %v5624
    %v5626 = vsel %vm2787, %v5461, -inf
    %v5627 = vmax.f32 %v5625, %v5626
    %v5628 = vsel %vm2787, %v5464, -inf
    %v5629 = vmax.f32 %v5627, %v5628
    %v5630 = vsel %vm2787, %v5467, -inf
    %v5631 = vmax.f32 %v5629, %v5630
    %v5632 = vsel %vm2787, %v5470, -inf
    %v5633 = vmax.f32 %v5631, %v5632
    %v5634 = vrot.slane %v5633, 4
    %v5635 = vmax.f32 %v5633, %v5634
    %v5636 = vrot.slane %v5635, 2
    %v5637 = vmax.f32 %v5635, %v5636
    %v5638 = vrot.slane %v5637, 1
    %v5639 = vmax.f32 %v5637, %v5638
    %v5640 = vsub.f32 %v5281, %v5492
    %v5641 = vsub.f32 %v5284, %v5492
    %v5642 = vsub.f32 %v5287, %v5492
    %v5643 = vsub.f32 %v5290, %v5492
    %v5644 = vsub.f32 %v5293, %v5492
    %v5645 = vsub.f32 %v5296, %v5492
    %v5646 = vsub.f32 %v5299, %v5492
    %v5647 = vsub.f32 %v5302, %v5492
    %v5648 = vsub.f32 %v5305, %v5513
    %v5649 = vsub.f32 %v5308, %v5513
    %v5650 = vsub.f32 %v5311, %v5513
    %v5651 = vsub.f32 %v5314, %v5513
    %v5652 = vsub.f32 %v5317, %v5513
    %v5653 = vsub.f32 %v5320, %v5513
    %v5654 = vsub.f32 %v5323, %v5513
    %v5655 = vsub.f32 %v5326, %v5513
    %v5656 = vsub.f32 %v5329, %v5534
    %v5657 = vsub.f32 %v5332, %v5534
    %v5658 = vsub.f32 %v5335, %v5534
    %v5659 = vsub.f32 %v5338, %v5534
    %v5660 = vsub.f32 %v5341, %v5534
    %v5661 = vsub.f32 %v5344, %v5534
    %v5662 = vsub.f32 %v5347, %v5534
    %v5663 = vsub.f32 %v5350, %v5534
    %v5664 = vsub.f32 %v5353, %v5555
    %v5665 = vsub.f32 %v5356, %v5555
    %v5666 = vsub.f32 %v5359, %v5555
    %v5667 = vsub.f32 %v5362, %v5555
    %v5668 = vsub.f32 %v5365, %v5555
    %v5669 = vsub.f32 %v5368, %v5555
    %v5670 = vsub.f32 %v5371, %v5555
    %v5671 = vsub.f32 %v5374, %v5555
    %v5672 = vsub.f32 %v5377, %v5576
    %v5673 = vsub.f32 %v5380, %v5576
    %v5674 = vsub.f32 %v5383, %v5576
    %v5675 = vsub.f32 %v5386, %v5576
    %v5676 = vsub.f32 %v5389, %v5576
    %v5677 = vsub.f32 %v5392, %v5576
    %v5678 = vsub.f32 %v5395, %v5576
    %v5679 = vsub.f32 %v5398, %v5576
    %v5680 = vsub.f32 %v5401, %v5597
    %v5681 = vsub.f32 %v5404, %v5597
    %v5682 = vsub.f32 %v5407, %v5597
    %v5683 = vsub.f32 %v5410, %v5597
    %v5684 = vsub.f32 %v5413, %v5597
    %v5685 = vsub.f32 %v5416, %v5597
    %v5686 = vsub.f32 %v5419, %v5597
    %v5687 = vsub.f32 %v5422, %v5597
    %v5688 = vsub.f32 %v5425, %v5618
    %v5689 = vsub.f32 %v5428, %v5618
    %v5690 = vsub.f32 %v5431, %v5618
    %v5691 = vsub.f32 %v5434, %v5618
    %v5692 = vsub.f32 %v5437, %v5618
    %v5693 = vsub.f32 %v5440, %v5618
    %v5694 = vsub.f32 %v5443, %v5618
    %v5695 = vsub.f32 %v5446, %v5618
    %v5696 = vsub.f32 %v5449, %v5639
    %v5697 = vsub.f32 %v5452, %v5639
    %v5698 = vsub.f32 %v5455, %v5639
    %v5699 = vsub.f32 %v5458, %v5639
    %v5700 = vsub.f32 %v5461, %v5639
    %v5701 = vsub.f32 %v5464, %v5639
    %v5702 = vsub.f32 %v5467, %v5639
    %v5703 = vsub.f32 %v5470, %v5639
    %v5704 = vmul.f32 %v5640, 1.442695
    %v5705 = vpow.pop %v5704
    %v5706 = vmul.f32 %v5641, 1.442695
    %v5707 = vpow.pop %v5706
    %v5708 = vmul.f32 %v5642, 1.442695
    %v5709 = vpow.pop %v5708
    %v5710 = vmul.f32 %v5643, 1.442695
    %v5711 = vpow.pop %v5710
    %v5712 = vmul.f32 %v5644, 1.442695
    %v5713 = vpow.pop %v5712
    %v5714 = vmul.f32 %v5645, 1.442695
    %v5715 = vpow.pop %v5714
    %v5716 = vmul.f32 %v5646, 1.442695
    %v5717 = vpow.pop %v5716
    %v5718 = vmul.f32 %v5647, 1.442695
    %v5719 = vpow.pop %v5718
    %v5720 = vmul.f32 %v5648, 1.442695
    %v5721 = vpow.pop %v5720
    %v5722 = vmul.f32 %v5649, 1.442695
    %v5723 = vpow.pop %v5722
    %v5724 = vmul.f32 %v5650, 1.442695
    %v5725 = vpow.pop %v5724
    %v5726 = vmul.f32 %v5651, 1.442695
    %v5727 = vpow.pop %v5726
    %v5728 = vmul.f32 %v5652, 1.442695
    %v5729 = vpow.pop %v5728
    %v5730 = vmul.f32 %v5653, 1.442695
    %v5731 = vpow.pop %v5730
    %v5732 = vmul.f32 %v5654, 1.442695
    %v5733 = vpow.pop %v5732
    %v5734 = vmul.f32 %v5655, 1.442695
    %v5735 = vpow.pop %v5734
    %v5736 = vmul.f32 %v5656, 1.442695
    %v5737 = vpow.pop %v5736
    %v5738 = vmul.f32 %v5657, 1.442695
    %v5739 = vpow.pop %v5738
    %v5740 = vmul.f32 %v5658, 1.442695
    %v5741 = vpow.pop %v5740
    %v5742 = vmul.f32 %v5659, 1.442695
    %v5743 = vpow.pop %v5742
    %v5744 = vmul.f32 %v5660, 1.442695
    %v5745 = vpow.pop %v5744
    %v5746 = vmul.f32 %v5661, 1.442695
    %v5747 = vpow.pop %v5746
    %v5748 = vmul.f32 %v5662, 1.442695
    %v5749 = vpow.pop %v5748
    %v5750 = vmul.f32 %v5663, 1.442695
    %v5751 = vpow.pop %v5750
    %v5752 = vmul.f32 %v5664, 1.442695
    %v5753 = vpow.pop %v5752
    %v5754 = vmul.f32 %v5665, 1.442695
    %v5755 = vpow.pop %v5754
    %v5756 = vmul.f32 %v5666, 1.442695
    %v5757 = vpow.pop %v5756
    %v5758 = vmul.f32 %v5667, 1.442695
    %v5759 = vpow.pop %v5758
    %v5760 = vmul.f32 %v5668, 1.442695
    %v5761 = vpow.pop %v5760
    %v5762 = vmul.f32 %v5669, 1.442695
    %v5763 = vpow.pop %v5762
    %v5764 = vmul.f32 %v5670, 1.442695
    %v5765 = vpow.pop %v5764
    %v5766 = vmul.f32 %v5671, 1.442695
    %v5767 = vpow.pop %v5766
    %v5768 = vmul.f32 %v5672, 1.442695
    %v5769 = vpow.pop %v5768
    %v5770 = vmul.f32 %v5673, 1.442695
    %v5771 = vpow.pop %v5770
    %v5772 = vmul.f32 %v5674, 1.442695
    %v5773 = vpow.pop %v5772
    %v5774 = vmul.f32 %v5675, 1.442695
    %v5775 = vpow.pop %v5774
    %v5776 = vmul.f32 %v5676, 1.442695
    %v5777 = vpow.pop %v5776
    %v5778 = vmul.f32 %v5677, 1.442695
    %v5779 = vpow.pop %v5778
    %v5780 = vmul.f32 %v5678, 1.442695
    %v5781 = vpow.pop %v5780
    %v5782 = vmul.f32 %v5679, 1.442695
    %v5783 = vpow.pop %v5782
    %v5784 = vmul.f32 %v5680, 1.442695
    %v5785 = vpow.pop %v5784
    %v5786 = vmul.f32 %v5681, 1.442695
    %v5787 = vpow.pop %v5786
    %v5788 = vmul.f32 %v5682, 1.442695
    %v5789 = vpow.pop %v5788
    %v5790 = vmul.f32 %v5683, 1.442695
    %v5791 = vpow.pop %v5790
    %v5792 = vmul.f32 %v5684, 1.442695
    %v5793 = vpow.pop %v5792
    %v5794 = vmul.f32 %v5685, 1.442695
    %v5795 = vpow.pop %v5794
    %v5796 = vmul.f32 %v5686, 1.442695
    %v5797 = vpow.pop %v5796
    %v5798 = vmul.f32 %v5687, 1.442695
    %v5799 = vpow.pop %v5798
    %v5800 = vmul.f32 %v5688, 1.442695
    %v5801 = vpow.pop %v5800
    %v5802 = vmul.f32 %v5689, 1.442695
    %v5803 = vpow.pop %v5802
    %v5804 = vmul.f32 %v5690, 1.442695
    %v5805 = vpow.pop %v5804
    %v5806 = vmul.f32 %v5691, 1.442695
    %v5807 = vpow.pop %v5806
    %v5808 = vmul.f32 %v5692, 1.442695
    %v5809 = vpow.pop %v5808
    %v5810 = vmul.f32 %v5693, 1.442695
    %v5811 = vpow.pop %v5810
    %v5812 = vmul.f32 %v5694, 1.442695
    %v5813 = vpow.pop %v5812
    %v5814 = vmul.f32 %v5695, 1.442695
    %v5815 = vpow.pop %v5814
    %v5816 = vmul.f32 %v5696, 1.442695
    %v5817 = vpow.pop %v5816
    %v5818 = vmul.f32 %v5697, 1.442695
    %v5819 = vpow.pop %v5818
    %v5820 = vmul.f32 %v5698, 1.442695
    %v5821 = vpow.pop %v5820
    %v5822 = vmul.f32 %v5699, 1.442695
    %v5823 = vpow.pop %v5822
    %v5824 = vmul.f32 %v5700, 1.442695
    %v5825 = vpow.pop %v5824
    %v5826 = vmul.f32 %v5701, 1.442695
    %v5827 = vpow.pop %v5826
    %v5828 = vmul.f32 %v5702, 1.442695
    %v5829 = vpow.pop %v5828
    %v5830 = vmul.f32 %v5703, 1.442695
    %v5831 = vpow.pop %v5830
    %v5832 = vsel %vm2787, %v5705, 0.0
    %v5833 = vsel %vm2787, %v5707, 0.0
    %v5834 = vadd.f32 %v5832, %v5833
    %v5835 = vsel %vm2787, %v5709, 0.0
    %v5836 = vadd.f32 %v5834, %v5835
    %v5837 = vsel %vm2787, %v5711, 0.0
    %v5838 = vadd.f32 %v5836, %v5837
    %v5839 = vsel %vm2787, %v5713, 0.0
    %v5840 = vadd.f32 %v5838, %v5839
    %v5841 = vsel %vm2787, %v5715, 0.0
    %v5842 = vadd.f32 %v5840, %v5841
    %v5843 = vsel %vm2787, %v5717, 0.0
    %v5844 = vadd.f32 %v5842, %v5843
    %v5845 = vsel %vm2787, %v5719, 0.0
    %v5846 = vadd.f32 %v5844, %v5845
    %v5847 = vrot.slane %v5846, 4
    %v5848 = vadd.f32 %v5846, %v5847
    %v5849 = vrot.slane %v5848, 2
    %v5850 = vadd.f32 %v5848, %v5849
    %v5851 = vrot.slane %v5850, 1
    %v5852 = vadd.f32 %v5850, %v5851
    %v5853 = vsel %vm2787, %v5721, 0.0
    %v5854 = vsel %vm2787, %v5723, 0.0
    %v5855 = vadd.f32 %v5853, %v5854
    %v5856 = vsel %vm2787, %v5725, 0.0
    %v5857 = vadd.f32 %v5855, %v5856
    %v5858 = vsel %vm2787, %v5727, 0.0
    %v5859 = vadd.f32 %v5857, %v5858
    %v5860 = vsel %vm2787, %v5729, 0.0
    %v5861 = vadd.f32 %v5859, %v5860
    %v5862 = vsel %vm2787, %v5731, 0.0
    %v5863 = vadd.f32 %v5861, %v5862
    %v5864 = vsel %vm2787, %v5733, 0.0
    %v5865 = vadd.f32 %v5863, %v5864
    %v5866 = vsel %vm2787, %v5735, 0.0
    %v5867 = vadd.f32 %v5865, %v5866
    %v5868 = vrot.slane %v5867, 4
    %v5869 = vadd.f32 %v5867, %v5868
    %v5870 = vrot.slane %v5869, 2
    %v5871 = vadd.f32 %v5869, %v5870
    %v5872 = vrot.slane %v5871, 1
    %v5873 = vadd.f32 %v5871, %v5872
    %v5874 = vsel %vm2787, %v5737, 0.0
    %v5875 = vsel %vm2787, %v5739, 0.0
    %v5876 = vadd.f32 %v5874, %v5875
    %v5877 = vsel %vm2787, %v5741, 0.0
    %v5878 = vadd.f32 %v5876, %v5877
    %v5879 = vsel %vm2787, %v5743, 0.0
    %v5880 = vadd.f32 %v5878, %v5879
    %v5881 = vsel %vm2787, %v5745, 0.0
    %v5882 = vadd.f32 %v5880, %v5881
    %v5883 = vsel %vm2787, %v5747, 0.0
    %v5884 = vadd.f32 %v5882, %v5883
    %v5885 = vsel %vm2787, %v5749, 0.0
    %v5886 = vadd.f32 %v5884, %v5885
    %v5887 = vsel %vm2787, %v5751, 0.0
    %v5888 = vadd.f32 %v5886, %v5887
    %v5889 = vrot.slane %v5888, 4
    %v5890 = vadd.f32 %v5888, %v5889
    %v5891 = vrot.slane %v5890, 2
    %v5892 = vadd.f32 %v5890, %v5891
    %v5893 = vrot.slane %v5892, 1
    %v5894 = vadd.f32 %v5892, %v5893
    %v5895 = vsel %vm2787, %v5753, 0.0
    %v5896 = vsel %vm2787, %v5755, 0.0
    %v5897 = vadd.f32 %v5895, %v5896
    %v5898 = vsel %vm2787, %v5757, 0.0
    %v5899 = vadd.f32 %v5897, %v5898
    %v5900 = vsel %vm2787, %v5759, 0.0
    %v5901 = vadd.f32 %v5899, %v5900
    %v5902 = vsel %vm2787, %v5761, 0.0
    %v5903 = vadd.f32 %v5901, %v5902
    %v5904 = vsel %vm2787, %v5763, 0.0
    %v5905 = vadd.f32 %v5903, %v5904
    %v5906 = vsel %vm2787, %v5765, 0.0
    %v5907 = vadd.f32 %v5905, %v5906
    %v5908 = vsel %vm2787, %v5767, 0.0
    %v5909 = vadd.f32 %v5907, %v5908
    %v5910 = vrot.slane %v5909, 4
    %v5911 = vadd.f32 %v5909, %v5910
    %v5912 = vrot.slane %v5911, 2
    %v5913 = vadd.f32 %v5911, %v5912
    %v5914 = vrot.slane %v5913, 1
    %v5915 = vadd.f32 %v5913, %v5914
    %v5916 = vsel %vm2787, %v5769, 0.0
    %v5917 = vsel %vm2787, %v5771, 0.0
    %v5918 = vadd.f32 %v5916, %v5917
    %v5919 = vsel %vm2787, %v5773, 0.0
    %v5920 = vadd.f32 %v5918, %v5919
    %v5921 = vsel %vm2787, %v5775, 0.0
    %v5922 = vadd.f32 %v5920, %v5921
    %v5923 = vsel %vm2787, %v5777, 0.0
    %v5924 = vadd.f32 %v5922, %v5923
    %v5925 = vsel %vm2787, %v5779, 0.0
    %v5926 = vadd.f32 %v5924, %v5925
    %v5927 = vsel %vm2787, %v5781, 0.0
    %v5928 = vadd.f32 %v5926, %v5927
    %v5929 = vsel %vm2787, %v5783, 0.0
    %v5930 = vadd.f32 %v5928, %v5929
    %v5931 = vrot.slane %v5930, 4
    %v5932 = vadd.f32 %v5930, %v5931
    %v5933 = vrot.slane %v5932, 2
    %v5934 = vadd.f32 %v5932, %v5933
    %v5935 = vrot.slane %v5934, 1
    %v5936 = vadd.f32 %v5934, %v5935
    %v5937 = vsel %vm2787, %v5785, 0.0
    %v5938 = vsel %vm2787, %v5787, 0.0
    %v5939 = vadd.f32 %v5937, %v5938
    %v5940 = vsel %vm2787, %v5789, 0.0
    %v5941 = vadd.f32 %v5939, %v5940
    %v5942 = vsel %vm2787, %v5791, 0.0
    %v5943 = vadd.f32 %v5941, %v5942
    %v5944 = vsel %vm2787, %v5793, 0.0
    %v5945 = vadd.f32 %v5943, %v5944
    %v5946 = vsel %vm2787, %v5795, 0.0
    %v5947 = vadd.f32 %v5945, %v5946
    %v5948 = vsel %vm2787, %v5797, 0.0
    %v5949 = vadd.f32 %v5947, %v5948
    %v5950 = vsel %vm2787, %v5799, 0.0
    %v5951 = vadd.f32 %v5949, %v5950
    %v5952 = vrot.slane %v5951, 4
    %v5953 = vadd.f32 %v5951, %v5952
    %v5954 = vrot.slane %v5953, 2
    %v5955 = vadd.f32 %v5953, %v5954
    %v5956 = vrot.slane %v5955, 1
    %v5957 = vadd.f32 %v5955, %v5956
    %v5958 = vsel %vm2787, %v5801, 0.0
    %v5959 = vsel %vm2787, %v5803, 0.0
    %v5960 = vadd.f32 %v5958, %v5959
    %v5961 = vsel %vm2787, %v5805, 0.0
    %v5962 = vadd.f32 %v5960, %v5961
    %v5963 = vsel %vm2787, %v5807, 0.0
    %v5964 = vadd.f32 %v5962, %v5963
    %v5965 = vsel %vm2787, %v5809, 0.0
    %v5966 = vadd.f32 %v5964, %v5965
    %v5967 = vsel %vm2787, %v5811, 0.0
    %v5968 = vadd.f32 %v5966, %v5967
    %v5969 = vsel %vm2787, %v5813, 0.0
    %v5970 = vadd.f32 %v5968, %v5969
    %v5971 = vsel %vm2787, %v5815, 0.0
    %v5972 = vadd.f32 %v5970, %v5971
    %v5973 = vrot.slane %v5972, 4
    %v5974 = vadd.f32 %v5972, %v5973
    %v5975 = vrot.slane %v5974, 2
    %v5976 = vadd.f32 %v5974, %v5975
    %v5977 = vrot.slane %v5976, 1
    %v5978 = vadd.f32 %v5976, %v5977
    %v5979 = vsel %vm2787, %v5817, 0.0
    %v5980 = vsel %vm2787, %v5819, 0.0
    %v5981 = vadd.f32 %v5979, %v5980
    %v5982 = vsel %vm2787, %v5821, 0.0
    %v5983 = vadd.f32 %v5981, %v5982
    %v5984 = vsel %vm2787, %v5823, 0.0
    %v5985 = vadd.f32 %v5983, %v5984
    %v5986 = vsel %vm2787, %v5825, 0.0
    %v5987 = vadd.f32 %v5985, %v5986
    %v5988 = vsel %vm2787, %v5827, 0.0
    %v5989 = vadd.f32 %v5987, %v5988
    %v5990 = vsel %vm2787, %v5829, 0.0
    %v5991 = vadd.f32 %v5989, %v5990
    %v5992 = vsel %vm2787, %v5831, 0.0
    %v5993 = vadd.f32 %v5991, %v5992
    %v5994 = vrot.slane %v5993, 4
    %v5995 = vadd.f32 %v5993, %v5994
    %v5996 = vrot.slane %v5995, 2
    %v5997 = vadd.f32 %v5995, %v5996
    %v5998 = vrot.slane %v5997, 1
    %v5999 = vadd.f32 %v5997, %v5998
    %v6000 = vrcp.pop %v5852
    %v6001 = vrcp.pop %v5873
    %v6002 = vrcp.pop %v5894
    %v6003 = vrcp.pop %v5915
    %v6004 = vrcp.pop %v5936
    %v6005 = vrcp.pop %v5957
    %v6006 = vrcp.pop %v5978
    %v6007 = vrcp.pop %v5999
    %v6008 = vmul.f32 %v5705, %v6000
    %v6009 = vmul.f32 %v5707, %v6000
    %v6010 = vmul.f32 %v5709, %v6000
    %v6011 = vmul.f32 %v5711, %v6000
    %v6012 = vmul.f32 %v5713, %v6000
    %v6013 = vmul.f32 %v5715, %v6000
    %v6014 = vmul.f32 %v5717, %v6000
    %v6015 = vmul.f32 %v5719, %v6000
    %v6016 = vmul.f32 %v5721, %v6001
    %v6017 = vmul.f32 %v5723, %v6001
    %v6018 = vmul.f32 %v5725, %v6001
    %v6019 = vmul.f32 %v5727, %v6001
    %v6020 = vmul.f32 %v5729, %v6001
    %v6021 = vmul.f32 %v5731, %v6001
    %v6022 = vmul.f32 %v5733, %v6001
    %v6023 = vmul.f32 %v5735, %v6001
    %v6024 = vmul.f32 %v5737, %v6002
    %v6025 = vmul.f32 %v5739, %v6002
    %v6026 = vmul.f32 %v5741, %v6002
    %v6027 = vmul.f32 %v5743, %v6002
    %v6028 = vmul.f32 %v5745, %v6002
    %v6029 = vmul.f32 %v5747, %v6002
    %v6030 = vmul.f32 %v5749, %v6002
    %v6031 = vmul.f32 %v5751, %v6002
    %v6032 = vmul.f32 %v5753, %v6003
    %v6033 = vmul.f32 %v5755, %v6003
    %v6034 = vmul.f32 %v5757, %v6003
    %v6035 = vmul.f32 %v5759, %v6003
    %v6036 = vmul.f32 %v5761, %v6003
    %v6037 = vmul.f32 %v5763, %v6003
    %v6038 = vmul.f32 %v5765, %v6003
    %v6039 = vmul.f32 %v5767, %v6003
    %v6040 = vmul.f32 %v5769, %v6004
    %v6041 = vmul.f32 %v5771, %v6004
    %v6042 = vmul.f32 %v5773, %v6004
    %v6043 = vmul.f32 %v5775, %v6004
    %v6044 = vmul.f32 %v5777, %v6004
    %v6045 = vmul.f32 %v5779, %v6004
    %v6046 = vmul.f32 %v5781, %v6004
    %v6047 = vmul.f32 %v5783, %v6004
    %v6048 = vmul.f32 %v5785, %v6005
    %v6049 = vmul.f32 %v5787, %v6005
    %v6050 = vmul.f32 %v5789, %v6005
    %v6051 = vmul.f32 %v5791, %v6005
    %v6052 = vmul.f32 %v5793, %v6005
    %v6053 = vmul.f32 %v5795, %v6005
    %v6054 = vmul.f32 %v5797, %v6005
    %v6055 = vmul.f32 %v5799, %v6005
    %v6056 = vmul.f32 %v5801, %v6006
    %v6057 = vmul.f32 %v5803, %v6006
    %v6058 = vmul.f32 %v5805, %v6006
    %v6059 = vmul.f32 %v5807, %v6006
    %v6060 = vmul.f32 %v5809, %v6006
    %v6061 = vmul.f32 %v5811, %v6006
    %v6062 = vmul.f32 %v5813, %v6006
    %v6063 = vmul.f32 %v5815, %v6006
    %v6064 = vmul.f32 %v5817, %v6007
    %v6065 = vmul.f32 %v5819, %v6007
    %v6066 = vmul.f32 %v5821, %v6007
    %v6067 = vmul.f32 %v5823, %v6007
    %v6068 = vmul.f32 %v5825, %v6007
    %v6069 = vmul.f32 %v5827, %v6007
    %v6070 = vmul.f32 %v5829, %v6007
    %v6071 = vmul.f32 %v5831, %v6007
    %v6072 = vsel %vm2787, %v6008, 0.0
    %6073 = vadd.xlane.f32.xlu0 %v6072
    %v6074 = vpop.xlane.xlu0 %6073
    %v6075 = vsel %vm2787, %v6009, 0.0
    %6076 = vadd.xlane.f32.xlu0 %v6075
    %v6077 = vpop.xlane.xlu0 %6076
    %v6078 = vsel %vm2787, %v6010, 0.0
    %6079 = vadd.xlane.f32.xlu0 %v6078
    %v6080 = vpop.xlane.xlu0 %6079
    %v6081 = vsel %vm2787, %v6011, 0.0
    %6082 = vadd.xlane.f32.xlu0 %v6081
    %v6083 = vpop.xlane.xlu0 %6082
    %v6084 = vsel %vm2787, %v6012, 0.0
    %6085 = vadd.xlane.f32.xlu0 %v6084
    %v6086 = vpop.xlane.xlu0 %6085
    %v6087 = vsel %vm2787, %v6013, 0.0
    %6088 = vadd.xlane.f32.xlu0 %v6087
    %v6089 = vpop.xlane.xlu0 %6088
    %v6090 = vsel %vm2787, %v6014, 0.0
    %6091 = vadd.xlane.f32.xlu0 %v6090
    %v6092 = vpop.xlane.xlu0 %6091
    %v6093 = vsel %vm2787, %v6015, 0.0
    %6094 = vadd.xlane.f32.xlu0 %v6093
    %v6095 = vpop.xlane.xlu0 %6094
    %v6096 = vsel %vm2787, %v6016, 0.0
    %6097 = vadd.xlane.f32.xlu0 %v6096
    %v6098 = vpop.xlane.xlu0 %6097
    %v6099 = vsel %vm2787, %v6017, 0.0
    %6100 = vadd.xlane.f32.xlu0 %v6099
    %v6101 = vpop.xlane.xlu0 %6100
    %v6102 = vsel %vm2787, %v6018, 0.0
    %6103 = vadd.xlane.f32.xlu0 %v6102
    %v6104 = vpop.xlane.xlu0 %6103
    %v6105 = vsel %vm2787, %v6019, 0.0
    %6106 = vadd.xlane.f32.xlu0 %v6105
    %v6107 = vpop.xlane.xlu0 %6106
    %v6108 = vsel %vm2787, %v6020, 0.0
    %6109 = vadd.xlane.f32.xlu0 %v6108
    %v6110 = vpop.xlane.xlu0 %6109
    %v6111 = vsel %vm2787, %v6021, 0.0
    %6112 = vadd.xlane.f32.xlu0 %v6111
    %v6113 = vpop.xlane.xlu0 %6112
    %v6114 = vsel %vm2787, %v6022, 0.0
    %6115 = vadd.xlane.f32.xlu0 %v6114
    %v6116 = vpop.xlane.xlu0 %6115
    %v6117 = vsel %vm2787, %v6023, 0.0
    %6118 = vadd.xlane.f32.xlu0 %v6117
    %v6119 = vpop.xlane.xlu0 %6118
    %v6120 = vsel %vm2787, %v6024, 0.0
    %6121 = vadd.xlane.f32.xlu0 %v6120
    %v6122 = vpop.xlane.xlu0 %6121
    %v6123 = vsel %vm2787, %v6025, 0.0
    %6124 = vadd.xlane.f32.xlu0 %v6123
    %v6125 = vpop.xlane.xlu0 %6124
    %v6126 = vsel %vm2787, %v6026, 0.0
    %6127 = vadd.xlane.f32.xlu0 %v6126
    %v6128 = vpop.xlane.xlu0 %6127
    %v6129 = vsel %vm2787, %v6027, 0.0
    %6130 = vadd.xlane.f32.xlu0 %v6129
    %v6131 = vpop.xlane.xlu0 %6130
    %v6132 = vsel %vm2787, %v6028, 0.0
    %6133 = vadd.xlane.f32.xlu0 %v6132
    %v6134 = vpop.xlane.xlu0 %6133
    %v6135 = vsel %vm2787, %v6029, 0.0
    %6136 = vadd.xlane.f32.xlu0 %v6135
    %v6137 = vpop.xlane.xlu0 %6136
    %v6138 = vsel %vm2787, %v6030, 0.0
    %6139 = vadd.xlane.f32.xlu0 %v6138
    %v6140 = vpop.xlane.xlu0 %6139
    %v6141 = vsel %vm2787, %v6031, 0.0
    %6142 = vadd.xlane.f32.xlu0 %v6141
    %v6143 = vpop.xlane.xlu0 %6142
    %v6144 = vsel %vm2787, %v6032, 0.0
    %6145 = vadd.xlane.f32.xlu0 %v6144
    %v6146 = vpop.xlane.xlu0 %6145
    %v6147 = vsel %vm2787, %v6033, 0.0
    %6148 = vadd.xlane.f32.xlu0 %v6147
    %v6149 = vpop.xlane.xlu0 %6148
    %v6150 = vsel %vm2787, %v6034, 0.0
    %6151 = vadd.xlane.f32.xlu0 %v6150
    %v6152 = vpop.xlane.xlu0 %6151
    %v6153 = vsel %vm2787, %v6035, 0.0
    %6154 = vadd.xlane.f32.xlu0 %v6153
    %v6155 = vpop.xlane.xlu0 %6154
    %v6156 = vsel %vm2787, %v6036, 0.0
    %6157 = vadd.xlane.f32.xlu0 %v6156
    %v6158 = vpop.xlane.xlu0 %6157
    %v6159 = vsel %vm2787, %v6037, 0.0
    %6160 = vadd.xlane.f32.xlu0 %v6159
    %v6161 = vpop.xlane.xlu0 %6160
    %v6162 = vsel %vm2787, %v6038, 0.0
    %6163 = vadd.xlane.f32.xlu0 %v6162
    %v6164 = vpop.xlane.xlu0 %6163
    %v6165 = vsel %vm2787, %v6039, 0.0
    %6166 = vadd.xlane.f32.xlu0 %v6165
    %v6167 = vpop.xlane.xlu0 %6166
    %v6168 = vsel %vm2787, %v6040, 0.0
    %6169 = vadd.xlane.f32.xlu0 %v6168
    %v6170 = vpop.xlane.xlu0 %6169
    %v6171 = vsel %vm2787, %v6041, 0.0
    %6172 = vadd.xlane.f32.xlu0 %v6171
    %v6173 = vpop.xlane.xlu0 %6172
    %v6174 = vsel %vm2787, %v6042, 0.0
    %6175 = vadd.xlane.f32.xlu0 %v6174
    %v6176 = vpop.xlane.xlu0 %6175
    %v6177 = vsel %vm2787, %v6043, 0.0
    %6178 = vadd.xlane.f32.xlu0 %v6177
    %v6179 = vpop.xlane.xlu0 %6178
    %v6180 = vsel %vm2787, %v6044, 0.0
    %6181 = vadd.xlane.f32.xlu0 %v6180
    %v6182 = vpop.xlane.xlu0 %6181
    %v6183 = vsel %vm2787, %v6045, 0.0
    %6184 = vadd.xlane.f32.xlu0 %v6183
    %v6185 = vpop.xlane.xlu0 %6184
    %v6186 = vsel %vm2787, %v6046, 0.0
    %6187 = vadd.xlane.f32.xlu0 %v6186
    %v6188 = vpop.xlane.xlu0 %6187
    %v6189 = vsel %vm2787, %v6047, 0.0
    %6190 = vadd.xlane.f32.xlu0 %v6189
    %v6191 = vpop.xlane.xlu0 %6190
    %v6192 = vsel %vm2787, %v6048, 0.0
    %6193 = vadd.xlane.f32.xlu0 %v6192
    %v6194 = vpop.xlane.xlu0 %6193
    %v6195 = vsel %vm2787, %v6049, 0.0
    %6196 = vadd.xlane.f32.xlu0 %v6195
    %v6197 = vpop.xlane.xlu0 %6196
    %v6198 = vsel %vm2787, %v6050, 0.0
    %6199 = vadd.xlane.f32.xlu0 %v6198
    %v6200 = vpop.xlane.xlu0 %6199
    %v6201 = vsel %vm2787, %v6051, 0.0
    %6202 = vadd.xlane.f32.xlu0 %v6201
    %v6203 = vpop.xlane.xlu0 %6202
    %v6204 = vsel %vm2787, %v6052, 0.0
    %6205 = vadd.xlane.f32.xlu0 %v6204
    %v6206 = vpop.xlane.xlu0 %6205
    %v6207 = vsel %vm2787, %v6053, 0.0
    %6208 = vadd.xlane.f32.xlu0 %v6207
    %v6209 = vpop.xlane.xlu0 %6208
    %v6210 = vsel %vm2787, %v6054, 0.0
    %6211 = vadd.xlane.f32.xlu0 %v6210
    %v6212 = vpop.xlane.xlu0 %6211
    %v6213 = vsel %vm2787, %v6055, 0.0
    %6214 = vadd.xlane.f32.xlu0 %v6213
    %v6215 = vpop.xlane.xlu0 %6214
    %v6216 = vsel %vm2787, %v6056, 0.0
    %6217 = vadd.xlane.f32.xlu0 %v6216
    %v6218 = vpop.xlane.xlu0 %6217
    %v6219 = vsel %vm2787, %v6057, 0.0
    %6220 = vadd.xlane.f32.xlu0 %v6219
    %v6221 = vpop.xlane.xlu0 %6220
    %v6222 = vsel %vm2787, %v6058, 0.0
    %6223 = vadd.xlane.f32.xlu0 %v6222
    %v6224 = vpop.xlane.xlu0 %6223
    %v6225 = vsel %vm2787, %v6059, 0.0
    %6226 = vadd.xlane.f32.xlu0 %v6225
    %v6227 = vpop.xlane.xlu0 %6226
    %v6228 = vsel %vm2787, %v6060, 0.0
    %6229 = vadd.xlane.f32.xlu0 %v6228
    %v6230 = vpop.xlane.xlu0 %6229
    %v6231 = vsel %vm2787, %v6061, 0.0
    %6232 = vadd.xlane.f32.xlu0 %v6231
    %v6233 = vpop.xlane.xlu0 %6232
    %v6234 = vsel %vm2787, %v6062, 0.0
    %6235 = vadd.xlane.f32.xlu0 %v6234
    %v6236 = vpop.xlane.xlu0 %6235
    %v6237 = vsel %vm2787, %v6063, 0.0
    %6238 = vadd.xlane.f32.xlu0 %v6237
    %v6239 = vpop.xlane.xlu0 %6238
    %v6240 = vsel %vm2787, %v6064, 0.0
    %6241 = vadd.xlane.f32.xlu0 %v6240
    %v6242 = vpop.xlane.xlu0 %6241
    %v6243 = vsel %vm2787, %v6065, 0.0
    %6244 = vadd.xlane.f32.xlu0 %v6243
    %v6245 = vpop.xlane.xlu0 %6244
    %v6246 = vsel %vm2787, %v6066, 0.0
    %6247 = vadd.xlane.f32.xlu0 %v6246
    %v6248 = vpop.xlane.xlu0 %6247
    %v6249 = vsel %vm2787, %v6067, 0.0
    %6250 = vadd.xlane.f32.xlu0 %v6249
    %v6251 = vpop.xlane.xlu0 %6250
    %v6252 = vsel %vm2787, %v6068, 0.0
    %6253 = vadd.xlane.f32.xlu0 %v6252
    %v6254 = vpop.xlane.xlu0 %6253
    %v6255 = vsel %vm2787, %v6069, 0.0
    %6256 = vadd.xlane.f32.xlu0 %v6255
    %v6257 = vpop.xlane.xlu0 %6256
    %v6258 = vsel %vm2787, %v6070, 0.0
    %6259 = vadd.xlane.f32.xlu0 %v6258
    %v6260 = vpop.xlane.xlu0 %6259
    %v6261 = vsel %vm2787, %v6071, 0.0
    %6262 = vadd.xlane.f32.xlu0 %v6261
    %v6263 = vpop.xlane.xlu0 %6262
    %v6264 = vmul.f32 %v6074, %v3654
    %v6265 = vmul.f32 %v6077, %v3654
    %v6266 = vmul.f32 %v6080, %v3654
    %v6267 = vmul.f32 %v6083, %v3654
    %v6268 = vmul.f32 %v6086, %v3654
    %v6269 = vmul.f32 %v6089, %v3654
    %v6270 = vmul.f32 %v6092, %v3654
    %v6271 = vmul.f32 %v6095, %v3654
    %v6272 = vmul.f32 %v6098, %v3654
    %v6273 = vmul.f32 %v6101, %v3654
    %v6274 = vmul.f32 %v6104, %v3654
    %v6275 = vmul.f32 %v6107, %v3654
    %v6276 = vmul.f32 %v6110, %v3654
    %v6277 = vmul.f32 %v6113, %v3654
    %v6278 = vmul.f32 %v6116, %v3654
    %v6279 = vmul.f32 %v6119, %v3654
    %v6280 = vmul.f32 %v6122, %v3654
    %v6281 = vmul.f32 %v6125, %v3654
    %v6282 = vmul.f32 %v6128, %v3654
    %v6283 = vmul.f32 %v6131, %v3654
    %v6284 = vmul.f32 %v6134, %v3654
    %v6285 = vmul.f32 %v6137, %v3654
    %v6286 = vmul.f32 %v6140, %v3654
    %v6287 = vmul.f32 %v6143, %v3654
    %v6288 = vmul.f32 %v6146, %v3654
    %v6289 = vmul.f32 %v6149, %v3654
    %v6290 = vmul.f32 %v6152, %v3654
    %v6291 = vmul.f32 %v6155, %v3654
    %v6292 = vmul.f32 %v6158, %v3654
    %v6293 = vmul.f32 %v6161, %v3654
    %v6294 = vmul.f32 %v6164, %v3654
    %v6295 = vmul.f32 %v6167, %v3654
    %v6296 = vmul.f32 %v6170, %v3654
    %v6297 = vmul.f32 %v6173, %v3654
    %v6298 = vmul.f32 %v6176, %v3654
    %v6299 = vmul.f32 %v6179, %v3654
    %v6300 = vmul.f32 %v6182, %v3654
    %v6301 = vmul.f32 %v6185, %v3654
    %v6302 = vmul.f32 %v6188, %v3654
    %v6303 = vmul.f32 %v6191, %v3654
    %v6304 = vmul.f32 %v6194, %v3654
    %v6305 = vmul.f32 %v6197, %v3654
    %v6306 = vmul.f32 %v6200, %v3654
    %v6307 = vmul.f32 %v6203, %v3654
    %v6308 = vmul.f32 %v6206, %v3654
    %v6309 = vmul.f32 %v6209, %v3654
    %v6310 = vmul.f32 %v6212, %v3654
    %v6311 = vmul.f32 %v6215, %v3654
    %v6312 = vmul.f32 %v6218, %v3654
    %v6313 = vmul.f32 %v6221, %v3654
    %v6314 = vmul.f32 %v6224, %v3654
    %v6315 = vmul.f32 %v6227, %v3654
    %v6316 = vmul.f32 %v6230, %v3654
    %v6317 = vmul.f32 %v6233, %v3654
    %v6318 = vmul.f32 %v6236, %v3654
    %v6319 = vmul.f32 %v6239, %v3654
    %v6320 = vmul.f32 %v6242, %v3654
    %v6321 = vmul.f32 %v6245, %v3654
    %v6322 = vmul.f32 %v6248, %v3654
    %v6323 = vmul.f32 %v6251, %v3654
    %v6324 = vmul.f32 %v6254, %v3654
    %v6325 = vmul.f32 %v6257, %v3654
    %v6326 = vmul.f32 %v6260, %v3654
    %v6327 = vmul.f32 %v6263, %v3654
    %v6328 = vmul.f32 %v4999, %v6264
    %v6329 = vmul.f32 %v5000, %v6265
    %v6330 = vmul.f32 %v5001, %v6266
    %v6331 = vmul.f32 %v5002, %v6267
    %v6332 = vmul.f32 %v5003, %v6268
    %v6333 = vmul.f32 %v5004, %v6269
    %v6334 = vmul.f32 %v5005, %v6270
    %v6335 = vmul.f32 %v5006, %v6271
    %v6336 = vmul.f32 %v5007, %v6272
    %v6337 = vmul.f32 %v5008, %v6273
    %v6338 = vmul.f32 %v5009, %v6274
    %v6339 = vmul.f32 %v5010, %v6275
    %v6340 = vmul.f32 %v5011, %v6276
    %v6341 = vmul.f32 %v5012, %v6277
    %v6342 = vmul.f32 %v5013, %v6278
    %v6343 = vmul.f32 %v5014, %v6279
    %v6344 = vmul.f32 %v5015, %v6280
    %v6345 = vmul.f32 %v5016, %v6281
    %v6346 = vmul.f32 %v5017, %v6282
    %v6347 = vmul.f32 %v5018, %v6283
    %v6348 = vmul.f32 %v5019, %v6284
    %v6349 = vmul.f32 %v5020, %v6285
    %v6350 = vmul.f32 %v5021, %v6286
    %v6351 = vmul.f32 %v5022, %v6287
    %v6352 = vmul.f32 %v5023, %v6288
    %v6353 = vmul.f32 %v5024, %v6289
    %v6354 = vmul.f32 %v5025, %v6290
    %v6355 = vmul.f32 %v5026, %v6291
    %v6356 = vmul.f32 %v5027, %v6292
    %v6357 = vmul.f32 %v5028, %v6293
    %v6358 = vmul.f32 %v5029, %v6294
    %v6359 = vmul.f32 %v5030, %v6295
    %v6360 = vmul.f32 %v5031, %v6296
    %v6361 = vmul.f32 %v5032, %v6297
    %v6362 = vmul.f32 %v5033, %v6298
    %v6363 = vmul.f32 %v5034, %v6299
    %v6364 = vmul.f32 %v5035, %v6300
    %v6365 = vmul.f32 %v5036, %v6301
    %v6366 = vmul.f32 %v5037, %v6302
    %v6367 = vmul.f32 %v5038, %v6303
    %v6368 = vmul.f32 %v5039, %v6304
    %v6369 = vmul.f32 %v5040, %v6305
    %v6370 = vmul.f32 %v5041, %v6306
    %v6371 = vmul.f32 %v5042, %v6307
    %v6372 = vmul.f32 %v5043, %v6308
    %v6373 = vmul.f32 %v5044, %v6309
    %v6374 = vmul.f32 %v5045, %v6310
    %v6375 = vmul.f32 %v5046, %v6311
    %v6376 = vmul.f32 %v5047, %v6312
    %v6377 = vmul.f32 %v5048, %v6313
    %v6378 = vmul.f32 %v5049, %v6314
    %v6379 = vmul.f32 %v5050, %v6315
    %v6380 = vmul.f32 %v5051, %v6316
    %v6381 = vmul.f32 %v5052, %v6317
    %v6382 = vmul.f32 %v5053, %v6318
    %v6383 = vmul.f32 %v5054, %v6319
    %v6384 = vmul.f32 %v5055, %v6320
    %v6385 = vmul.f32 %v5056, %v6321
    %v6386 = vmul.f32 %v5057, %v6322
    %v6387 = vmul.f32 %v5058, %v6323
    %v6388 = vmul.f32 %v5059, %v6324
    %v6389 = vmul.f32 %v5060, %v6325
    %v6390 = vmul.f32 %v5061, %v6326
    %v6391 = vmul.f32 %v5062, %v6327
    %v6392 = vsel %vm2787, %v6328, 0.0
    %v6393 = vsel %vm2787, %v6329, 0.0
    %v6394 = vadd.f32 %v6392, %v6393
    %v6395 = vsel %vm2787, %v6330, 0.0
    %v6396 = vadd.f32 %v6394, %v6395
    %v6397 = vsel %vm2787, %v6331, 0.0
    %v6398 = vadd.f32 %v6396, %v6397
    %v6399 = vsel %vm2787, %v6332, 0.0
    %v6400 = vadd.f32 %v6398, %v6399
    %v6401 = vsel %vm2787, %v6333, 0.0
    %v6402 = vadd.f32 %v6400, %v6401
    %v6403 = vsel %vm2787, %v6334, 0.0
    %v6404 = vadd.f32 %v6402, %v6403
    %v6405 = vsel %vm2787, %v6335, 0.0
    %v6406 = vadd.f32 %v6404, %v6405
    %v6407 = vrot.slane %v6406, 4
    %v6408 = vadd.f32 %v6406, %v6407
    %v6409 = vrot.slane %v6408, 2
    %v6410 = vadd.f32 %v6408, %v6409
    %v6411 = vrot.slane %v6410, 1
    %v6412 = vadd.f32 %v6410, %v6411
    %v6413 = vsel %vm2787, %v6336, 0.0
    %v6414 = vsel %vm2787, %v6337, 0.0
    %v6415 = vadd.f32 %v6413, %v6414
    %v6416 = vsel %vm2787, %v6338, 0.0
    %v6417 = vadd.f32 %v6415, %v6416
    %v6418 = vsel %vm2787, %v6339, 0.0
    %v6419 = vadd.f32 %v6417, %v6418
    %v6420 = vsel %vm2787, %v6340, 0.0
    %v6421 = vadd.f32 %v6419, %v6420
    %v6422 = vsel %vm2787, %v6341, 0.0
    %v6423 = vadd.f32 %v6421, %v6422
    %v6424 = vsel %vm2787, %v6342, 0.0
    %v6425 = vadd.f32 %v6423, %v6424
    %v6426 = vsel %vm2787, %v6343, 0.0
    %v6427 = vadd.f32 %v6425, %v6426
    %v6428 = vrot.slane %v6427, 4
    %v6429 = vadd.f32 %v6427, %v6428
    %v6430 = vrot.slane %v6429, 2
    %v6431 = vadd.f32 %v6429, %v6430
    %v6432 = vrot.slane %v6431, 1
    %v6433 = vadd.f32 %v6431, %v6432
    %v6434 = vsel %vm2787, %v6344, 0.0
    %v6435 = vsel %vm2787, %v6345, 0.0
    %v6436 = vadd.f32 %v6434, %v6435
    %v6437 = vsel %vm2787, %v6346, 0.0
    %v6438 = vadd.f32 %v6436, %v6437
    %v6439 = vsel %vm2787, %v6347, 0.0
    %v6440 = vadd.f32 %v6438, %v6439
    %v6441 = vsel %vm2787, %v6348, 0.0
    %v6442 = vadd.f32 %v6440, %v6441
    %v6443 = vsel %vm2787, %v6349, 0.0
    %v6444 = vadd.f32 %v6442, %v6443
    %v6445 = vsel %vm2787, %v6350, 0.0
    %v6446 = vadd.f32 %v6444, %v6445
    %v6447 = vsel %vm2787, %v6351, 0.0
    %v6448 = vadd.f32 %v6446, %v6447
    %v6449 = vrot.slane %v6448, 4
    %v6450 = vadd.f32 %v6448, %v6449
    %v6451 = vrot.slane %v6450, 2
    %v6452 = vadd.f32 %v6450, %v6451
    %v6453 = vrot.slane %v6452, 1
    %v6454 = vadd.f32 %v6452, %v6453
    %v6455 = vsel %vm2787, %v6352, 0.0
    %v6456 = vsel %vm2787, %v6353, 0.0
    %v6457 = vadd.f32 %v6455, %v6456
    %v6458 = vsel %vm2787, %v6354, 0.0
    %v6459 = vadd.f32 %v6457, %v6458
    %v6460 = vsel %vm2787, %v6355, 0.0
    %v6461 = vadd.f32 %v6459, %v6460
    %v6462 = vsel %vm2787, %v6356, 0.0
    %v6463 = vadd.f32 %v6461, %v6462
    %v6464 = vsel %vm2787, %v6357, 0.0
    %v6465 = vadd.f32 %v6463, %v6464
    %v6466 = vsel %vm2787, %v6358, 0.0
    %v6467 = vadd.f32 %v6465, %v6466
    %v6468 = vsel %vm2787, %v6359, 0.0
    %v6469 = vadd.f32 %v6467, %v6468
    %v6470 = vrot.slane %v6469, 4
    %v6471 = vadd.f32 %v6469, %v6470
    %v6472 = vrot.slane %v6471, 2
    %v6473 = vadd.f32 %v6471, %v6472
    %v6474 = vrot.slane %v6473, 1
    %v6475 = vadd.f32 %v6473, %v6474
    %v6476 = vsel %vm2787, %v6360, 0.0
    %v6477 = vsel %vm2787, %v6361, 0.0
    %v6478 = vadd.f32 %v6476, %v6477
    %v6479 = vsel %vm2787, %v6362, 0.0
    %v6480 = vadd.f32 %v6478, %v6479
    %v6481 = vsel %vm2787, %v6363, 0.0
    %v6482 = vadd.f32 %v6480, %v6481
    %v6483 = vsel %vm2787, %v6364, 0.0
    %v6484 = vadd.f32 %v6482, %v6483
    %v6485 = vsel %vm2787, %v6365, 0.0
    %v6486 = vadd.f32 %v6484, %v6485
    %v6487 = vsel %vm2787, %v6366, 0.0
    %v6488 = vadd.f32 %v6486, %v6487
    %v6489 = vsel %vm2787, %v6367, 0.0
    %v6490 = vadd.f32 %v6488, %v6489
    %v6491 = vrot.slane %v6490, 4
    %v6492 = vadd.f32 %v6490, %v6491
    %v6493 = vrot.slane %v6492, 2
    %v6494 = vadd.f32 %v6492, %v6493
    %v6495 = vrot.slane %v6494, 1
    %v6496 = vadd.f32 %v6494, %v6495
    %v6497 = vsel %vm2787, %v6368, 0.0
    %v6498 = vsel %vm2787, %v6369, 0.0
    %v6499 = vadd.f32 %v6497, %v6498
    %v6500 = vsel %vm2787, %v6370, 0.0
    %v6501 = vadd.f32 %v6499, %v6500
    %v6502 = vsel %vm2787, %v6371, 0.0
    %v6503 = vadd.f32 %v6501, %v6502
    %v6504 = vsel %vm2787, %v6372, 0.0
    %v6505 = vadd.f32 %v6503, %v6504
    %v6506 = vsel %vm2787, %v6373, 0.0
    %v6507 = vadd.f32 %v6505, %v6506
    %v6508 = vsel %vm2787, %v6374, 0.0
    %v6509 = vadd.f32 %v6507, %v6508
    %v6510 = vsel %vm2787, %v6375, 0.0
    %v6511 = vadd.f32 %v6509, %v6510
    %v6512 = vrot.slane %v6511, 4
    %v6513 = vadd.f32 %v6511, %v6512
    %v6514 = vrot.slane %v6513, 2
    %v6515 = vadd.f32 %v6513, %v6514
    %v6516 = vrot.slane %v6515, 1
    %v6517 = vadd.f32 %v6515, %v6516
    %v6518 = vsel %vm2787, %v6376, 0.0
    %v6519 = vsel %vm2787, %v6377, 0.0
    %v6520 = vadd.f32 %v6518, %v6519
    %v6521 = vsel %vm2787, %v6378, 0.0
    %v6522 = vadd.f32 %v6520, %v6521
    %v6523 = vsel %vm2787, %v6379, 0.0
    %v6524 = vadd.f32 %v6522, %v6523
    %v6525 = vsel %vm2787, %v6380, 0.0
    %v6526 = vadd.f32 %v6524, %v6525
    %v6527 = vsel %vm2787, %v6381, 0.0
    %v6528 = vadd.f32 %v6526, %v6527
    %v6529 = vsel %vm2787, %v6382, 0.0
    %v6530 = vadd.f32 %v6528, %v6529
    %v6531 = vsel %vm2787, %v6383, 0.0
    %v6532 = vadd.f32 %v6530, %v6531
    %v6533 = vrot.slane %v6532, 4
    %v6534 = vadd.f32 %v6532, %v6533
    %v6535 = vrot.slane %v6534, 2
    %v6536 = vadd.f32 %v6534, %v6535
    %v6537 = vrot.slane %v6536, 1
    %v6538 = vadd.f32 %v6536, %v6537
    %v6539 = vsel %vm2787, %v6384, 0.0
    %v6540 = vsel %vm2787, %v6385, 0.0
    %v6541 = vadd.f32 %v6539, %v6540
    %v6542 = vsel %vm2787, %v6386, 0.0
    %v6543 = vadd.f32 %v6541, %v6542
    %v6544 = vsel %vm2787, %v6387, 0.0
    %v6545 = vadd.f32 %v6543, %v6544
    %v6546 = vsel %vm2787, %v6388, 0.0
    %v6547 = vadd.f32 %v6545, %v6546
    %v6548 = vsel %vm2787, %v6389, 0.0
    %v6549 = vadd.f32 %v6547, %v6548
    %v6550 = vsel %vm2787, %v6390, 0.0
    %v6551 = vadd.f32 %v6549, %v6550
    %v6552 = vsel %vm2787, %v6391, 0.0
    %v6553 = vadd.f32 %v6551, %v6552
    %v6554 = vrot.slane %v6553, 4
    %v6555 = vadd.f32 %v6553, %v6554
    %v6556 = vrot.slane %v6555, 2
    %v6557 = vadd.f32 %v6555, %v6556
    %v6558 = vrot.slane %v6557, 1
    %v6559 = vadd.f32 %v6557, %v6558
    %v6560 = vld [vmem:[#allocation4] sm:$0xff]
    %v6561 = vld [vmem:[#allocation4 + $0x8] sm:$0xff]
    %v6562 = vld [vmem:[#allocation4 + $0x10] sm:$0xff]
    %v6563 = vld [vmem:[#allocation4 + $0x18] sm:$0xff]
    %v6564 = vld [vmem:[#allocation4 + $0x20] sm:$0xff]
    %v6565 = vld [vmem:[#allocation4 + $0x28] sm:$0xff]
    %v6566 = vld [vmem:[#allocation4 + $0x30] sm:$0xff]
    %v6567 = vld [vmem:[#allocation4 + $0x38] sm:$0xff]
    %vm6576 = vcmask 1041409
    %v6577 = vsel %vm6576, %v6433, %v6412
    %vm6578 = vcmask 1042434
    %v6579 = vsel %vm6578, %v6454, %v6577
    %vm6580 = vcmask 1043459
    %v6581 = vsel %vm6580, %v6475, %v6579
    %vm6582 = vcmask 1044484
    %v6583 = vsel %vm6582, %v6496, %v6581
    %vm6584 = vcmask 1045509
    %v6585 = vsel %vm6584, %v6517, %v6583
    %vm6586 = vcmask 1046534
    %v6587 = vsel %vm6586, %v6538, %v6585
    %vm6588 = vcmask 1047559
    %v6589 = vsel %vm6588, %v6559, %v6587
    %v6590 = vsel %vm2787, %v6589, 0
    %6592 = vmatpush.msra.mxu0 0.0
    %6593 = vmatpush.msra.mxu0 0.0
    %6594 = vmatpush.msra.mxu0 0.0
    %6595 = vmatpush.msra.mxu0 0.0
    %6596 = vmatpush.msra.mxu0 0.0
    %6597 = vmatpush.msra.mxu0 0.0
    %6598 = vmatpush.msra.mxu0 0.0
    %6599 = vmatpush.msra.mxu0 0.0
    %6600 = vmatpush.msra.mxu0 %v6567
    %6601 = vmatpush.msra.mxu0 %v6566
    %6602 = vmatpush.msra.mxu0 %v6565
    %6603 = vmatpush.msra.mxu0 %v6564
    %6604 = vmatpush.msra.mxu0 %v6563
    %6605 = vmatpush.msra.mxu0 %v6562
    %6606 = vmatpush.msra.mxu0 %v6561
    %6607 = vmatpush.msra.mxu0 %v6560
    %6608 = vmatmul.f32.gmra.mxu0 %v6590
    %v6609 = vpop.f32.mrf.mxu0
    %v6610 = vadd.f32 0.0, %v6609
    %6611 = vdwg.mxu0
    %v6612 = vrot.slane %v6610, 4
    %v6613 = vadd.f32 %v6610, %v6612
    %v6614 = vrot.slane %v6613, 2
    %v6615 = vadd.f32 %v6613, %v6614
    %v6616 = vrot.slane %v6615, 1
    %v6617 = vadd.f32 %v6615, %v6616
    %v6618 = vmul.f32 %v6617, 0.125
    %v6619 = vmul.f32 %v6610, %v6610
    %v6620 = vrot.slane %v6619, 4
    %v6621 = vadd.f32 %v6619, %v6620
    %v6622 = vrot.slane %v6621, 2
    %v6623 = vadd.f32 %v6621, %v6622
    %v6624 = vrot.slane %v6623, 1
    %v6625 = vadd.f32 %v6623, %v6624
    %v6626 = vmul.f32 %v6625, 0.125
    %v6627 = vmul.f32 %v6618, %v6618
    %v6628 = vsub.f32 %v6626, %v6627
    %v6629 = vmax.f32 %v6628, 0.0
    %v6630 = vsub.f32 %v6610, %v6618
    %v6631 = vadd.f32 %v6629, 1e-05
    %v6632 = vrsqrt.pop %v6631
    %v6633 = vmul.f32 %v6632, %v6631
    %v6634 = vmul.f32 %v6633, %v6632
    %v6635 = vmul.f32 0.5, %v6634
    %v6636 = vsub.f32 1.5, %v6635
    %v6637 = vmul.f32 %v6632, %v6636
    %vm6638 = vweird.f32 %v6631
    %vm6639 = vweird.f32 %v6632
    %vm6640 = vmor %vm6638, %vm6639
    %v6641 = vsel %vm6640, %v6632, %v6637
    %v6642 = vmul.f32 %v6630, %v6641
    %v6643 = vperm.slane %v92, 6
    %v6644 = vmul.f32 %v6642, %v6643
    %v6645 = vperm.slane %v92, 7
    %v6646 = vadd.f32 %v6644, %v6645
    %v6647 = vmax.f32 %v6646, 0.0
    %v6648 = vld [vmem:[#allocation6] sm:$0xff]
    %v6649 = vld [vmem:[#allocation6 + $0x8] sm:$0xff]
    %v6650 = vld [vmem:[#allocation6 + $0x10] sm:$0xff]
    %v6651 = vld [vmem:[#allocation6 + $0x18] sm:$0xff]
    %v6652 = vld [vmem:[#allocation6 + $0x20] sm:$0xff]
    %v6653 = vld [vmem:[#allocation6 + $0x28] sm:$0xff]
    %v6654 = vld [vmem:[#allocation6 + $0x30] sm:$0xff]
    %v6655 = vld [vmem:[#allocation6 + $0x38] sm:$0xff]
    %v6656 = vld [vmem:[#allocation6 + $0x40] sm:$0xff]
    %v6657 = vld [vmem:[#allocation6 + $0x48] sm:$0xff]
    %v6658 = vld [vmem:[#allocation6 + $0x50] sm:$0xff]
    %v6659 = vld [vmem:[#allocation6 + $0x58] sm:$0xff]
    %v6660 = vld [vmem:[#allocation6 + $0x60] sm:$0xff]
    %v6661 = vld [vmem:[#allocation6 + $0x68] sm:$0xff]
    %v6662 = vld [vmem:[#allocation6 + $0x70] sm:$0xff]
    %v6663 = vld [vmem:[#allocation6 + $0x78] sm:$0xff]
    %v6664 = vperm.slane %v93, 0
    %6665 = vmatpush.msra.mxu0 %v6663
    %6666 = vmatpush.msra.mxu0 %v6662
    %6667 = vmatpush.msra.mxu0 %v6661
    %6668 = vmatpush.msra.mxu0 %v6660
    %6669 = vmatpush.msra.mxu0 %v6659
    %6670 = vmatpush.msra.mxu0 %v6658
    %6671 = vmatpush.msra.mxu0 %v6657
    %6672 = vmatpush.msra.mxu0 %v6656
    %6673 = vmatpush.msra.mxu0 %v6655
    %6674 = vmatpush.msra.mxu0 %v6654
    %6675 = vmatpush.msra.mxu0 %v6653
    %6676 = vmatpush.msra.mxu0 %v6652
    %6677 = vmatpush.msra.mxu0 %v6651
    %6678 = vmatpush.msra.mxu0 %v6650
    %6679 = vmatpush.msra.mxu0 %v6649
    %6680 = vmatpush.msra.mxu0 %v6648
    %6681 = vmatmul.f32.gmra.mxu0 %v6647
    %v6682 = vpop.f32.mrf.mxu0
    %v6683 = vadd.f32 %v6664, %v6682
    %6684 = vdwg.mxu0
    %6685 = vst [vmem:[%s8] sm:$0xff] %v6683
    // Predicated region
    $region50: #{pointnet_compressor.1} parent=1 // pred_check
      _
    $region51: #{pointnet_compressor.1} parent=1 // pred_check_branch
      %6687 = sbr.rel (0) target = $region53
    $region52: #{pointnet_compressor.1} parent=1 // pred_region
      _
    $region53: #{pointnet_compressor.1} parent=1 // pred_fallthru
      _
    // Predicated region
    $region54: #{pointnet_compressor.1} parent=1 // pred_check
      _
    $region55: #{pointnet_compressor.1} parent=1 // pred_check_branch
      %6689 = sbr.rel (0) target = $region57
    $region56: #{pointnet_compressor.1} parent=1 // pred_region
      _
    $region57: #{pointnet_compressor.1} parent=1 // pred_fallthru
      _
    %6690 = vsyncpa [#allocation3], 1
    %6691 = vsyncpa [#allocation5], 1
    %6692 = vsyncpa [#allocation8], 1

</llo_original>
